<compile_context>
chip_gen: v5e
topology: v5e:2x2
jax: 0.10.0
libtpu: 0.0.40
codegen_flags: <defaults>
</compile_context>

<pallas_src>
import jax
import jax.numpy as jnp
from jax import lax
from jax.experimental import pallas as pl
from jax.experimental.pallas import tpu as pltpu

BERT_DIM = 32          # stands in for 768 (rubert-base-cased) at small test size
HIDDEN = BERT_DIM      # lstm_dim == -1  ->  hidden_size = bert_dim
OUT_DIM = 4            # len(labels_dict)  (labels_dict is external; fixed here)
OUT_PAD = 128          # lane-padded output head (sliced back in the wrapper)
VOCAB = 101
B_TILE_TARGET = 128    # target batch rows per grid step (review: fill MXU rows)
B_TILE_MIN = 16        # multiple of 16 for bf16 sublane packing
TIME_UNROLL = 8        # bounded unroll of the serial time loop


def bert_lstm_kernel(emb_ref,                        # (S, Bt, D)   bf16, time-major
                     wih_f_ref, whh_f_ref, b_f_ref,  # (D,4H) bf16, (H,4H) bf16, (1,4H) f32
                     wih_b_ref, whh_b_ref, b_b_ref,  # reverse direction
                     wlf_ref, wlb_ref, b_lin_ref,    # (H,OUT_PAD) bf16 x2, (1,OUT_PAD) f32
                     out_ref,                        # (S, Bt, OUT_PAD) bf16
                     gxf_ref, gxb_ref, hf_ref, hb_ref):  # scratch (per batch tile)
    S, Bt, D = emb_ref.shape
    H = whh_f_ref.shape[0]

    # Input contributions for all timesteps: one big MXU matmul per direction,
    # biases folded in once.  Stored bf16 (halves the dominant scratch).
    x_flat = emb_ref[...].reshape(S * Bt, D)                       # bf16
    gxf_ref[...] = (jnp.dot(x_flat, wih_f_ref[...],
                            preferred_element_type=jnp.float32)
                    + b_f_ref[...]).astype(jnp.bfloat16).reshape(S, Bt, 4 * H)
    gxb_ref[...] = (jnp.dot(x_flat, wih_b_ref[...],
                            preferred_element_type=jnp.float32)
                    + b_b_ref[...]).astype(jnp.bfloat16).reshape(S, Bt, 4 * H)

    whh_f = whh_f_ref[...]                                         # bf16 (H, 4H)
    whh_b = whh_b_ref[...]

    def cell(gates, c):
        # Gate column order (prepped in init_params): [i, f, o, g]
        # -> one EUP sigmoid launch over 3H columns + one tanh over H columns.
        sig = jax.nn.sigmoid(gates[:, :3 * H])
        i = sig[:, 0 * H:1 * H]
        f = sig[:, 1 * H:2 * H]
        o = sig[:, 2 * H:3 * H]
        g = jnp.tanh(gates[:, 3 * H:4 * H])
        c_new = f * c + i * g                                      # f32
        h_new = o * jnp.tanh(c_new)
        return h_new.astype(jnp.bfloat16), c_new                   # h carried bf16

    def body(k, carry):
        # Fused forward step k and backward step S-1-k: the two directions are
        # independent, so their MXU pushes / transcendentals interleave.
        hf, cf, hb, cb = carry
        tb = S - 1 - k
        gf = gxf_ref[k].astype(jnp.float32) + jnp.dot(
            hf, whh_f, preferred_element_type=jnp.float32)
        gb = gxb_ref[tb].astype(jnp.float32) + jnp.dot(
            hb, whh_b, preferred_element_type=jnp.float32)
        hf, cf = cell(gf, cf)
        hb, cb = cell(gb, cb)
        hf_ref[k] = hf                                             # bf16 store
        hb_ref[tb] = hb
        return (hf, cf, hb, cb)

    zero_h = jnp.zeros((Bt, H), jnp.bfloat16)
    zero_c = jnp.zeros((Bt, H), jnp.float32)
    lax.fori_loop(0, S, body, (zero_h, zero_c, zero_h, zero_c),
                  unroll=TIME_UNROLL)

    # Output Linear without concatenation: split the weight by direction.
    hf_flat = hf_ref[...].reshape(S * Bt, H)                       # already bf16
    hb_flat = hb_ref[...].reshape(S * Bt, H)
    y = (jnp.dot(hf_flat, wlf_ref[...], preferred_element_type=jnp.float32)
         + jnp.dot(hb_flat, wlb_ref[...], preferred_element_type=jnp.float32)
         + b_lin_ref[...])
    out_ref[...] = y.reshape(S, Bt, OUT_PAD).astype(out_ref.dtype)  # lane-dense bf16


def init_params(key):
    ks = jax.random.split(key, 11)
    H, D = HIDDEN, BERT_DIM
    s = 1.0 / jnp.sqrt(jnp.float32(H))

    def u(k, shape):
        return jax.random.uniform(k, shape, jnp.float32, -s, s)

    w_lin_T = u(ks[8], (2 * H, OUT_DIM))          # (2H, O)
    b_lin = u(ks[9], (1, OUT_DIM))
    # Lane-pad the tiny output head to 128; wrapper slices [:OUT_DIM] back.
    w_lin_pad = jnp.zeros((2 * H, OUT_PAD), jnp.float32).at[:, :OUT_DIM].set(w_lin_T)
    b_lin_pad = jnp.zeros((1, OUT_PAD), jnp.float32).at[:, :OUT_DIM].set(b_lin)

    # NOTE: gate columns are laid out [i, f, o, g] (sigmoid gates contiguous).
    # When importing PyTorch weights (order [i, f, g, o]) permute columns here.
    return {
        'emb_table': jax.random.normal(ks[0], (VOCAB, D), jnp.float32) * 0.02,
        # weights stored pre-transposed and bf16 (MXU-native); biases stay f32.
        'wih_f_T': u(ks[1], (D, 4 * H)).astype(jnp.bfloat16),
        'whh_f_T': u(ks[2], (H, 4 * H)).astype(jnp.bfloat16),
        'b_f':     u(ks[3], (1, 4 * H)) + u(ks[4], (1, 4 * H)),   # b_ih + b_hh
        'wih_b_T': u(ks[5], (D, 4 * H)).astype(jnp.bfloat16),
        'whh_b_T': u(ks[6], (H, 4 * H)).astype(jnp.bfloat16),
        'b_b':     u(ks[7], (1, 4 * H)) + u(ks[10], (1, 4 * H)),  # independent draws
        'w_lin_f_T': w_lin_pad[:H].astype(jnp.bfloat16),          # (H, OUT_PAD)
        'w_lin_b_T': w_lin_pad[H:].astype(jnp.bfloat16),          # (H, OUT_PAD)
        'b_lin':   b_lin_pad,                                     # (1, OUT_PAD)
    }


def _choose_b_tile(B, S, D, H, budget_bytes=40 << 20):
    """Largest batch tile (multiple of 16, <= 128) whose per-tile VMEM fits."""
    def tile_bytes(bt):
        gx = 2 * S * bt * 4 * H * 2                 # bf16 fwd+bwd input gates
        hs = 2 * S * bt * H * 2                     # bf16 fwd+bwd hidden states
        io = 2 * (S * bt * D * 2 + S * bt * OUT_PAD * 2)   # double-buffered in/out tiles
        w = 2 * 2 * (D * 4 * H + H * 4 * H + H * OUT_PAD) * 2   # double-buffered weights
        b = 2 * (2 * 4 * H + OUT_PAD) * 4
        return gx + hs + io + w + b

    bt = min(B_TILE_TARGET, ((B + B_TILE_MIN - 1) // B_TILE_MIN) * B_TILE_MIN)
    bt = max(bt, B_TILE_MIN)
    while bt > B_TILE_MIN and tile_bytes(bt) > budget_bytes:
        bt -= B_TILE_MIN
    return bt


def bert_lstm_forward(x_ids, attn_masks, params):
    if x_ids.ndim == 1:                      # matches x.view(1, x.shape[0])
        x_ids = x_ids[None, :]
    del attn_masks
    # TODO(synk): the pretrained 12-layer BERT encoder (AutoModel.from_pretrained)
    # has no clean in-script equivalent; it is replaced by a deterministic
    # token-embedding lookup, and attn_masks is accepted but unused.
    emb = jnp.take(params['emb_table'], x_ids, axis=0)            # (B, S, D)
    B, S, D = emb.shape
    H = HIDDEN

    b_tile = _choose_b_tile(B, S, D, H)
    B_pad = ((B + b_tile - 1) // b_tile) * b_tile
    n_tiles = B_pad // b_tile

    # Layout plumbing in plain JAX (fuses with the gather): pad batch to a
    # sublane-aligned tile, go time-major, cast MXU operands to bf16.
    emb = jnp.pad(emb, ((0, B_pad - B), (0, 0), (0, 0)))
    emb_tm = jnp.transpose(emb, (1, 0, 2)).astype(jnp.bfloat16)   # (S, B_pad, D)

    flops = (2 * 2 * S * B_pad * D * 4 * H        # input-gate matmuls
             + 2 * 2 * S * B_pad * H * 4 * H      # recurrent matmuls
             + 2 * 2 * S * B_pad * H * OUT_PAD)   # output linear
    transcendentals = 2 * S * B_pad * 5 * H       # 3 sigmoid + 2 tanh per cell
    bytes_accessed = (emb_tm.size * 2
                      + S * B_pad * OUT_PAD * 2
                      + 2 * (D * 4 * H + H * 4 * H) * 2
                      + 2 * 4 * H * 4
                      + 2 * H * OUT_PAD * 2 + OUT_PAD * 4)
    cost = pl.CostEstimate(flops=flops, transcendentals=transcendentals,
                           bytes_accessed=bytes_accessed)

    out_tm = pl.pallas_call(
        bert_lstm_kernel,
        out_shape=jax.ShapeDtypeStruct((S, B_pad, OUT_PAD), jnp.bfloat16),
        grid_spec=pltpu.PrefetchScalarGridSpec(
            num_scalar_prefetch=0,
            grid=(n_tiles,),                                     # batch tiles
            in_specs=[
                pl.BlockSpec((S, b_tile, D), lambda b: (0, b, 0)),   # emb tile
                pl.BlockSpec((D, 4 * H), lambda b: (0, 0)),          # wih_f
                pl.BlockSpec((H, 4 * H), lambda b: (0, 0)),          # whh_f
                pl.BlockSpec((1, 4 * H), lambda b: (0, 0)),          # b_f
                pl.BlockSpec((D, 4 * H), lambda b: (0, 0)),          # wih_b
                pl.BlockSpec((H, 4 * H), lambda b: (0, 0)),          # whh_b
                pl.BlockSpec((1, 4 * H), lambda b: (0, 0)),          # b_b
                pl.BlockSpec((H, OUT_PAD), lambda b: (0, 0)),        # w_lin_f
                pl.BlockSpec((H, OUT_PAD), lambda b: (0, 0)),        # w_lin_b
                pl.BlockSpec((1, OUT_PAD), lambda b: (0, 0)),        # b_lin
            ],
            out_specs=pl.BlockSpec((S, b_tile, OUT_PAD), lambda b: (0, b, 0)),
            scratch_shapes=[
                pltpu.VMEM((S, b_tile, 4 * H), jnp.bfloat16),   # fwd input gates
                pltpu.VMEM((S, b_tile, 4 * H), jnp.bfloat16),   # bwd input gates
                pltpu.VMEM((S, b_tile, H), jnp.bfloat16),       # fwd hidden states
                pltpu.VMEM((S, b_tile, H), jnp.bfloat16),       # bwd hidden states
            ],
        ),
        compiler_params=pltpu.CompilerParams(
            dimension_semantics=("parallel",),                 # batch tiles independent
            vmem_limit_bytes=48 * 1024 * 1024,                 # safe on v7x, ample here
        ),
        cost_estimate=cost,
    )(emb_tm, params['wih_f_T'], params['whh_f_T'], params['b_f'],
      params['wih_b_T'], params['whh_b_T'], params['b_b'],
      params['w_lin_f_T'], params['w_lin_b_T'], params['b_lin'])

    # Back to batch-major, drop batch padding and the lane padding of the head.
    out = jnp.transpose(out_tm, (1, 0, 2))[:B, :, :OUT_DIM]       # (B, S, O) bf16
    return out.astype(jnp.float32)


def reference_forward(x_ids, params):
    """Pure-JAX reference of the same math (bf16 MXU operands, f32 cell math)."""
    if x_ids.ndim == 1:
        x_ids = x_ids[None, :]
    emb = jnp.take(params['emb_table'], x_ids, axis=0)
    x_t = jnp.transpose(emb, (1, 0, 2)).astype(jnp.bfloat16)      # (S, B, D)
    S, B, _ = x_t.shape
    H = HIDDEN

    def run_dir(wih_T, whh_T, b, reverse):
        seq = x_t[::-1] if reverse else x_t
        gx = (jnp.dot(seq.reshape(S * B, -1), wih_T,
                      preferred_element_type=jnp.float32)
              + b).astype(jnp.bfloat16).reshape(S, B, 4 * H)

        def step(carry, g_t):
            h, c = carry
            gates = g_t.astype(jnp.float32) + jnp.dot(
                h, whh_T, preferred_element_type=jnp.float32)
            sig = jax.nn.sigmoid(gates[:, :3 * H])
            i, f, o = sig[:, :H], sig[:, H:2 * H], sig[:, 2 * H:3 * H]
            g = jnp.tanh(gates[:, 3 * H:])
            c = f * c + i * g
            h = (o * jnp.tanh(c)).astype(jnp.bfloat16)
            return (h, c), h

        zero_h = jnp.zeros((B, H), jnp.bfloat16)
        zero_c = jnp.zeros((B, H), jnp.float32)
        _, hs = lax.scan(step, (zero_h, zero_c), gx)
        return hs[::-1] if reverse else hs

    hf = run_dir(params['wih_f_T'], params['whh_f_T'], params['b_f'], False)
    hb = run_dir(params['wih_b_T'], params['whh_b_T'], params['b_b'], True)
    hf16 = hf.reshape(S * B, H)
    hb16 = hb.reshape(S * B, H)
    y = (jnp.dot(hf16, params['w_lin_f_T'], preferred_element_type=jnp.float32)
         + jnp.dot(hb16, params['w_lin_b_T'], preferred_element_type=jnp.float32)
         + params['b_lin']).astype(jnp.bfloat16).astype(jnp.float32)
    y = y.reshape(S, B, OUT_PAD)[..., :OUT_DIM]
    return jnp.transpose(y, (1, 0, 2))                            # (B, S, O)


if __name__ == "__main__":
    key = jax.random.PRNGKey(0)
    k_par, k_ids = jax.random.split(key)
    params = init_params(k_par)

    B, S = 2, 8
    x_ids = jax.random.randint(k_ids, (B, S), 0, VOCAB, dtype=jnp.int32)
    attn_masks = jnp.ones((B, S), jnp.int32)

    out = bert_lstm_forward(x_ids, attn_masks, params)
    out = jax.block_until_ready(out)
    assert out.shape == (B, S, OUT_DIM)

    ref = reference_forward(x_ids, params)
    assert jnp.allclose(out, ref, rtol=2e-2, atol=2e-2), "mismatch vs reference"

    print("KERNEL_OK")
</pallas_src>

<mosaic_0001>
module attributes {stable_mosaic.version = 11 : i64} {
  func.func @bert_lstm_kernel(%arg0: i32, %arg1: memref<8x16x32xbf16, #tpu.memory_space<vmem>>, %arg2: memref<32x128xbf16, #tpu.memory_space<vmem>>, %arg3: memref<32x128xbf16, #tpu.memory_space<vmem>>, %arg4: memref<1x128xf32, #tpu.memory_space<vmem>>, %arg5: memref<32x128xbf16, #tpu.memory_space<vmem>>, %arg6: memref<32x128xbf16, #tpu.memory_space<vmem>>, %arg7: memref<1x128xf32, #tpu.memory_space<vmem>>, %arg8: memref<32x128xbf16, #tpu.memory_space<vmem>>, %arg9: memref<32x128xbf16, #tpu.memory_space<vmem>>, %arg10: memref<1x128xf32, #tpu.memory_space<vmem>>, %arg11: memref<8x16x128xbf16, #tpu.memory_space<vmem>>, %arg12: memref<8x16x128xbf16, #tpu.memory_space<vmem>>, %arg13: memref<8x16x128xbf16, #tpu.memory_space<vmem>>, %arg14: memref<8x16x32xbf16, #tpu.memory_space<vmem>>, %arg15: memref<8x16x32xbf16, #tpu.memory_space<vmem>>) attributes {dimension_semantics = [#tpu.dimension_semantics<parallel>], iteration_bounds = array<i64: 1>, scalar_prefetch = 0 : i64, scratch_operands = 4 : i64, tpu.core_type = #tpu.core_type<tc>, window_params = [{transform_indices = @transform_0, window_bounds = array<i64: 8, 16, 32>}, {pipeline_mode = #tpu.pipeline_mode<synchronous>, transform_indices = @transform_1, window_bounds = array<i64: 32, 128>}, {pipeline_mode = #tpu.pipeline_mode<synchronous>, transform_indices = @transform_2, window_bounds = array<i64: 32, 128>}, {pipeline_mode = #tpu.pipeline_mode<synchronous>, transform_indices = @transform_3, window_bounds = array<i64: 1, 128>}, {pipeline_mode = #tpu.pipeline_mode<synchronous>, transform_indices = @transform_4, window_bounds = array<i64: 32, 128>}, {pipeline_mode = #tpu.pipeline_mode<synchronous>, transform_indices = @transform_5, window_bounds = array<i64: 32, 128>}, {pipeline_mode = #tpu.pipeline_mode<synchronous>, transform_indices = @transform_6, window_bounds = array<i64: 1, 128>}, {pipeline_mode = #tpu.pipeline_mode<synchronous>, transform_indices = @transform_7, window_bounds = array<i64: 32, 128>}, {pipeline_mode = #tpu.pipeline_mode<synchronous>, transform_indices = @transform_8, window_bounds = array<i64: 32, 128>}, {pipeline_mode = #tpu.pipeline_mode<synchronous>, transform_indices = @transform_9, window_bounds = array<i64: 1, 128>}, {transform_indices = @transform_10, window_bounds = array<i64: 8, 16, 128>}]} {
    %c0 = arith.constant 0 : index
    %c0_0 = arith.constant 0 : index
    %c0_1 = arith.constant 0 : index
    %0 = vector.load %arg1[%c0, %c0_0, %c0_1] : memref<8x16x32xbf16, #tpu.memory_space<vmem>>, vector<8x16x32xbf16>
    %1 = vector.shape_cast %0 : vector<8x16x32xbf16> to vector<128x32xbf16>
    %c0_2 = arith.constant 0 : index
    %c0_3 = arith.constant 0 : index
    %2 = vector.load %arg2[%c0_2, %c0_3] : memref<32x128xbf16, #tpu.memory_space<vmem>>, vector<32x128xbf16>
    %cst = arith.constant dense<0.000000e+00> : vector<128x128xf32>
    %3 = tpu.matmul %1, %2, %cst {dimension_numbers = #tpu.dot_dimension_numbers<[1], [0], [0], [1], [0, 0, 1, 1], [], []>} : vector<128x32xbf16>, vector<32x128xbf16>, vector<128x128xf32> -> vector<128x128xf32>
    %c0_4 = arith.constant 0 : index
    %c0_5 = arith.constant 0 : index
    %4 = vector.load %arg4[%c0_4, %c0_5] : memref<1x128xf32, #tpu.memory_space<vmem>>, vector<1x128xf32>
    %5 = vector.broadcast %4 : vector<1x128xf32> to vector<128x128xf32>
    %6 = arith.addf %3, %5 : vector<128x128xf32>
    %7 = arith.truncf %6 : vector<128x128xf32> to vector<128x128xbf16>
    %8 = vector.shape_cast %7 : vector<128x128xbf16> to vector<8x16x128xbf16>
    %c0_6 = arith.constant 0 : index
    %c0_7 = arith.constant 0 : index
    %c0_8 = arith.constant 0 : index
    %9 = vector.load %arg12[%c0_6, %c0_7, %c0_8] : memref<8x16x128xbf16, #tpu.memory_space<vmem>>, vector<8x16x128xbf16>
    tpu.vector_store %arg12[%c0_6, %c0_7, %c0_8], %8 {strides = array<i32>} : memref<8x16x128xbf16, #tpu.memory_space<vmem>>, vector<8x16x128xbf16>,
    %c0_9 = arith.constant 0 : index
    %c0_10 = arith.constant 0 : index
    %10 = vector.load %arg5[%c0_9, %c0_10] : memref<32x128xbf16, #tpu.memory_space<vmem>>, vector<32x128xbf16>
    %cst_11 = arith.constant dense<0.000000e+00> : vector<128x128xf32>
    %11 = tpu.matmul %1, %10, %cst_11 {dimension_numbers = #tpu.dot_dimension_numbers<[1], [0], [0], [1], [0, 0, 1, 1], [], []>} : vector<128x32xbf16>, vector<32x128xbf16>, vector<128x128xf32> -> vector<128x128xf32>
    %c0_12 = arith.constant 0 : index
    %c0_13 = arith.constant 0 : index
    %12 = vector.load %arg7[%c0_12, %c0_13] : memref<1x128xf32, #tpu.memory_space<vmem>>, vector<1x128xf32>
    %13 = vector.broadcast %12 : vector<1x128xf32> to vector<128x128xf32>
    %14 = arith.addf %11, %13 : vector<128x128xf32>
    %15 = arith.truncf %14 : vector<128x128xf32> to vector<128x128xbf16>
    %16 = vector.shape_cast %15 : vector<128x128xbf16> to vector<8x16x128xbf16>
    %c0_14 = arith.constant 0 : index
    %c0_15 = arith.constant 0 : index
    %c0_16 = arith.constant 0 : index
    %17 = vector.load %arg13[%c0_14, %c0_15, %c0_16] : memref<8x16x128xbf16, #tpu.memory_space<vmem>>, vector<8x16x128xbf16>
    tpu.vector_store %arg13[%c0_14, %c0_15, %c0_16], %16 {strides = array<i32>} : memref<8x16x128xbf16, #tpu.memory_space<vmem>>, vector<8x16x128xbf16>,
    %c0_17 = arith.constant 0 : index
    %c0_18 = arith.constant 0 : index
    %18 = vector.load %arg3[%c0_17, %c0_18] : memref<32x128xbf16, #tpu.memory_space<vmem>>, vector<32x128xbf16>
    %c0_19 = arith.constant 0 : index
    %c0_20 = arith.constant 0 : index
    %19 = vector.load %arg6[%c0_19, %c0_20] : memref<32x128xbf16, #tpu.memory_space<vmem>>, vector<32x128xbf16>
    %cst_21 = arith.constant 0.000000e+00 : bf16
    %20 = vector.broadcast %cst_21 : bf16 to vector<16x32xbf16>
    %cst_22 = arith.constant 0.000000e+00 : f32
    %21 = vector.broadcast %cst_22 : f32 to vector<16x32xf32>
    %c0_i32 = arith.constant 0 : i32
    %c7_i32 = arith.constant 7 : i32
    %22 = arith.subi %c7_i32, %c0_i32 : i32
    %23 = arith.index_cast %c0_i32 : i32 to index
    %c0_23 = arith.constant 0 : index
    %c0_24 = arith.constant 0 : index
    %24 = vector.load %arg12[%23, %c0_23, %c0_24] : memref<8x16x128xbf16, #tpu.memory_space<vmem>>, vector<1x16x128xbf16>
    %25 = vector.shape_cast %24 : vector<1x16x128xbf16> to vector<16x128xbf16>
    %26 = arith.extf %25 : vector<16x128xbf16> to vector<16x128xf32>
    %cst_25 = arith.constant dense<0.000000e+00> : vector<16x128xf32>
    %27 = tpu.matmul %20, %18, %cst_25 {dimension_numbers = #tpu.dot_dimension_numbers<[1], [0], [0], [1], [0, 0, 1, 1], [], []>} : vector<16x32xbf16>, vector<32x128xbf16>, vector<16x128xf32> -> vector<16x128xf32>
    %28 = arith.addf %26, %27 : vector<16x128xf32>
    %29 = arith.index_cast %22 : i32 to index
    %c0_26 = arith.constant 0 : index
    %c0_27 = arith.constant 0 : index
    %30 = vector.load %arg13[%29, %c0_26, %c0_27] : memref<8x16x128xbf16, #tpu.memory_space<vmem>>, vector<1x16x128xbf16>
    %31 = vector.shape_cast %30 : vector<1x16x128xbf16> to vector<16x128xbf16>
    %32 = arith.extf %31 : vector<16x128xbf16> to vector<16x128xf32>
    %cst_28 = arith.constant dense<0.000000e+00> : vector<16x128xf32>
    %33 = tpu.matmul %20, %19, %cst_28 {dimension_numbers = #tpu.dot_dimension_numbers<[1], [0], [0], [1], [0, 0, 1, 1], [], []>} : vector<16x32xbf16>, vector<32x128xbf16>, vector<16x128xf32> -> vector<16x128xf32>
    %34 = arith.addf %32, %33 : vector<16x128xf32>
    %35 = vector.extract_strided_slice %28 {offsets = [0, 0], sizes = [16, 96], strides = [1, 1]} : vector<16x128xf32> to vector<16x96xf32>
    %36 = arith.negf %35 : vector<16x96xf32>
    %37 = math.exp %36 : vector<16x96xf32>
    %cst_29 = arith.constant 1.000000e+00 : f32
    %38 = vector.broadcast %cst_29 : f32 to vector<16x96xf32>
    %39 = arith.addf %38, %37 : vector<16x96xf32>
    %40 = arith.divf %38, %39 : vector<16x96xf32>
    %41 = vector.extract_strided_slice %40 {offsets = [0, 0], sizes = [16, 32], strides = [1, 1]} : vector<16x96xf32> to vector<16x32xf32>
    %42 = vector.extract_strided_slice %40 {offsets = [0, 32], sizes = [16, 32], strides = [1, 1]} : vector<16x96xf32> to vector<16x32xf32>
    %43 = vector.extract_strided_slice %40 {offsets = [0, 64], sizes = [16, 32], strides = [1, 1]} : vector<16x96xf32> to vector<16x32xf32>
    %44 = vector.extract_strided_slice %28 {offsets = [0, 96], sizes = [16, 32], strides = [1, 1]} : vector<16x128xf32> to vector<16x32xf32>
    %45 = math.tanh %44 : vector<16x32xf32>
    %46 = arith.mulf %42, %21 : vector<16x32xf32>
    %47 = arith.mulf %41, %45 : vector<16x32xf32>
    %48 = arith.addf %46, %47 : vector<16x32xf32>
    %49 = math.tanh %48 : vector<16x32xf32>
    %50 = arith.mulf %43, %49 : vector<16x32xf32>
    %51 = arith.truncf %50 : vector<16x32xf32> to vector<16x32xbf16>
    %52 = vector.extract_strided_slice %34 {offsets = [0, 0], sizes = [16, 96], strides = [1, 1]} : vector<16x128xf32> to vector<16x96xf32>
    %53 = arith.negf %52 : vector<16x96xf32>
    %54 = math.exp %53 : vector<16x96xf32>
    %cst_30 = arith.constant 1.000000e+00 : f32
    %55 = vector.broadcast %cst_30 : f32 to vector<16x96xf32>
    %56 = arith.addf %55, %54 : vector<16x96xf32>
    %57 = arith.divf %55, %56 : vector<16x96xf32>
    %58 = vector.extract_strided_slice %57 {offsets = [0, 0], sizes = [16, 32], strides = [1, 1]} : vector<16x96xf32> to vector<16x32xf32>
    %59 = vector.extract_strided_slice %57 {offsets = [0, 32], sizes = [16, 32], strides = [1, 1]} : vector<16x96xf32> to vector<16x32xf32>
    %60 = vector.extract_strided_slice %57 {offsets = [0, 64], sizes = [16, 32], strides = [1, 1]} : vector<16x96xf32> to vector<16x32xf32>
    %61 = vector.extract_strided_slice %34 {offsets = [0, 96], sizes = [16, 32], strides = [1, 1]} : vector<16x128xf32> to vector<16x32xf32>
    %62 = math.tanh %61 : vector<16x32xf32>
    %63 = arith.mulf %59, %21 : vector<16x32xf32>
    %64 = arith.mulf %58, %62 : vector<16x32xf32>
    %65 = arith.addf %63, %64 : vector<16x32xf32>
    %66 = math.tanh %65 : vector<16x32xf32>
    %67 = arith.mulf %60, %66 : vector<16x32xf32>
    %68 = arith.truncf %67 : vector<16x32xf32> to vector<16x32xbf16>
    %69 = arith.index_cast %c0_i32 : i32 to index
    %c0_31 = arith.constant 0 : index
    %c0_32 = arith.constant 0 : index
    %70 = vector.load %arg14[%69, %c0_31, %c0_32] : memref<8x16x32xbf16, #tpu.memory_space<vmem>>, vector<1x16x32xbf16>
    %71 = vector.shape_cast %70 : vector<1x16x32xbf16> to vector<16x32xbf16>
    %72 = vector.shape_cast %51 : vector<16x32xbf16> to vector<1x16x32xbf16>
    tpu.vector_store %arg14[%69, %c0_31, %c0_32], %72 {strides = array<i32>} : memref<8x16x32xbf16, #tpu.memory_space<vmem>>, vector<1x16x32xbf16>,
    %73 = arith.index_cast %22 : i32 to index
    %c0_33 = arith.constant 0 : index
    %c0_34 = arith.constant 0 : index
    %74 = vector.load %arg15[%73, %c0_33, %c0_34] : memref<8x16x32xbf16, #tpu.memory_space<vmem>>, vector<1x16x32xbf16>
    %75 = vector.shape_cast %74 : vector<1x16x32xbf16> to vector<16x32xbf16>
    %76 = vector.shape_cast %68 : vector<16x32xbf16> to vector<1x16x32xbf16>
    tpu.vector_store %arg15[%73, %c0_33, %c0_34], %76 {strides = array<i32>} : memref<8x16x32xbf16, #tpu.memory_space<vmem>>, vector<1x16x32xbf16>,
    %c1_i32 = arith.constant 1 : i32
    %c7_i32_35 = arith.constant 7 : i32
    %77 = arith.subi %c7_i32_35, %c1_i32 : i32
    %78 = arith.index_cast %c1_i32 : i32 to index
    %c0_36 = arith.constant 0 : index
    %c0_37 = arith.constant 0 : index
    %79 = vector.load %arg12[%78, %c0_36, %c0_37] : memref<8x16x128xbf16, #tpu.memory_space<vmem>>, vector<1x16x128xbf16>
    %80 = vector.shape_cast %79 : vector<1x16x128xbf16> to vector<16x128xbf16>
    %81 = arith.extf %80 : vector<16x128xbf16> to vector<16x128xf32>
    %cst_38 = arith.constant dense<0.000000e+00> : vector<16x128xf32>
    %82 = tpu.matmul %51, %18, %cst_38 {dimension_numbers = #tpu.dot_dimension_numbers<[1], [0], [0], [1], [0, 0, 1, 1], [], []>} : vector<16x32xbf16>, vector<32x128xbf16>, vector<16x128xf32> -> vector<16x128xf32>
    %83 = arith.addf %81, %82 : vector<16x128xf32>
    %84 = arith.index_cast %77 : i32 to index
    %c0_39 = arith.constant 0 : index
    %c0_40 = arith.constant 0 : index
    %85 = vector.load %arg13[%84, %c0_39, %c0_40] : memref<8x16x128xbf16, #tpu.memory_space<vmem>>, vector<1x16x128xbf16>
    %86 = vector.shape_cast %85 : vector<1x16x128xbf16> to vector<16x128xbf16>
    %87 = arith.extf %86 : vector<16x128xbf16> to vector<16x128xf32>
    %cst_41 = arith.constant dense<0.000000e+00> : vector<16x128xf32>
    %88 = tpu.matmul %68, %19, %cst_41 {dimension_numbers = #tpu.dot_dimension_numbers<[1], [0], [0], [1], [0, 0, 1, 1], [], []>} : vector<16x32xbf16>, vector<32x128xbf16>, vector<16x128xf32> -> vector<16x128xf32>
    %89 = arith.addf %87, %88 : vector<16x128xf32>
    %90 = vector.extract_strided_slice %83 {offsets = [0, 0], sizes = [16, 96], strides = [1, 1]} : vector<16x128xf32> to vector<16x96xf32>
    %91 = arith.negf %90 : vector<16x96xf32>
    %92 = math.exp %91 : vector<16x96xf32>
    %cst_42 = arith.constant 1.000000e+00 : f32
    %93 = vector.broadcast %cst_42 : f32 to vector<16x96xf32>
    %94 = arith.addf %93, %92 : vector<16x96xf32>
    %95 = arith.divf %93, %94 : vector<16x96xf32>
    %96 = vector.extract_strided_slice %95 {offsets = [0, 0], sizes = [16, 32], strides = [1, 1]} : vector<16x96xf32> to vector<16x32xf32>
    %97 = vector.extract_strided_slice %95 {offsets = [0, 32], sizes = [16, 32], strides = [1, 1]} : vector<16x96xf32> to vector<16x32xf32>
    %98 = vector.extract_strided_slice %95 {offsets = [0, 64], sizes = [16, 32], strides = [1, 1]} : vector<16x96xf32> to vector<16x32xf32>
    %99 = vector.extract_strided_slice %83 {offsets = [0, 96], sizes = [16, 32], strides = [1, 1]} : vector<16x128xf32> to vector<16x32xf32>
    %100 = math.tanh %99 : vector<16x32xf32>
    %101 = arith.mulf %97, %48 : vector<16x32xf32>
    %102 = arith.mulf %96, %100 : vector<16x32xf32>
    %103 = arith.addf %101, %102 : vector<16x32xf32>
    %104 = math.tanh %103 : vector<16x32xf32>
    %105 = arith.mulf %98, %104 : vector<16x32xf32>
    %106 = arith.truncf %105 : vector<16x32xf32> to vector<16x32xbf16>
    %107 = vector.extract_strided_slice %89 {offsets = [0, 0], sizes = [16, 96], strides = [1, 1]} : vector<16x128xf32> to vector<16x96xf32>
    %108 = arith.negf %107 : vector<16x96xf32>
    %109 = math.exp %108 : vector<16x96xf32>
    %cst_43 = arith.constant 1.000000e+00 : f32
    %110 = vector.broadcast %cst_43 : f32 to vector<16x96xf32>
    %111 = arith.addf %110, %109 : vector<16x96xf32>
    %112 = arith.divf %110, %111 : vector<16x96xf32>
    %113 = vector.extract_strided_slice %112 {offsets = [0, 0], sizes = [16, 32], strides = [1, 1]} : vector<16x96xf32> to vector<16x32xf32>
    %114 = vector.extract_strided_slice %112 {offsets = [0, 32], sizes = [16, 32], strides = [1, 1]} : vector<16x96xf32> to vector<16x32xf32>
    %115 = vector.extract_strided_slice %112 {offsets = [0, 64], sizes = [16, 32], strides = [1, 1]} : vector<16x96xf32> to vector<16x32xf32>
    %116 = vector.extract_strided_slice %89 {offsets = [0, 96], sizes = [16, 32], strides = [1, 1]} : vector<16x128xf32> to vector<16x32xf32>
    %117 = math.tanh %116 : vector<16x32xf32>
    %118 = arith.mulf %114, %65 : vector<16x32xf32>
    %119 = arith.mulf %113, %117 : vector<16x32xf32>
    %120 = arith.addf %118, %119 : vector<16x32xf32>
    %121 = math.tanh %120 : vector<16x32xf32>
    %122 = arith.mulf %115, %121 : vector<16x32xf32>
    %123 = arith.truncf %122 : vector<16x32xf32> to vector<16x32xbf16>
    %124 = arith.index_cast %c1_i32 : i32 to index
    %c0_44 = arith.constant 0 : index
    %c0_45 = arith.constant 0 : index
    %125 = vector.load %arg14[%124, %c0_44, %c0_45] : memref<8x16x32xbf16, #tpu.memory_space<vmem>>, vector<1x16x32xbf16>
    %126 = vector.shape_cast %125 : vector<1x16x32xbf16> to vector<16x32xbf16>
    %127 = vector.shape_cast %106 : vector<16x32xbf16> to vector<1x16x32xbf16>
    tpu.vector_store %arg14[%124, %c0_44, %c0_45], %127 {strides = array<i32>} : memref<8x16x32xbf16, #tpu.memory_space<vmem>>, vector<1x16x32xbf16>,
    %128 = arith.index_cast %77 : i32 to index
    %c0_46 = arith.constant 0 : index
    %c0_47 = arith.constant 0 : index
    %129 = vector.load %arg15[%128, %c0_46, %c0_47] : memref<8x16x32xbf16, #tpu.memory_space<vmem>>, vector<1x16x32xbf16>
    %130 = vector.shape_cast %129 : vector<1x16x32xbf16> to vector<16x32xbf16>
    %131 = vector.shape_cast %123 : vector<16x32xbf16> to vector<1x16x32xbf16>
    tpu.vector_store %arg15[%128, %c0_46, %c0_47], %131 {strides = array<i32>} : memref<8x16x32xbf16, #tpu.memory_space<vmem>>, vector<1x16x32xbf16>,
    %c2_i32 = arith.constant 2 : i32
    %c7_i32_48 = arith.constant 7 : i32
    %132 = arith.subi %c7_i32_48, %c2_i32 : i32
    %133 = arith.index_cast %c2_i32 : i32 to index
    %c0_49 = arith.constant 0 : index
    %c0_50 = arith.constant 0 : index
    %134 = vector.load %arg12[%133, %c0_49, %c0_50] : memref<8x16x128xbf16, #tpu.memory_space<vmem>>, vector<1x16x128xbf16>
    %135 = vector.shape_cast %134 : vector<1x16x128xbf16> to vector<16x128xbf16>
    %136 = arith.extf %135 : vector<16x128xbf16> to vector<16x128xf32>
    %cst_51 = arith.constant dense<0.000000e+00> : vector<16x128xf32>
    %137 = tpu.matmul %106, %18, %cst_51 {dimension_numbers = #tpu.dot_dimension_numbers<[1], [0], [0], [1], [0, 0, 1, 1], [], []>} : vector<16x32xbf16>, vector<32x128xbf16>, vector<16x128xf32> -> vector<16x128xf32>
    %138 = arith.addf %136, %137 : vector<16x128xf32>
    %139 = arith.index_cast %132 : i32 to index
    %c0_52 = arith.constant 0 : index
    %c0_53 = arith.constant 0 : index
    %140 = vector.load %arg13[%139, %c0_52, %c0_53] : memref<8x16x128xbf16, #tpu.memory_space<vmem>>, vector<1x16x128xbf16>
    %141 = vector.shape_cast %140 : vector<1x16x128xbf16> to vector<16x128xbf16>
    %142 = arith.extf %141 : vector<16x128xbf16> to vector<16x128xf32>
    %cst_54 = arith.constant dense<0.000000e+00> : vector<16x128xf32>
    %143 = tpu.matmul %123, %19, %cst_54 {dimension_numbers = #tpu.dot_dimension_numbers<[1], [0], [0], [1], [0, 0, 1, 1], [], []>} : vector<16x32xbf16>, vector<32x128xbf16>, vector<16x128xf32> -> vector<16x128xf32>
    %144 = arith.addf %142, %143 : vector<16x128xf32>
    %145 = vector.extract_strided_slice %138 {offsets = [0, 0], sizes = [16, 96], strides = [1, 1]} : vector<16x128xf32> to vector<16x96xf32>
    %146 = arith.negf %145 : vector<16x96xf32>
    %147 = math.exp %146 : vector<16x96xf32>
    %cst_55 = arith.constant 1.000000e+00 : f32
    %148 = vector.broadcast %cst_55 : f32 to vector<16x96xf32>
    %149 = arith.addf %148, %147 : vector<16x96xf32>
    %150 = arith.divf %148, %149 : vector<16x96xf32>
    %151 = vector.extract_strided_slice %150 {offsets = [0, 0], sizes = [16, 32], strides = [1, 1]} : vector<16x96xf32> to vector<16x32xf32>
    %152 = vector.extract_strided_slice %150 {offsets = [0, 32], sizes = [16, 32], strides = [1, 1]} : vector<16x96xf32> to vector<16x32xf32>
    %153 = vector.extract_strided_slice %150 {offsets = [0, 64], sizes = [16, 32], strides = [1, 1]} : vector<16x96xf32> to vector<16x32xf32>
    %154 = vector.extract_strided_slice %138 {offsets = [0, 96], sizes = [16, 32], strides = [1, 1]} : vector<16x128xf32> to vector<16x32xf32>
    %155 = math.tanh %154 : vector<16x32xf32>
    %156 = arith.mulf %152, %103 : vector<16x32xf32>
    %157 = arith.mulf %151, %155 : vector<16x32xf32>
    %158 = arith.addf %156, %157 : vector<16x32xf32>
    %159 = math.tanh %158 : vector<16x32xf32>
    %160 = arith.mulf %153, %159 : vector<16x32xf32>
    %161 = arith.truncf %160 : vector<16x32xf32> to vector<16x32xbf16>
    %162 = vector.extract_strided_slice %144 {offsets = [0, 0], sizes = [16, 96], strides = [1, 1]} : vector<16x128xf32> to vector<16x96xf32>
    %163 = arith.negf %162 : vector<16x96xf32>
    %164 = math.exp %163 : vector<16x96xf32>
    %cst_56 = arith.constant 1.000000e+00 : f32
    %165 = vector.broadcast %cst_56 : f32 to vector<16x96xf32>
    %166 = arith.addf %165, %164 : vector<16x96xf32>
    %167 = arith.divf %165, %166 : vector<16x96xf32>
    %168 = vector.extract_strided_slice %167 {offsets = [0, 0], sizes = [16, 32], strides = [1, 1]} : vector<16x96xf32> to vector<16x32xf32>
    %169 = vector.extract_strided_slice %167 {offsets = [0, 32], sizes = [16, 32], strides = [1, 1]} : vector<16x96xf32> to vector<16x32xf32>
    %170 = vector.extract_strided_slice %167 {offsets = [0, 64], sizes = [16, 32], strides = [1, 1]} : vector<16x96xf32> to vector<16x32xf32>
    %171 = vector.extract_strided_slice %144 {offsets = [0, 96], sizes = [16, 32], strides = [1, 1]} : vector<16x128xf32> to vector<16x32xf32>
    %172 = math.tanh %171 : vector<16x32xf32>
    %173 = arith.mulf %169, %120 : vector<16x32xf32>
    %174 = arith.mulf %168, %172 : vector<16x32xf32>
    %175 = arith.addf %173, %174 : vector<16x32xf32>
    %176 = math.tanh %175 : vector<16x32xf32>
    %177 = arith.mulf %170, %176 : vector<16x32xf32>
    %178 = arith.truncf %177 : vector<16x32xf32> to vector<16x32xbf16>
    %179 = arith.index_cast %c2_i32 : i32 to index
    %c0_57 = arith.constant 0 : index
    %c0_58 = arith.constant 0 : index
    %180 = vector.load %arg14[%179, %c0_57, %c0_58] : memref<8x16x32xbf16, #tpu.memory_space<vmem>>, vector<1x16x32xbf16>
    %181 = vector.shape_cast %180 : vector<1x16x32xbf16> to vector<16x32xbf16>
    %182 = vector.shape_cast %161 : vector<16x32xbf16> to vector<1x16x32xbf16>
    tpu.vector_store %arg14[%179, %c0_57, %c0_58], %182 {strides = array<i32>} : memref<8x16x32xbf16, #tpu.memory_space<vmem>>, vector<1x16x32xbf16>,
    %183 = arith.index_cast %132 : i32 to index
    %c0_59 = arith.constant 0 : index
    %c0_60 = arith.constant 0 : index
    %184 = vector.load %arg15[%183, %c0_59, %c0_60] : memref<8x16x32xbf16, #tpu.memory_space<vmem>>, vector<1x16x32xbf16>
    %185 = vector.shape_cast %184 : vector<1x16x32xbf16> to vector<16x32xbf16>
    %186 = vector.shape_cast %178 : vector<16x32xbf16> to vector<1x16x32xbf16>
    tpu.vector_store %arg15[%183, %c0_59, %c0_60], %186 {strides = array<i32>} : memref<8x16x32xbf16, #tpu.memory_space<vmem>>, vector<1x16x32xbf16>,
    %c3_i32 = arith.constant 3 : i32
    %c7_i32_61 = arith.constant 7 : i32
    %187 = arith.subi %c7_i32_61, %c3_i32 : i32
    %188 = arith.index_cast %c3_i32 : i32 to index
    %c0_62 = arith.constant 0 : index
    %c0_63 = arith.constant 0 : index
    %189 = vector.load %arg12[%188, %c0_62, %c0_63] : memref<8x16x128xbf16, #tpu.memory_space<vmem>>, vector<1x16x128xbf16>
    %190 = vector.shape_cast %189 : vector<1x16x128xbf16> to vector<16x128xbf16>
    %191 = arith.extf %190 : vector<16x128xbf16> to vector<16x128xf32>
    %cst_64 = arith.constant dense<0.000000e+00> : vector<16x128xf32>
    %192 = tpu.matmul %161, %18, %cst_64 {dimension_numbers = #tpu.dot_dimension_numbers<[1], [0], [0], [1], [0, 0, 1, 1], [], []>} : vector<16x32xbf16>, vector<32x128xbf16>, vector<16x128xf32> -> vector<16x128xf32>
    %193 = arith.addf %191, %192 : vector<16x128xf32>
    %194 = arith.index_cast %187 : i32 to index
    %c0_65 = arith.constant 0 : index
    %c0_66 = arith.constant 0 : index
    %195 = vector.load %arg13[%194, %c0_65, %c0_66] : memref<8x16x128xbf16, #tpu.memory_space<vmem>>, vector<1x16x128xbf16>
    %196 = vector.shape_cast %195 : vector<1x16x128xbf16> to vector<16x128xbf16>
    %197 = arith.extf %196 : vector<16x128xbf16> to vector<16x128xf32>
    %cst_67 = arith.constant dense<0.000000e+00> : vector<16x128xf32>
    %198 = tpu.matmul %178, %19, %cst_67 {dimension_numbers = #tpu.dot_dimension_numbers<[1], [0], [0], [1], [0, 0, 1, 1], [], []>} : vector<16x32xbf16>, vector<32x128xbf16>, vector<16x128xf32> -> vector<16x128xf32>
    %199 = arith.addf %197, %198 : vector<16x128xf32>
    %200 = vector.extract_strided_slice %193 {offsets = [0, 0], sizes = [16, 96], strides = [1, 1]} : vector<16x128xf32> to vector<16x96xf32>
    %201 = arith.negf %200 : vector<16x96xf32>
    %202 = math.exp %201 : vector<16x96xf32>
    %cst_68 = arith.constant 1.000000e+00 : f32
    %203 = vector.broadcast %cst_68 : f32 to vector<16x96xf32>
    %204 = arith.addf %203, %202 : vector<16x96xf32>
    %205 = arith.divf %203, %204 : vector<16x96xf32>
    %206 = vector.extract_strided_slice %205 {offsets = [0, 0], sizes = [16, 32], strides = [1, 1]} : vector<16x96xf32> to vector<16x32xf32>
    %207 = vector.extract_strided_slice %205 {offsets = [0, 32], sizes = [16, 32], strides = [1, 1]} : vector<16x96xf32> to vector<16x32xf32>
    %208 = vector.extract_strided_slice %205 {offsets = [0, 64], sizes = [16, 32], strides = [1, 1]} : vector<16x96xf32> to vector<16x32xf32>
    %209 = vector.extract_strided_slice %193 {offsets = [0, 96], sizes = [16, 32], strides = [1, 1]} : vector<16x128xf32> to vector<16x32xf32>
    %210 = math.tanh %209 : vector<16x32xf32>
    %211 = arith.mulf %207, %158 : vector<16x32xf32>
    %212 = arith.mulf %206, %210 : vector<16x32xf32>
    %213 = arith.addf %211, %212 : vector<16x32xf32>
    %214 = math.tanh %213 : vector<16x32xf32>
    %215 = arith.mulf %208, %214 : vector<16x32xf32>
    %216 = arith.truncf %215 : vector<16x32xf32> to vector<16x32xbf16>
    %217 = vector.extract_strided_slice %199 {offsets = [0, 0], sizes = [16, 96], strides = [1, 1]} : vector<16x128xf32> to vector<16x96xf32>
    %218 = arith.negf %217 : vector<16x96xf32>
    %219 = math.exp %218 : vector<16x96xf32>
    %cst_69 = arith.constant 1.000000e+00 : f32
    %220 = vector.broadcast %cst_69 : f32 to vector<16x96xf32>
    %221 = arith.addf %220, %219 : vector<16x96xf32>
    %222 = arith.divf %220, %221 : vector<16x96xf32>
    %223 = vector.extract_strided_slice %222 {offsets = [0, 0], sizes = [16, 32], strides = [1, 1]} : vector<16x96xf32> to vector<16x32xf32>
    %224 = vector.extract_strided_slice %222 {offsets = [0, 32], sizes = [16, 32], strides = [1, 1]} : vector<16x96xf32> to vector<16x32xf32>
    %225 = vector.extract_strided_slice %222 {offsets = [0, 64], sizes = [16, 32], strides = [1, 1]} : vector<16x96xf32> to vector<16x32xf32>
    %226 = vector.extract_strided_slice %199 {offsets = [0, 96], sizes = [16, 32], strides = [1, 1]} : vector<16x128xf32> to vector<16x32xf32>
    %227 = math.tanh %226 : vector<16x32xf32>
    %228 = arith.mulf %224, %175 : vector<16x32xf32>
    %229 = arith.mulf %223, %227 : vector<16x32xf32>
    %230 = arith.addf %228, %229 : vector<16x32xf32>
    %231 = math.tanh %230 : vector<16x32xf32>
    %232 = arith.mulf %225, %231 : vector<16x32xf32>
    %233 = arith.truncf %232 : vector<16x32xf32> to vector<16x32xbf16>
    %234 = arith.index_cast %c3_i32 : i32 to index
    %c0_70 = arith.constant 0 : index
    %c0_71 = arith.constant 0 : index
    %235 = vector.load %arg14[%234, %c0_70, %c0_71] : memref<8x16x32xbf16, #tpu.memory_space<vmem>>, vector<1x16x32xbf16>
    %236 = vector.shape_cast %235 : vector<1x16x32xbf16> to vector<16x32xbf16>
    %237 = vector.shape_cast %216 : vector<16x32xbf16> to vector<1x16x32xbf16>
    tpu.vector_store %arg14[%234, %c0_70, %c0_71], %237 {strides = array<i32>} : memref<8x16x32xbf16, #tpu.memory_space<vmem>>, vector<1x16x32xbf16>,
    %238 = arith.index_cast %187 : i32 to index
    %c0_72 = arith.constant 0 : index
    %c0_73 = arith.constant 0 : index
    %239 = vector.load %arg15[%238, %c0_72, %c0_73] : memref<8x16x32xbf16, #tpu.memory_space<vmem>>, vector<1x16x32xbf16>
    %240 = vector.shape_cast %239 : vector<1x16x32xbf16> to vector<16x32xbf16>
    %241 = vector.shape_cast %233 : vector<16x32xbf16> to vector<1x16x32xbf16>
    tpu.vector_store %arg15[%238, %c0_72, %c0_73], %241 {strides = array<i32>} : memref<8x16x32xbf16, #tpu.memory_space<vmem>>, vector<1x16x32xbf16>,
    %c4_i32 = arith.constant 4 : i32
    %c7_i32_74 = arith.constant 7 : i32
    %242 = arith.subi %c7_i32_74, %c4_i32 : i32
    %243 = arith.index_cast %c4_i32 : i32 to index
    %c0_75 = arith.constant 0 : index
    %c0_76 = arith.constant 0 : index
    %244 = vector.load %arg12[%243, %c0_75, %c0_76] : memref<8x16x128xbf16, #tpu.memory_space<vmem>>, vector<1x16x128xbf16>
    %245 = vector.shape_cast %244 : vector<1x16x128xbf16> to vector<16x128xbf16>
    %246 = arith.extf %245 : vector<16x128xbf16> to vector<16x128xf32>
    %cst_77 = arith.constant dense<0.000000e+00> : vector<16x128xf32>
    %247 = tpu.matmul %216, %18, %cst_77 {dimension_numbers = #tpu.dot_dimension_numbers<[1], [0], [0], [1], [0, 0, 1, 1], [], []>} : vector<16x32xbf16>, vector<32x128xbf16>, vector<16x128xf32> -> vector<16x128xf32>
    %248 = arith.addf %246, %247 : vector<16x128xf32>
    %249 = arith.index_cast %242 : i32 to index
    %c0_78 = arith.constant 0 : index
    %c0_79 = arith.constant 0 : index
    %250 = vector.load %arg13[%249, %c0_78, %c0_79] : memref<8x16x128xbf16, #tpu.memory_space<vmem>>, vector<1x16x128xbf16>
    %251 = vector.shape_cast %250 : vector<1x16x128xbf16> to vector<16x128xbf16>
    %252 = arith.extf %251 : vector<16x128xbf16> to vector<16x128xf32>
    %cst_80 = arith.constant dense<0.000000e+00> : vector<16x128xf32>
    %253 = tpu.matmul %233, %19, %cst_80 {dimension_numbers = #tpu.dot_dimension_numbers<[1], [0], [0], [1], [0, 0, 1, 1], [], []>} : vector<16x32xbf16>, vector<32x128xbf16>, vector<16x128xf32> -> vector<16x128xf32>
    %254 = arith.addf %252, %253 : vector<16x128xf32>
    %255 = vector.extract_strided_slice %248 {offsets = [0, 0], sizes = [16, 96], strides = [1, 1]} : vector<16x128xf32> to vector<16x96xf32>
    %256 = arith.negf %255 : vector<16x96xf32>
    %257 = math.exp %256 : vector<16x96xf32>
    %cst_81 = arith.constant 1.000000e+00 : f32
    %258 = vector.broadcast %cst_81 : f32 to vector<16x96xf32>
    %259 = arith.addf %258, %257 : vector<16x96xf32>
    %260 = arith.divf %258, %259 : vector<16x96xf32>
    %261 = vector.extract_strided_slice %260 {offsets = [0, 0], sizes = [16, 32], strides = [1, 1]} : vector<16x96xf32> to vector<16x32xf32>
    %262 = vector.extract_strided_slice %260 {offsets = [0, 32], sizes = [16, 32], strides = [1, 1]} : vector<16x96xf32> to vector<16x32xf32>
    %263 = vector.extract_strided_slice %260 {offsets = [0, 64], sizes = [16, 32], strides = [1, 1]} : vector<16x96xf32> to vector<16x32xf32>
    %264 = vector.extract_strided_slice %248 {offsets = [0, 96], sizes = [16, 32], strides = [1, 1]} : vector<16x128xf32> to vector<16x32xf32>
    %265 = math.tanh %264 : vector<16x32xf32>
    %266 = arith.mulf %262, %213 : vector<16x32xf32>
    %267 = arith.mulf %261, %265 : vector<16x32xf32>
    %268 = arith.addf %266, %267 : vector<16x32xf32>
    %269 = math.tanh %268 : vector<16x32xf32>
    %270 = arith.mulf %263, %269 : vector<16x32xf32>
    %271 = arith.truncf %270 : vector<16x32xf32> to vector<16x32xbf16>
    %272 = vector.extract_strided_slice %254 {offsets = [0, 0], sizes = [16, 96], strides = [1, 1]} : vector<16x128xf32> to vector<16x96xf32>
    %273 = arith.negf %272 : vector<16x96xf32>
    %274 = math.exp %273 : vector<16x96xf32>
    %cst_82 = arith.constant 1.000000e+00 : f32
    %275 = vector.broadcast %cst_82 : f32 to vector<16x96xf32>
    %276 = arith.addf %275, %274 : vector<16x96xf32>
    %277 = arith.divf %275, %276 : vector<16x96xf32>
    %278 = vector.extract_strided_slice %277 {offsets = [0, 0], sizes = [16, 32], strides = [1, 1]} : vector<16x96xf32> to vector<16x32xf32>
    %279 = vector.extract_strided_slice %277 {offsets = [0, 32], sizes = [16, 32], strides = [1, 1]} : vector<16x96xf32> to vector<16x32xf32>
    %280 = vector.extract_strided_slice %277 {offsets = [0, 64], sizes = [16, 32], strides = [1, 1]} : vector<16x96xf32> to vector<16x32xf32>
    %281 = vector.extract_strided_slice %254 {offsets = [0, 96], sizes = [16, 32], strides = [1, 1]} : vector<16x128xf32> to vector<16x32xf32>
    %282 = math.tanh %281 : vector<16x32xf32>
    %283 = arith.mulf %279, %230 : vector<16x32xf32>
    %284 = arith.mulf %278, %282 : vector<16x32xf32>
    %285 = arith.addf %283, %284 : vector<16x32xf32>
    %286 = math.tanh %285 : vector<16x32xf32>
    %287 = arith.mulf %280, %286 : vector<16x32xf32>
    %288 = arith.truncf %287 : vector<16x32xf32> to vector<16x32xbf16>
    %289 = arith.index_cast %c4_i32 : i32 to index
    %c0_83 = arith.constant 0 : index
    %c0_84 = arith.constant 0 : index
    %290 = vector.load %arg14[%289, %c0_83, %c0_84] : memref<8x16x32xbf16, #tpu.memory_space<vmem>>, vector<1x16x32xbf16>
    %291 = vector.shape_cast %290 : vector<1x16x32xbf16> to vector<16x32xbf16>
    %292 = vector.shape_cast %271 : vector<16x32xbf16> to vector<1x16x32xbf16>
    tpu.vector_store %arg14[%289, %c0_83, %c0_84], %292 {strides = array<i32>} : memref<8x16x32xbf16, #tpu.memory_space<vmem>>, vector<1x16x32xbf16>,
    %293 = arith.index_cast %242 : i32 to index
    %c0_85 = arith.constant 0 : index
    %c0_86 = arith.constant 0 : index
    %294 = vector.load %arg15[%293, %c0_85, %c0_86] : memref<8x16x32xbf16, #tpu.memory_space<vmem>>, vector<1x16x32xbf16>
    %295 = vector.shape_cast %294 : vector<1x16x32xbf16> to vector<16x32xbf16>
    %296 = vector.shape_cast %288 : vector<16x32xbf16> to vector<1x16x32xbf16>
    tpu.vector_store %arg15[%293, %c0_85, %c0_86], %296 {strides = array<i32>} : memref<8x16x32xbf16, #tpu.memory_space<vmem>>, vector<1x16x32xbf16>,
    %c5_i32 = arith.constant 5 : i32
    %c7_i32_87 = arith.constant 7 : i32
    %297 = arith.subi %c7_i32_87, %c5_i32 : i32
    %298 = arith.index_cast %c5_i32 : i32 to index
    %c0_88 = arith.constant 0 : index
    %c0_89 = arith.constant 0 : index
    %299 = vector.load %arg12[%298, %c0_88, %c0_89] : memref<8x16x128xbf16, #tpu.memory_space<vmem>>, vector<1x16x128xbf16>
    %300 = vector.shape_cast %299 : vector<1x16x128xbf16> to vector<16x128xbf16>
    %301 = arith.extf %300 : vector<16x128xbf16> to vector<16x128xf32>
    %cst_90 = arith.constant dense<0.000000e+00> : vector<16x128xf32>
    %302 = tpu.matmul %271, %18, %cst_90 {dimension_numbers = #tpu.dot_dimension_numbers<[1], [0], [0], [1], [0, 0, 1, 1], [], []>} : vector<16x32xbf16>, vector<32x128xbf16>, vector<16x128xf32> -> vector<16x128xf32>
    %303 = arith.addf %301, %302 : vector<16x128xf32>
    %304 = arith.index_cast %297 : i32 to index
    %c0_91 = arith.constant 0 : index
    %c0_92 = arith.constant 0 : index
    %305 = vector.load %arg13[%304, %c0_91, %c0_92] : memref<8x16x128xbf16, #tpu.memory_space<vmem>>, vector<1x16x128xbf16>
    %306 = vector.shape_cast %305 : vector<1x16x128xbf16> to vector<16x128xbf16>
    %307 = arith.extf %306 : vector<16x128xbf16> to vector<16x128xf32>
    %cst_93 = arith.constant dense<0.000000e+00> : vector<16x128xf32>
    %308 = tpu.matmul %288, %19, %cst_93 {dimension_numbers = #tpu.dot_dimension_numbers<[1], [0], [0], [1], [0, 0, 1, 1], [], []>} : vector<16x32xbf16>, vector<32x128xbf16>, vector<16x128xf32> -> vector<16x128xf32>
    %309 = arith.addf %307, %308 : vector<16x128xf32>
    %310 = vector.extract_strided_slice %303 {offsets = [0, 0], sizes = [16, 96], strides = [1, 1]} : vector<16x128xf32> to vector<16x96xf32>
    %311 = arith.negf %310 : vector<16x96xf32>
    %312 = math.exp %311 : vector<16x96xf32>
    %cst_94 = arith.constant 1.000000e+00 : f32
    %313 = vector.broadcast %cst_94 : f32 to vector<16x96xf32>
    %314 = arith.addf %313, %312 : vector<16x96xf32>
    %315 = arith.divf %313, %314 : vector<16x96xf32>
    %316 = vector.extract_strided_slice %315 {offsets = [0, 0], sizes = [16, 32], strides = [1, 1]} : vector<16x96xf32> to vector<16x32xf32>
    %317 = vector.extract_strided_slice %315 {offsets = [0, 32], sizes = [16, 32], strides = [1, 1]} : vector<16x96xf32> to vector<16x32xf32>
    %318 = vector.extract_strided_slice %315 {offsets = [0, 64], sizes = [16, 32], strides = [1, 1]} : vector<16x96xf32> to vector<16x32xf32>
    %319 = vector.extract_strided_slice %303 {offsets = [0, 96], sizes = [16, 32], strides = [1, 1]} : vector<16x128xf32> to vector<16x32xf32>
    %320 = math.tanh %319 : vector<16x32xf32>
    %321 = arith.mulf %317, %268 : vector<16x32xf32>
    %322 = arith.mulf %316, %320 : vector<16x32xf32>
    %323 = arith.addf %321, %322 : vector<16x32xf32>
    %324 = math.tanh %323 : vector<16x32xf32>
    %325 = arith.mulf %318, %324 : vector<16x32xf32>
    %326 = arith.truncf %325 : vector<16x32xf32> to vector<16x32xbf16>
    %327 = vector.extract_strided_slice %309 {offsets = [0, 0], sizes = [16, 96], strides = [1, 1]} : vector<16x128xf32> to vector<16x96xf32>
    %328 = arith.negf %327 : vector<16x96xf32>
    %329 = math.exp %328 : vector<16x96xf32>
    %cst_95 = arith.constant 1.000000e+00 : f32
    %330 = vector.broadcast %cst_95 : f32 to vector<16x96xf32>
    %331 = arith.addf %330, %329 : vector<16x96xf32>
    %332 = arith.divf %330, %331 : vector<16x96xf32>
    %333 = vector.extract_strided_slice %332 {offsets = [0, 0], sizes = [16, 32], strides = [1, 1]} : vector<16x96xf32> to vector<16x32xf32>
    %334 = vector.extract_strided_slice %332 {offsets = [0, 32], sizes = [16, 32], strides = [1, 1]} : vector<16x96xf32> to vector<16x32xf32>
    %335 = vector.extract_strided_slice %332 {offsets = [0, 64], sizes = [16, 32], strides = [1, 1]} : vector<16x96xf32> to vector<16x32xf32>
    %336 = vector.extract_strided_slice %309 {offsets = [0, 96], sizes = [16, 32], strides = [1, 1]} : vector<16x128xf32> to vector<16x32xf32>
    %337 = math.tanh %336 : vector<16x32xf32>
    %338 = arith.mulf %334, %285 : vector<16x32xf32>
    %339 = arith.mulf %333, %337 : vector<16x32xf32>
    %340 = arith.addf %338, %339 : vector<16x32xf32>
    %341 = math.tanh %340 : vector<16x32xf32>
    %342 = arith.mulf %335, %341 : vector<16x32xf32>
    %343 = arith.truncf %342 : vector<16x32xf32> to vector<16x32xbf16>
    %344 = arith.index_cast %c5_i32 : i32 to index
    %c0_96 = arith.constant 0 : index
    %c0_97 = arith.constant 0 : index
    %345 = vector.load %arg14[%344, %c0_96, %c0_97] : memref<8x16x32xbf16, #tpu.memory_space<vmem>>, vector<1x16x32xbf16>
    %346 = vector.shape_cast %345 : vector<1x16x32xbf16> to vector<16x32xbf16>
    %347 = vector.shape_cast %326 : vector<16x32xbf16> to vector<1x16x32xbf16>
    tpu.vector_store %arg14[%344, %c0_96, %c0_97], %347 {strides = array<i32>} : memref<8x16x32xbf16, #tpu.memory_space<vmem>>, vector<1x16x32xbf16>,
    %348 = arith.index_cast %297 : i32 to index
    %c0_98 = arith.constant 0 : index
    %c0_99 = arith.constant 0 : index
    %349 = vector.load %arg15[%348, %c0_98, %c0_99] : memref<8x16x32xbf16, #tpu.memory_space<vmem>>, vector<1x16x32xbf16>
    %350 = vector.shape_cast %349 : vector<1x16x32xbf16> to vector<16x32xbf16>
    %351 = vector.shape_cast %343 : vector<16x32xbf16> to vector<1x16x32xbf16>
    tpu.vector_store %arg15[%348, %c0_98, %c0_99], %351 {strides = array<i32>} : memref<8x16x32xbf16, #tpu.memory_space<vmem>>, vector<1x16x32xbf16>,
    %c6_i32 = arith.constant 6 : i32
    %c7_i32_100 = arith.constant 7 : i32
    %352 = arith.subi %c7_i32_100, %c6_i32 : i32
    %353 = arith.index_cast %c6_i32 : i32 to index
    %c0_101 = arith.constant 0 : index
    %c0_102 = arith.constant 0 : index
    %354 = vector.load %arg12[%353, %c0_101, %c0_102] : memref<8x16x128xbf16, #tpu.memory_space<vmem>>, vector<1x16x128xbf16>
    %355 = vector.shape_cast %354 : vector<1x16x128xbf16> to vector<16x128xbf16>
    %356 = arith.extf %355 : vector<16x128xbf16> to vector<16x128xf32>
    %cst_103 = arith.constant dense<0.000000e+00> : vector<16x128xf32>
    %357 = tpu.matmul %326, %18, %cst_103 {dimension_numbers = #tpu.dot_dimension_numbers<[1], [0], [0], [1], [0, 0, 1, 1], [], []>} : vector<16x32xbf16>, vector<32x128xbf16>, vector<16x128xf32> -> vector<16x128xf32>
    %358 = arith.addf %356, %357 : vector<16x128xf32>
    %359 = arith.index_cast %352 : i32 to index
    %c0_104 = arith.constant 0 : index
    %c0_105 = arith.constant 0 : index
    %360 = vector.load %arg13[%359, %c0_104, %c0_105] : memref<8x16x128xbf16, #tpu.memory_space<vmem>>, vector<1x16x128xbf16>
    %361 = vector.shape_cast %360 : vector<1x16x128xbf16> to vector<16x128xbf16>
    %362 = arith.extf %361 : vector<16x128xbf16> to vector<16x128xf32>
    %cst_106 = arith.constant dense<0.000000e+00> : vector<16x128xf32>
    %363 = tpu.matmul %343, %19, %cst_106 {dimension_numbers = #tpu.dot_dimension_numbers<[1], [0], [0], [1], [0, 0, 1, 1], [], []>} : vector<16x32xbf16>, vector<32x128xbf16>, vector<16x128xf32> -> vector<16x128xf32>
    %364 = arith.addf %362, %363 : vector<16x128xf32>
    %365 = vector.extract_strided_slice %358 {offsets = [0, 0], sizes = [16, 96], strides = [1, 1]} : vector<16x128xf32> to vector<16x96xf32>
    %366 = arith.negf %365 : vector<16x96xf32>
    %367 = math.exp %366 : vector<16x96xf32>
    %cst_107 = arith.constant 1.000000e+00 : f32
    %368 = vector.broadcast %cst_107 : f32 to vector<16x96xf32>
    %369 = arith.addf %368, %367 : vector<16x96xf32>
    %370 = arith.divf %368, %369 : vector<16x96xf32>
    %371 = vector.extract_strided_slice %370 {offsets = [0, 0], sizes = [16, 32], strides = [1, 1]} : vector<16x96xf32> to vector<16x32xf32>
    %372 = vector.extract_strided_slice %370 {offsets = [0, 32], sizes = [16, 32], strides = [1, 1]} : vector<16x96xf32> to vector<16x32xf32>
    %373 = vector.extract_strided_slice %370 {offsets = [0, 64], sizes = [16, 32], strides = [1, 1]} : vector<16x96xf32> to vector<16x32xf32>
    %374 = vector.extract_strided_slice %358 {offsets = [0, 96], sizes = [16, 32], strides = [1, 1]} : vector<16x128xf32> to vector<16x32xf32>
    %375 = math.tanh %374 : vector<16x32xf32>
    %376 = arith.mulf %372, %323 : vector<16x32xf32>
    %377 = arith.mulf %371, %375 : vector<16x32xf32>
    %378 = arith.addf %376, %377 : vector<16x32xf32>
    %379 = math.tanh %378 : vector<16x32xf32>
    %380 = arith.mulf %373, %379 : vector<16x32xf32>
    %381 = arith.truncf %380 : vector<16x32xf32> to vector<16x32xbf16>
    %382 = vector.extract_strided_slice %364 {offsets = [0, 0], sizes = [16, 96], strides = [1, 1]} : vector<16x128xf32> to vector<16x96xf32>
    %383 = arith.negf %382 : vector<16x96xf32>
    %384 = math.exp %383 : vector<16x96xf32>
    %cst_108 = arith.constant 1.000000e+00 : f32
    %385 = vector.broadcast %cst_108 : f32 to vector<16x96xf32>
    %386 = arith.addf %385, %384 : vector<16x96xf32>
    %387 = arith.divf %385, %386 : vector<16x96xf32>
    %388 = vector.extract_strided_slice %387 {offsets = [0, 0], sizes = [16, 32], strides = [1, 1]} : vector<16x96xf32> to vector<16x32xf32>
    %389 = vector.extract_strided_slice %387 {offsets = [0, 32], sizes = [16, 32], strides = [1, 1]} : vector<16x96xf32> to vector<16x32xf32>
    %390 = vector.extract_strided_slice %387 {offsets = [0, 64], sizes = [16, 32], strides = [1, 1]} : vector<16x96xf32> to vector<16x32xf32>
    %391 = vector.extract_strided_slice %364 {offsets = [0, 96], sizes = [16, 32], strides = [1, 1]} : vector<16x128xf32> to vector<16x32xf32>
    %392 = math.tanh %391 : vector<16x32xf32>
    %393 = arith.mulf %389, %340 : vector<16x32xf32>
    %394 = arith.mulf %388, %392 : vector<16x32xf32>
    %395 = arith.addf %393, %394 : vector<16x32xf32>
    %396 = math.tanh %395 : vector<16x32xf32>
    %397 = arith.mulf %390, %396 : vector<16x32xf32>
    %398 = arith.truncf %397 : vector<16x32xf32> to vector<16x32xbf16>
    %399 = arith.index_cast %c6_i32 : i32 to index
    %c0_109 = arith.constant 0 : index
    %c0_110 = arith.constant 0 : index
    %400 = vector.load %arg14[%399, %c0_109, %c0_110] : memref<8x16x32xbf16, #tpu.memory_space<vmem>>, vector<1x16x32xbf16>
    %401 = vector.shape_cast %400 : vector<1x16x32xbf16> to vector<16x32xbf16>
    %402 = vector.shape_cast %381 : vector<16x32xbf16> to vector<1x16x32xbf16>
    tpu.vector_store %arg14[%399, %c0_109, %c0_110], %402 {strides = array<i32>} : memref<8x16x32xbf16, #tpu.memory_space<vmem>>, vector<1x16x32xbf16>,
    %403 = arith.index_cast %352 : i32 to index
    %c0_111 = arith.constant 0 : index
    %c0_112 = arith.constant 0 : index
    %404 = vector.load %arg15[%403, %c0_111, %c0_112] : memref<8x16x32xbf16, #tpu.memory_space<vmem>>, vector<1x16x32xbf16>
    %405 = vector.shape_cast %404 : vector<1x16x32xbf16> to vector<16x32xbf16>
    %406 = vector.shape_cast %398 : vector<16x32xbf16> to vector<1x16x32xbf16>
    tpu.vector_store %arg15[%403, %c0_111, %c0_112], %406 {strides = array<i32>} : memref<8x16x32xbf16, #tpu.memory_space<vmem>>, vector<1x16x32xbf16>,
    %c7_i32_113 = arith.constant 7 : i32
    %c7_i32_114 = arith.constant 7 : i32
    %407 = arith.subi %c7_i32_114, %c7_i32_113 : i32
    %408 = arith.index_cast %c7_i32_113 : i32 to index
    %c0_115 = arith.constant 0 : index
    %c0_116 = arith.constant 0 : index
    %409 = vector.load %arg12[%408, %c0_115, %c0_116] : memref<8x16x128xbf16, #tpu.memory_space<vmem>>, vector<1x16x128xbf16>
    %410 = vector.shape_cast %409 : vector<1x16x128xbf16> to vector<16x128xbf16>
    %411 = arith.extf %410 : vector<16x128xbf16> to vector<16x128xf32>
    %cst_117 = arith.constant dense<0.000000e+00> : vector<16x128xf32>
    %412 = tpu.matmul %381, %18, %cst_117 {dimension_numbers = #tpu.dot_dimension_numbers<[1], [0], [0], [1], [0, 0, 1, 1], [], []>} : vector<16x32xbf16>, vector<32x128xbf16>, vector<16x128xf32> -> vector<16x128xf32>
    %413 = arith.addf %411, %412 : vector<16x128xf32>
    %414 = arith.index_cast %407 : i32 to index
    %c0_118 = arith.constant 0 : index
    %c0_119 = arith.constant 0 : index
    %415 = vector.load %arg13[%414, %c0_118, %c0_119] : memref<8x16x128xbf16, #tpu.memory_space<vmem>>, vector<1x16x128xbf16>
    %416 = vector.shape_cast %415 : vector<1x16x128xbf16> to vector<16x128xbf16>
    %417 = arith.extf %416 : vector<16x128xbf16> to vector<16x128xf32>
    %cst_120 = arith.constant dense<0.000000e+00> : vector<16x128xf32>
    %418 = tpu.matmul %398, %19, %cst_120 {dimension_numbers = #tpu.dot_dimension_numbers<[1], [0], [0], [1], [0, 0, 1, 1], [], []>} : vector<16x32xbf16>, vector<32x128xbf16>, vector<16x128xf32> -> vector<16x128xf32>
    %419 = arith.addf %417, %418 : vector<16x128xf32>
    %420 = vector.extract_strided_slice %413 {offsets = [0, 0], sizes = [16, 96], strides = [1, 1]} : vector<16x128xf32> to vector<16x96xf32>
    %421 = arith.negf %420 : vector<16x96xf32>
    %422 = math.exp %421 : vector<16x96xf32>
    %cst_121 = arith.constant 1.000000e+00 : f32
    %423 = vector.broadcast %cst_121 : f32 to vector<16x96xf32>
    %424 = arith.addf %423, %422 : vector<16x96xf32>
    %425 = arith.divf %423, %424 : vector<16x96xf32>
    %426 = vector.extract_strided_slice %425 {offsets = [0, 0], sizes = [16, 32], strides = [1, 1]} : vector<16x96xf32> to vector<16x32xf32>
    %427 = vector.extract_strided_slice %425 {offsets = [0, 32], sizes = [16, 32], strides = [1, 1]} : vector<16x96xf32> to vector<16x32xf32>
    %428 = vector.extract_strided_slice %425 {offsets = [0, 64], sizes = [16, 32], strides = [1, 1]} : vector<16x96xf32> to vector<16x32xf32>
    %429 = vector.extract_strided_slice %413 {offsets = [0, 96], sizes = [16, 32], strides = [1, 1]} : vector<16x128xf32> to vector<16x32xf32>
    %430 = math.tanh %429 : vector<16x32xf32>
    %431 = arith.mulf %427, %378 : vector<16x32xf32>
    %432 = arith.mulf %426, %430 : vector<16x32xf32>
    %433 = arith.addf %431, %432 : vector<16x32xf32>
    %434 = math.tanh %433 : vector<16x32xf32>
    %435 = arith.mulf %428, %434 : vector<16x32xf32>
    %436 = arith.truncf %435 : vector<16x32xf32> to vector<16x32xbf16>
    %437 = vector.extract_strided_slice %419 {offsets = [0, 0], sizes = [16, 96], strides = [1, 1]} : vector<16x128xf32> to vector<16x96xf32>
    %438 = arith.negf %437 : vector<16x96xf32>
    %439 = math.exp %438 : vector<16x96xf32>
    %cst_122 = arith.constant 1.000000e+00 : f32
    %440 = vector.broadcast %cst_122 : f32 to vector<16x96xf32>
    %441 = arith.addf %440, %439 : vector<16x96xf32>
    %442 = arith.divf %440, %441 : vector<16x96xf32>
    %443 = vector.extract_strided_slice %442 {offsets = [0, 0], sizes = [16, 32], strides = [1, 1]} : vector<16x96xf32> to vector<16x32xf32>
    %444 = vector.extract_strided_slice %442 {offsets = [0, 32], sizes = [16, 32], strides = [1, 1]} : vector<16x96xf32> to vector<16x32xf32>
    %445 = vector.extract_strided_slice %442 {offsets = [0, 64], sizes = [16, 32], strides = [1, 1]} : vector<16x96xf32> to vector<16x32xf32>
    %446 = vector.extract_strided_slice %419 {offsets = [0, 96], sizes = [16, 32], strides = [1, 1]} : vector<16x128xf32> to vector<16x32xf32>
    %447 = math.tanh %446 : vector<16x32xf32>
    %448 = arith.mulf %444, %395 : vector<16x32xf32>
    %449 = arith.mulf %443, %447 : vector<16x32xf32>
    %450 = arith.addf %448, %449 : vector<16x32xf32>
    %451 = math.tanh %450 : vector<16x32xf32>
    %452 = arith.mulf %445, %451 : vector<16x32xf32>
    %453 = arith.truncf %452 : vector<16x32xf32> to vector<16x32xbf16>
    %454 = arith.index_cast %c7_i32_113 : i32 to index
    %c0_123 = arith.constant 0 : index
    %c0_124 = arith.constant 0 : index
    %455 = vector.load %arg14[%454, %c0_123, %c0_124] : memref<8x16x32xbf16, #tpu.memory_space<vmem>>, vector<1x16x32xbf16>
    %456 = vector.shape_cast %455 : vector<1x16x32xbf16> to vector<16x32xbf16>
    %457 = vector.shape_cast %436 : vector<16x32xbf16> to vector<1x16x32xbf16>
    tpu.vector_store %arg14[%454, %c0_123, %c0_124], %457 {strides = array<i32>} : memref<8x16x32xbf16, #tpu.memory_space<vmem>>, vector<1x16x32xbf16>,
    %458 = arith.index_cast %407 : i32 to index
    %c0_125 = arith.constant 0 : index
    %c0_126 = arith.constant 0 : index
    %459 = vector.load %arg15[%458, %c0_125, %c0_126] : memref<8x16x32xbf16, #tpu.memory_space<vmem>>, vector<1x16x32xbf16>
    %460 = vector.shape_cast %459 : vector<1x16x32xbf16> to vector<16x32xbf16>
    %461 = vector.shape_cast %453 : vector<16x32xbf16> to vector<1x16x32xbf16>
    tpu.vector_store %arg15[%458, %c0_125, %c0_126], %461 {strides = array<i32>} : memref<8x16x32xbf16, #tpu.memory_space<vmem>>, vector<1x16x32xbf16>,
    %c8_i32 = arith.constant 8 : i32
    %c0_127 = arith.constant 0 : index
    %c0_128 = arith.constant 0 : index
    %c0_129 = arith.constant 0 : index
    %462 = vector.load %arg14[%c0_127, %c0_128, %c0_129] : memref<8x16x32xbf16, #tpu.memory_space<vmem>>, vector<8x16x32xbf16>
    %463 = vector.shape_cast %462 : vector<8x16x32xbf16> to vector<128x32xbf16>
    %c0_130 = arith.constant 0 : index
    %c0_131 = arith.constant 0 : index
    %c0_132 = arith.constant 0 : index
    %464 = vector.load %arg15[%c0_130, %c0_131, %c0_132] : memref<8x16x32xbf16, #tpu.memory_space<vmem>>, vector<8x16x32xbf16>
    %465 = vector.shape_cast %464 : vector<8x16x32xbf16> to vector<128x32xbf16>
    %c0_133 = arith.constant 0 : index
    %c0_134 = arith.constant 0 : index
    %466 = vector.load %arg8[%c0_133, %c0_134] : memref<32x128xbf16, #tpu.memory_space<vmem>>, vector<32x128xbf16>
    %cst_135 = arith.constant dense<0.000000e+00> : vector<128x128xf32>
    %467 = tpu.matmul %463, %466, %cst_135 {dimension_numbers = #tpu.dot_dimension_numbers<[1], [0], [0], [1], [0, 0, 1, 1], [], []>} : vector<128x32xbf16>, vector<32x128xbf16>, vector<128x128xf32> -> vector<128x128xf32>
    %c0_136 = arith.constant 0 : index
    %c0_137 = arith.constant 0 : index
    %468 = vector.load %arg9[%c0_136, %c0_137] : memref<32x128xbf16, #tpu.memory_space<vmem>>, vector<32x128xbf16>
    %cst_138 = arith.constant dense<0.000000e+00> : vector<128x128xf32>
    %469 = tpu.matmul %465, %468, %cst_138 {dimension_numbers = #tpu.dot_dimension_numbers<[1], [0], [0], [1], [0, 0, 1, 1], [], []>} : vector<128x32xbf16>, vector<32x128xbf16>, vector<128x128xf32> -> vector<128x128xf32>
    %470 = arith.addf %467, %469 : vector<128x128xf32>
    %c0_139 = arith.constant 0 : index
    %c0_140 = arith.constant 0 : index
    %471 = vector.load %arg10[%c0_139, %c0_140] : memref<1x128xf32, #tpu.memory_space<vmem>>, vector<1x128xf32>
    %472 = vector.broadcast %471 : vector<1x128xf32> to vector<128x128xf32>
    %473 = arith.addf %470, %472 : vector<128x128xf32>
    %474 = vector.shape_cast %473 : vector<128x128xf32> to vector<8x16x128xf32>
    %475 = arith.truncf %474 : vector<8x16x128xf32> to vector<8x16x128xbf16>
    %c0_141 = arith.constant 0 : index
    %c0_142 = arith.constant 0 : index
    %c0_143 = arith.constant 0 : index
    %476 = vector.load %arg11[%c0_141, %c0_142, %c0_143] : memref<8x16x128xbf16, #tpu.memory_space<vmem>>, vector<8x16x128xbf16>
    tpu.vector_store %arg11[%c0_141, %c0_142, %c0_143], %475 {strides = array<i32>} : memref<8x16x128xbf16, #tpu.memory_space<vmem>>, vector<8x16x128xbf16>,
    return
  }
  func.func @transform_0(%arg0: i32) -> (i32, i32, i32) {
    %c0_i32 = arith.constant 0 : i32
    %c0_i32_0 = arith.constant 0 : i32
    %c0_i32_1 = arith.constant 0 : i32
    return %c0_i32, %arg0, %c0_i32_0 : i32, i32, i32
  }
  func.func @transform_1(%arg0: i32) -> (i32, i32) {
    %c0_i32 = arith.constant 0 : i32
    %c0_i32_0 = arith.constant 0 : i32
    %c0_i32_1 = arith.constant 0 : i32
    return %c0_i32, %c0_i32_0 : i32, i32
  }
  func.func @transform_2(%arg0: i32) -> (i32, i32) {
    %c0_i32 = arith.constant 0 : i32
    %c0_i32_0 = arith.constant 0 : i32
    %c0_i32_1 = arith.constant 0 : i32
    return %c0_i32, %c0_i32_0 : i32, i32
  }
  func.func @transform_3(%arg0: i32) -> (i32, i32) {
    %c0_i32 = arith.constant 0 : i32
    %c0_i32_0 = arith.constant 0 : i32
    %c0_i32_1 = arith.constant 0 : i32
    return %c0_i32, %c0_i32_0 : i32, i32
  }
  func.func @transform_4(%arg0: i32) -> (i32, i32) {
    %c0_i32 = arith.constant 0 : i32
    %c0_i32_0 = arith.constant 0 : i32
    %c0_i32_1 = arith.constant 0 : i32
    return %c0_i32, %c0_i32_0 : i32, i32
  }
  func.func @transform_5(%arg0: i32) -> (i32, i32) {
    %c0_i32 = arith.constant 0 : i32
    %c0_i32_0 = arith.constant 0 : i32
    %c0_i32_1 = arith.constant 0 : i32
    return %c0_i32, %c0_i32_0 : i32, i32
  }
  func.func @transform_6(%arg0: i32) -> (i32, i32) {
    %c0_i32 = arith.constant 0 : i32
    %c0_i32_0 = arith.constant 0 : i32
    %c0_i32_1 = arith.constant 0 : i32
    return %c0_i32, %c0_i32_0 : i32, i32
  }
  func.func @transform_7(%arg0: i32) -> (i32, i32) {
    %c0_i32 = arith.constant 0 : i32
    %c0_i32_0 = arith.constant 0 : i32
    %c0_i32_1 = arith.constant 0 : i32
    return %c0_i32, %c0_i32_0 : i32, i32
  }
  func.func @transform_8(%arg0: i32) -> (i32, i32) {
    %c0_i32 = arith.constant 0 : i32
    %c0_i32_0 = arith.constant 0 : i32
    %c0_i32_1 = arith.constant 0 : i32
    return %c0_i32, %c0_i32_0 : i32, i32
  }
  func.func @transform_9(%arg0: i32) -> (i32, i32) {
    %c0_i32 = arith.constant 0 : i32
    %c0_i32_0 = arith.constant 0 : i32
    %c0_i32_1 = arith.constant 0 : i32
    return %c0_i32, %c0_i32_0 : i32, i32
  }
  func.func @transform_10(%arg0: i32) -> (i32, i32, i32) {
    %c0_i32 = arith.constant 0 : i32
    %c0_i32_0 = arith.constant 0 : i32
    %c0_i32_1 = arith.constant 0 : i32
    return %c0_i32, %arg0, %c0_i32_0 : i32, i32, i32
  }
}

</mosaic_0001>

<llo_original>
// kernel: tpu_custom_call.1
$region0: #{tpu_custom_call.1}
  #allocation0 [shape = 'u32[]', space=smem, size = 0x4, offset = 0x4, fixed_abs, tag = 'smem constant byte address 0x4 - core index']
  #allocation1 [shape = 'u32[72,128]{1,0:T(1,128)}', space=vmem, size = 0x9000, scoped, tag = 'internal scratch']
  #allocation2 [shape = 'bf16[8,16,128]{2,1,0:T(8,128)(2,1)}', space=vmem, size = 0x8000, scoped, tag = 'scratch operand']
  #allocation3 [shape = 'bf16[8,16,128]{2,1,0:T(8,128)(2,1)}', space=vmem, size = 0x8000, scoped, tag = 'scratch operand']
  #allocation4 [shape = 'bf16[8,16,32]{2,1,0:T(8,128)(2,1)}', space=vmem, size = 0x8000, scoped, tag = 'scratch operand']
  #allocation5 [shape = 'bf16[8,16,32]{2,1,0:T(8,128)(2,1)}', space=vmem, size = 0x8000, scoped, tag = 'scratch operand']
  %s0 = inlined_call_operand.hbm [shape: bf16[8,16,32], index: 0, kind: input, shape index: {}]
  %s1 = inlined_call_operand.hbm [shape: bf16[32,128], index: 1, kind: input, shape index: {}]
  %s2 = inlined_call_operand.hbm [shape: bf16[32,128], index: 2, kind: input, shape index: {}]
  %s3 = inlined_call_operand.vmem [shape: f32[1,128], index: 3, kind: input, shape index: {}]
  %s4 = inlined_call_operand.hbm [shape: bf16[32,128], index: 4, kind: input, shape index: {}]
  %s5 = inlined_call_operand.hbm [shape: bf16[32,128], index: 5, kind: input, shape index: {}]
  %s6 = inlined_call_operand.vmem [shape: f32[1,128], index: 6, kind: input, shape index: {}]
  %s7 = inlined_call_operand.hbm [shape: bf16[32,128], index: 7, kind: input, shape index: {}]
  %s8 = inlined_call_operand.hbm [shape: bf16[32,128], index: 8, kind: input, shape index: {}]
  %s9 = inlined_call_operand.vmem [shape: f32[1,128], index: 9, kind: input, shape index: {}]
  %s10 = inlined_call_operand.hbm [shape: bf16[8,16,128], index: 10, kind: output, shape index: {}]
  %s11 = sld [smem:[#allocation0]]
  $region78: #{tpu_custom_call.1} parent=0
    _
  %s13 = ssub.s32 1, %s11
  %s14 = scalar_select 0, %s13, %s11
  $region1: #{tpu_custom_call.1} parent=0
    #allocation6 [shape = 'u8[32768]{0}', space=vmem, size = 0x8000, scoped, tag = 'input window, operand 0, single buffered']
    #allocation7 [shape = 's32[1]{0}', space=sflag, size = 0x4, scoped, tag = 'scoped memory for tpu_custom_call.1']
    #allocation8 [shape = 's32[1]{0}', space=sflag, size = 0x4, scoped, tag = 'scoped memory for tpu_custom_call.1']
    #allocation9 [shape = 'u8[8192]{0}', space=vmem, size = 0x2000, scoped, tag = 'input window, operand 1, single buffered']
    #allocation10 [shape = 's32[1]{0}', space=sflag, size = 0x4, scoped, tag = 'scoped memory for tpu_custom_call.1']
    #allocation11 [shape = 'u8[8192]{0}', space=vmem, size = 0x2000, scoped, tag = 'input window, operand 2, single buffered']
    #allocation12 [shape = 'u8[8192]{0}', space=vmem, size = 0x2000, scoped, tag = 'input window, operand 4, single buffered']
    #allocation13 [shape = 's32[1]{0}', space=sflag, size = 0x4, scoped, tag = 'scoped memory for tpu_custom_call.1']
    #allocation14 [shape = 'u8[8192]{0}', space=vmem, size = 0x2000, scoped, tag = 'input window, operand 5, single buffered']
    #allocation15 [shape = 'u8[8192]{0}', space=vmem, size = 0x2000, scoped, tag = 'input window, operand 7, single buffered']
    #allocation16 [shape = 's32[1]{0}', space=sflag, size = 0x4, scoped, tag = 'scoped memory for tpu_custom_call.1']
    #allocation17 [shape = 'u8[8192]{0}', space=vmem, size = 0x2000, scoped, tag = 'input window, operand 8, single buffered']
    #allocation18 [shape = 'u8[32768]{0}', space=vmem, size = 0x8000, scoped, tag = 'output window, operand 0, single buffered']
    %15 = vsyncpa [#allocation7], 0
    %16 = vsyncpa [#allocation10], 0
    %17 = vsyncpa [#allocation13], 0
    %18 = vsyncpa [#allocation16], 0
    %19 = vsyncpa [#allocation8], 0
    // Predicated region
    $region2: #{tpu_custom_call.1} parent=1 // pred_check
      _
    $region3: #{tpu_custom_call.1} parent=1 // pred_check_branch
      %21 = sbr.rel (0) target = $region5
    $region4: #{tpu_custom_call.1} parent=1 // pred_region
      %23 = vsyncadd [#allocation7], 0
      %s24 = sshll.u32 %s0, 4
      %s25 = int_to_ptr.hbm [resolvable:$true] %s24
      %s26 = sshll.u32 [#allocation6], 4
      %s27 = int_to_ptr.vmem [resolvable:$true] %s26
      %32 = dma.hbm_to_vmem [thread:$0]  %s25, 1024, %s27, [#allocation7], 64, 64, 4
    $region5: #{tpu_custom_call.1} parent=1 // pred_fallthru
      _
    // Predicated region
    $region6: #{tpu_custom_call.1} parent=1 // pred_check
      _
    $region7: #{tpu_custom_call.1} parent=1 // pred_check_branch
      %34 = sbr.rel (0) target = $region9
    $region8: #{tpu_custom_call.1} parent=1 // pred_region
      %36 = vsyncadd [#allocation10], 0
      %s37 = sshll.u32 %s1, 4
      %s38 = int_to_ptr.hbm [resolvable:$true] %s37
      %s39 = sshll.u32 [#allocation9], 4
      %s40 = int_to_ptr.vmem [resolvable:$true] %s39
      %45 = dma.hbm_to_vmem [thread:$0]  %s38, 256, %s40, [#allocation10], 64, 64, 4
    $region9: #{tpu_custom_call.1} parent=1 // pred_fallthru
      _
    // Predicated region
    $region10: #{tpu_custom_call.1} parent=1 // pred_check
      _
    $region11: #{tpu_custom_call.1} parent=1 // pred_check_branch
      %47 = sbr.rel (0) target = $region13
    $region12: #{tpu_custom_call.1} parent=1 // pred_region
      %49 = vsyncadd [#allocation10], 0
      %s50 = sshll.u32 %s2, 4
      %s51 = int_to_ptr.hbm [resolvable:$true] %s50
      %s52 = sshll.u32 [#allocation11], 4
      %s53 = int_to_ptr.vmem [resolvable:$true] %s52
      %58 = dma.hbm_to_vmem [thread:$0]  %s51, 256, %s53, [#allocation10], 64, 64, 4
    $region13: #{tpu_custom_call.1} parent=1 // pred_fallthru
      _
    // Predicated region
    $region14: #{tpu_custom_call.1} parent=1 // pred_check
      _
    $region15: #{tpu_custom_call.1} parent=1 // pred_check_branch
      %60 = sbr.rel (0) target = $region17
    $region16: #{tpu_custom_call.1} parent=1 // pred_region
      _
    $region17: #{tpu_custom_call.1} parent=1 // pred_fallthru
      _
    // Predicated region
    $region18: #{tpu_custom_call.1} parent=1 // pred_check
      _
    $region19: #{tpu_custom_call.1} parent=1 // pred_check_branch
      %62 = sbr.rel (0) target = $region21
    $region20: #{tpu_custom_call.1} parent=1 // pred_region
      %64 = vsyncadd [#allocation13], 0
      %s65 = sshll.u32 %s4, 4
      %s66 = int_to_ptr.hbm [resolvable:$true] %s65
      %s67 = sshll.u32 [#allocation12], 4
      %s68 = int_to_ptr.vmem [resolvable:$true] %s67
      %73 = dma.hbm_to_vmem [thread:$0]  %s66, 256, %s68, [#allocation13], 64, 64, 4
    $region21: #{tpu_custom_call.1} parent=1 // pred_fallthru
      _
    // Predicated region
    $region22: #{tpu_custom_call.1} parent=1 // pred_check
      _
    $region23: #{tpu_custom_call.1} parent=1 // pred_check_branch
      %75 = sbr.rel (0) target = $region25
    $region24: #{tpu_custom_call.1} parent=1 // pred_region
      %77 = vsyncadd [#allocation13], 0
      %s78 = sshll.u32 %s5, 4
      %s79 = int_to_ptr.hbm [resolvable:$true] %s78
      %s80 = sshll.u32 [#allocation14], 4
      %s81 = int_to_ptr.vmem [resolvable:$true] %s80
      %86 = dma.hbm_to_vmem [thread:$0]  %s79, 256, %s81, [#allocation13], 64, 64, 4
    $region25: #{tpu_custom_call.1} parent=1 // pred_fallthru
      _
    // Predicated region
    $region26: #{tpu_custom_call.1} parent=1 // pred_check
      _
    $region27: #{tpu_custom_call.1} parent=1 // pred_check_branch
      %88 = sbr.rel (0) target = $region29
    $region28: #{tpu_custom_call.1} parent=1 // pred_region
      _
    $region29: #{tpu_custom_call.1} parent=1 // pred_fallthru
      _
    // Predicated region
    $region30: #{tpu_custom_call.1} parent=1 // pred_check
      _
    $region31: #{tpu_custom_call.1} parent=1 // pred_check_branch
      %90 = sbr.rel (0) target = $region33
    $region32: #{tpu_custom_call.1} parent=1 // pred_region
      %92 = vsyncadd [#allocation16], 0
      %s93 = sshll.u32 %s7, 4
      %s94 = int_to_ptr.hbm [resolvable:$true] %s93
      %s95 = sshll.u32 [#allocation15], 4
      %s96 = int_to_ptr.vmem [resolvable:$true] %s95
      %101 = dma.hbm_to_vmem [thread:$0]  %s94, 256, %s96, [#allocation16], 64, 64, 4
    $region33: #{tpu_custom_call.1} parent=1 // pred_fallthru
      _
    // Predicated region
    $region34: #{tpu_custom_call.1} parent=1 // pred_check
      _
    $region35: #{tpu_custom_call.1} parent=1 // pred_check_branch
      %103 = sbr.rel (0) target = $region37
    $region36: #{tpu_custom_call.1} parent=1 // pred_region
      %105 = vsyncadd [#allocation16], 0
      %s106 = sshll.u32 %s8, 4
      %s107 = int_to_ptr.hbm [resolvable:$true] %s106
      %s108 = sshll.u32 [#allocation17], 4
      %s109 = int_to_ptr.vmem [resolvable:$true] %s108
      %114 = dma.hbm_to_vmem [thread:$0]  %s107, 256, %s109, [#allocation16], 64, 64, 4
    $region37: #{tpu_custom_call.1} parent=1 // pred_fallthru
      _
    // Predicated region
    $region38: #{tpu_custom_call.1} parent=1 // pred_check
      _
    $region39: #{tpu_custom_call.1} parent=1 // pred_check_branch
      %116 = sbr.rel (0) target = $region41
    $region40: #{tpu_custom_call.1} parent=1 // pred_region
      _
    $region41: #{tpu_custom_call.1} parent=1 // pred_fallthru
      _
    // Predicated region
    $region42: #{tpu_custom_call.1} parent=1 // pred_check
      _
    $region43: #{tpu_custom_call.1} parent=1 // pred_check_branch
      %118 = sbr.rel (0) target = $region45
    $region44: #{tpu_custom_call.1} parent=1 // pred_region
      %120 = dma.done [#allocation7], 1024
    $region45: #{tpu_custom_call.1} parent=1 // pred_fallthru
      _
    // Predicated region
    $region46: #{tpu_custom_call.1} parent=1 // pred_check
      _
    $region47: #{tpu_custom_call.1} parent=1 // pred_check_branch
      %122 = sbr.rel (0) target = $region49
    $region48: #{tpu_custom_call.1} parent=1 // pred_region
      %124 = dma.done [#allocation10], 256
    $region49: #{tpu_custom_call.1} parent=1 // pred_fallthru
      _
    // Predicated region
    $region50: #{tpu_custom_call.1} parent=1 // pred_check
      _
    $region51: #{tpu_custom_call.1} parent=1 // pred_check_branch
      %126 = sbr.rel (0) target = $region53
    $region52: #{tpu_custom_call.1} parent=1 // pred_region
      %128 = dma.done [#allocation10], 256
    $region53: #{tpu_custom_call.1} parent=1 // pred_fallthru
      _
    // Predicated region
    $region54: #{tpu_custom_call.1} parent=1 // pred_check
      _
    $region55: #{tpu_custom_call.1} parent=1 // pred_check_branch
      %130 = sbr.rel (0) target = $region57
    $region56: #{tpu_custom_call.1} parent=1 // pred_region
      %132 = dma.done [#allocation13], 256
    $region57: #{tpu_custom_call.1} parent=1 // pred_fallthru
      _
    // Predicated region
    $region58: #{tpu_custom_call.1} parent=1 // pred_check
      _
    $region59: #{tpu_custom_call.1} parent=1 // pred_check_branch
      %134 = sbr.rel (0) target = $region61
    $region60: #{tpu_custom_call.1} parent=1 // pred_region
      %136 = dma.done [#allocation13], 256
    $region61: #{tpu_custom_call.1} parent=1 // pred_fallthru
      _
    // Predicated region
    $region62: #{tpu_custom_call.1} parent=1 // pred_check
      _
    $region63: #{tpu_custom_call.1} parent=1 // pred_check_branch
      %138 = sbr.rel (0) target = $region65
    $region64: #{tpu_custom_call.1} parent=1 // pred_region
      %140 = dma.done [#allocation16], 256
    $region65: #{tpu_custom_call.1} parent=1 // pred_fallthru
      _
    // Predicated region
    $region66: #{tpu_custom_call.1} parent=1 // pred_check
      _
    $region67: #{tpu_custom_call.1} parent=1 // pred_check_branch
      %142 = sbr.rel (0) target = $region69
    $region68: #{tpu_custom_call.1} parent=1 // pred_region
      %144 = dma.done [#allocation16], 256
    $region69: #{tpu_custom_call.1} parent=1 // pred_fallthru
      _
    %v146 = vld [vmem:[#allocation6] sm:$0xf]
    %v147 = vld [vmem:[#allocation6 + $0x4] sm:$0xf]
    %v148 = vld [vmem:[#allocation6 + $0x8] sm:$0xf]
    %v149 = vld [vmem:[#allocation6 + $0xc] sm:$0xf]
    %v150 = vld [vmem:[#allocation6 + $0x10] sm:$0xf]
    %v151 = vld [vmem:[#allocation6 + $0x14] sm:$0xf]
    %v152 = vld [vmem:[#allocation6 + $0x18] sm:$0xf]
    %v153 = vld [vmem:[#allocation6 + $0x1c] sm:$0xf]
    %v154 = vld [vmem:[#allocation6 + $0x20] sm:$0xf]
    %v155 = vld [vmem:[#allocation6 + $0x24] sm:$0xf]
    %v156 = vld [vmem:[#allocation6 + $0x28] sm:$0xf]
    %v157 = vld [vmem:[#allocation6 + $0x2c] sm:$0xf]
    %v158 = vld [vmem:[#allocation6 + $0x30] sm:$0xf]
    %v159 = vld [vmem:[#allocation6 + $0x34] sm:$0xf]
    %v160 = vld [vmem:[#allocation6 + $0x38] sm:$0xf]
    %v161 = vld [vmem:[#allocation6 + $0x3c] sm:$0xf]
    %v162 = vld [vmem:[#allocation9] sm:$0xf]
    %v163 = vld [vmem:[#allocation9 + $0x4] sm:$0xf]
    %v164 = vld [vmem:[#allocation9 + $0x8] sm:$0xf]
    %v165 = vld [vmem:[#allocation9 + $0xc] sm:$0xf]
    %v166 = vld [vmem:[%s3] sm:$0x1]
    %v168 = vperm.slane %v166, 0
    %v186 = vunpack.c.l.b16 %v146
    %v187 = vunpack.c.l.b16 %v147
    %v188 = vunpack.c.l.b16 %v148
    %v189 = vunpack.c.l.b16 %v149
    %v190 = vunpack.c.l.b16 %v150
    %v191 = vunpack.c.l.b16 %v151
    %v192 = vunpack.c.l.b16 %v152
    %v193 = vunpack.c.l.b16 %v153
    %v194 = vunpack.c.l.b16 %v154
    %v195 = vunpack.c.l.b16 %v155
    %v196 = vunpack.c.l.b16 %v156
    %v197 = vunpack.c.l.b16 %v157
    %v198 = vunpack.c.l.b16 %v158
    %v199 = vunpack.c.l.b16 %v159
    %v200 = vunpack.c.l.b16 %v160
    %v201 = vunpack.c.l.b16 %v161
    %v202 = vpack.c.b16 %v187, %v186
    %v203 = vpack.c.b16 %v189, %v188
    %v204 = vpack.c.b16 %v191, %v190
    %v205 = vpack.c.b16 %v193, %v192
    %v206 = vpack.c.b16 %v195, %v194
    %v207 = vpack.c.b16 %v197, %v196
    %v208 = vpack.c.b16 %v199, %v198
    %v209 = vpack.c.b16 %v201, %v200
    %v214 = vunpack.c.l.b16 %v162
    %v215 = vunpack.c.l.b16 %v163
    %v216 = vunpack.c.l.b16 %v164
    %v217 = vunpack.c.l.b16 %v165
    %v218 = vpack.c.b16 %v215, %v214
    %v219 = vpack.c.b16 %v217, %v216
    %vm222 = vcmask 261120
    %v224 = vsel %vm222, %v202, 0
    %v227 = vsel %vm222, %v203, 0
    %v230 = vsel %vm222, %v204, 0
    %v233 = vsel %vm222, %v205, 0
    %v236 = vsel %vm222, %v206, 0
    %v239 = vsel %vm222, %v207, 0
    %v242 = vsel %vm222, %v208, 0
    %v245 = vsel %vm222, %v209, 0
    %247 = vmatpush.bf16.msra.mxu0 0
    %248 = vmatpush.bf16.msra.mxu0 0
    %249 = vmatpush.bf16.msra.mxu0 0
    %250 = vmatpush.bf16.msra.mxu0 0
    %251 = vmatpush.bf16.msra.mxu0 0
    %252 = vmatpush.bf16.msra.mxu0 0
    %253 = vmatpush.bf16.msra.mxu0 %v219
    %254 = vmatpush.bf16.msra.mxu0 %v218
    %255 = vmatmul.bf16.gmra.mxu0 %v224
    %v256 = vpop.f32.mrf.mxu0
    %v257 = vadd.f32 %v168, %v256
    %v258 = vpop.f32.mrf.mxu0
    %v259 = vadd.f32 %v168, %v258
    %260 = vmatmul.bf16.gmra.mxu0 %v227
    %v261 = vpop.f32.mrf.mxu0
    %v262 = vadd.f32 %v168, %v261
    %v263 = vpop.f32.mrf.mxu0
    %v264 = vadd.f32 %v168, %v263
    %265 = vmatmul.bf16.gmra.mxu0 %v230
    %v266 = vpop.f32.mrf.mxu0
    %v267 = vadd.f32 %v168, %v266
    %v268 = vpop.f32.mrf.mxu0
    %v269 = vadd.f32 %v168, %v268
    %270 = vmatmul.bf16.gmra.mxu0 %v233
    %v271 = vpop.f32.mrf.mxu0
    %v272 = vadd.f32 %v168, %v271
    %v273 = vpop.f32.mrf.mxu0
    %v274 = vadd.f32 %v168, %v273
    %275 = vmatmul.bf16.gmra.mxu0 %v236
    %v276 = vpop.f32.mrf.mxu0
    %v277 = vadd.f32 %v168, %v276
    %v278 = vpop.f32.mrf.mxu0
    %v279 = vadd.f32 %v168, %v278
    %280 = vmatmul.bf16.gmra.mxu0 %v239
    %v281 = vpop.f32.mrf.mxu0
    %v282 = vadd.f32 %v168, %v281
    %v283 = vpop.f32.mrf.mxu0
    %v284 = vadd.f32 %v168, %v283
    %285 = vmatmul.bf16.gmra.mxu0 %v242
    %v286 = vpop.f32.mrf.mxu0
    %v287 = vadd.f32 %v168, %v286
    %v288 = vpop.f32.mrf.mxu0
    %v289 = vadd.f32 %v168, %v288
    %290 = vmatmul.bf16.gmra.mxu0 %v245
    %v291 = vpop.f32.mrf.mxu0
    %v292 = vadd.f32 %v168, %v291
    %v293 = vpop.f32.mrf.mxu0
    %v294 = vadd.f32 %v168, %v293
    %295 = vdwg.mxu0
    %v296 = vpack.c.bf16 %v257, %v257
    %v297 = vpack.c.bf16 %v259, %v259
    %v298 = vpack.c.bf16 %v262, %v262
    %v299 = vpack.c.bf16 %v264, %v264
    %v300 = vpack.c.bf16 %v267, %v267
    %v301 = vpack.c.bf16 %v269, %v269
    %v302 = vpack.c.bf16 %v272, %v272
    %v303 = vpack.c.bf16 %v274, %v274
    %v304 = vpack.c.bf16 %v277, %v277
    %v305 = vpack.c.bf16 %v279, %v279
    %v306 = vpack.c.bf16 %v282, %v282
    %v307 = vpack.c.bf16 %v284, %v284
    %v308 = vpack.c.bf16 %v287, %v287
    %v309 = vpack.c.bf16 %v289, %v289
    %v310 = vpack.c.bf16 %v292, %v292
    %v311 = vpack.c.bf16 %v294, %v294
    %312 = vst [vmem:[#allocation2] sm:$0xf] %v296
    %313 = vst [vmem:[#allocation2 + $0x4] sm:$0xf] %v297
    %314 = vst [vmem:[#allocation2 + $0x8] sm:$0xf] %v298
    %315 = vst [vmem:[#allocation2 + $0xc] sm:$0xf] %v299
    %316 = vst [vmem:[#allocation2 + $0x10] sm:$0xf] %v300
    %317 = vst [vmem:[#allocation2 + $0x14] sm:$0xf] %v301
    %318 = vst [vmem:[#allocation2 + $0x18] sm:$0xf] %v302
    %319 = vst [vmem:[#allocation2 + $0x1c] sm:$0xf] %v303
    %320 = vst [vmem:[#allocation2 + $0x20] sm:$0xf] %v304
    %321 = vst [vmem:[#allocation2 + $0x24] sm:$0xf] %v305
    %322 = vst [vmem:[#allocation2 + $0x28] sm:$0xf] %v306
    %323 = vst [vmem:[#allocation2 + $0x2c] sm:$0xf] %v307
    %324 = vst [vmem:[#allocation2 + $0x30] sm:$0xf] %v308
    %325 = vst [vmem:[#allocation2 + $0x34] sm:$0xf] %v309
    %326 = vst [vmem:[#allocation2 + $0x38] sm:$0xf] %v310
    %327 = vst [vmem:[#allocation2 + $0x3c] sm:$0xf] %v311
    %v328 = vld [vmem:[#allocation12] sm:$0xf]
    %v329 = vld [vmem:[#allocation12 + $0x4] sm:$0xf]
    %v330 = vld [vmem:[#allocation12 + $0x8] sm:$0xf]
    %v331 = vld [vmem:[#allocation12 + $0xc] sm:$0xf]
    %v332 = vld [vmem:[%s6] sm:$0x1]
    %v334 = vperm.slane %v332, 0
    %v340 = vunpack.c.l.b16 %v328
    %v341 = vunpack.c.l.b16 %v329
    %v342 = vunpack.c.l.b16 %v330
    %v343 = vunpack.c.l.b16 %v331
    %v344 = vpack.c.b16 %v341, %v340
    %v345 = vpack.c.b16 %v343, %v342
    %348 = vmatpush.bf16.msra.mxu0 0
    %349 = vmatpush.bf16.msra.mxu0 0
    %350 = vmatpush.bf16.msra.mxu0 0
    %351 = vmatpush.bf16.msra.mxu0 0
    %352 = vmatpush.bf16.msra.mxu0 0
    %353 = vmatpush.bf16.msra.mxu0 0
    %354 = vmatpush.bf16.msra.mxu0 %v345
    %355 = vmatpush.bf16.msra.mxu0 %v344
    %356 = vmatmul.bf16.gmra.mxu0 %v224
    %v357 = vpop.f32.mrf.mxu0
    %v358 = vadd.f32 %v334, %v357
    %v359 = vpop.f32.mrf.mxu0
    %v360 = vadd.f32 %v334, %v359
    %361 = vmatmul.bf16.gmra.mxu0 %v227
    %v362 = vpop.f32.mrf.mxu0
    %v363 = vadd.f32 %v334, %v362
    %v364 = vpop.f32.mrf.mxu0
    %v365 = vadd.f32 %v334, %v364
    %366 = vmatmul.bf16.gmra.mxu0 %v230
    %v367 = vpop.f32.mrf.mxu0
    %v368 = vadd.f32 %v334, %v367
    %v369 = vpop.f32.mrf.mxu0
    %v370 = vadd.f32 %v334, %v369
    %371 = vmatmul.bf16.gmra.mxu0 %v233
    %v372 = vpop.f32.mrf.mxu0
    %v373 = vadd.f32 %v334, %v372
    %v374 = vpop.f32.mrf.mxu0
    %v375 = vadd.f32 %v334, %v374
    %376 = vmatmul.bf16.gmra.mxu0 %v236
    %v377 = vpop.f32.mrf.mxu0
    %v378 = vadd.f32 %v334, %v377
    %v379 = vpop.f32.mrf.mxu0
    %v380 = vadd.f32 %v334, %v379
    %381 = vmatmul.bf16.gmra.mxu0 %v239
    %v382 = vpop.f32.mrf.mxu0
    %v383 = vadd.f32 %v334, %v382
    %v384 = vpop.f32.mrf.mxu0
    %v385 = vadd.f32 %v334, %v384
    %386 = vmatmul.bf16.gmra.mxu0 %v242
    %v387 = vpop.f32.mrf.mxu0
    %v388 = vadd.f32 %v334, %v387
    %v389 = vpop.f32.mrf.mxu0
    %v390 = vadd.f32 %v334, %v389
    %391 = vmatmul.bf16.gmra.mxu0 %v245
    %v392 = vpop.f32.mrf.mxu0
    %v393 = vadd.f32 %v334, %v392
    %v394 = vpop.f32.mrf.mxu0
    %v395 = vadd.f32 %v334, %v394
    %396 = vdwg.mxu0
    %v397 = vpack.c.bf16 %v358, %v358
    %v398 = vpack.c.bf16 %v360, %v360
    %v399 = vpack.c.bf16 %v363, %v363
    %v400 = vpack.c.bf16 %v365, %v365
    %v401 = vpack.c.bf16 %v368, %v368
    %v402 = vpack.c.bf16 %v370, %v370
    %v403 = vpack.c.bf16 %v373, %v373
    %v404 = vpack.c.bf16 %v375, %v375
    %v405 = vpack.c.bf16 %v378, %v378
    %v406 = vpack.c.bf16 %v380, %v380
    %v407 = vpack.c.bf16 %v383, %v383
    %v408 = vpack.c.bf16 %v385, %v385
    %v409 = vpack.c.bf16 %v388, %v388
    %v410 = vpack.c.bf16 %v390, %v390
    %v411 = vpack.c.bf16 %v393, %v393
    %v412 = vpack.c.bf16 %v395, %v395
    %413 = vst [vmem:[#allocation3] sm:$0xf] %v397
    %414 = vst [vmem:[#allocation3 + $0x4] sm:$0xf] %v398
    %415 = vst [vmem:[#allocation3 + $0x8] sm:$0xf] %v399
    %416 = vst [vmem:[#allocation3 + $0xc] sm:$0xf] %v400
    %417 = vst [vmem:[#allocation3 + $0x10] sm:$0xf] %v401
    %418 = vst [vmem:[#allocation3 + $0x14] sm:$0xf] %v402
    %419 = vst [vmem:[#allocation3 + $0x18] sm:$0xf] %v403
    %420 = vst [vmem:[#allocation3 + $0x1c] sm:$0xf] %v404
    %421 = vst [vmem:[#allocation3 + $0x20] sm:$0xf] %v405
    %422 = vst [vmem:[#allocation3 + $0x24] sm:$0xf] %v406
    %423 = vst [vmem:[#allocation3 + $0x28] sm:$0xf] %v407
    %424 = vst [vmem:[#allocation3 + $0x2c] sm:$0xf] %v408
    %425 = vst [vmem:[#allocation3 + $0x30] sm:$0xf] %v409
    %426 = vst [vmem:[#allocation3 + $0x34] sm:$0xf] %v410
    %427 = vst [vmem:[#allocation3 + $0x38] sm:$0xf] %v411
    %428 = vst [vmem:[#allocation3 + $0x3c] sm:$0xf] %v412
    %v429 = vld [vmem:[#allocation11] sm:$0xf]
    %v430 = vld [vmem:[#allocation11 + $0x4] sm:$0xf]
    %v431 = vld [vmem:[#allocation11 + $0x8] sm:$0xf]
    %v432 = vld [vmem:[#allocation11 + $0xc] sm:$0xf]
    %v433 = vld [vmem:[#allocation14] sm:$0xf]
    %v434 = vld [vmem:[#allocation14 + $0x4] sm:$0xf]
    %v435 = vld [vmem:[#allocation14 + $0x8] sm:$0xf]
    %v436 = vld [vmem:[#allocation14 + $0xc] sm:$0xf]
    %v437 = vld [vmem:[#allocation2] sm:$0xf]
    %v438 = vld [vmem:[#allocation2 + $0x4] sm:$0xf]
    %v439 = vunpack.c.l.bf16 %v437
    %v440 = vunpack.c.l.bf16 %v438
    %v445 = vunpack.c.l.b16 %v429
    %v446 = vunpack.c.l.b16 %v430
    %v447 = vunpack.c.l.b16 %v431
    %v448 = vunpack.c.l.b16 %v432
    %v449 = vpack.c.b16 %v446, %v445
    %v450 = vpack.c.b16 %v448, %v447
    %v454 = vsel %vm222, 0, 0
    %456 = vmatpush.bf16.msra.mxu0 0
    %457 = vmatpush.bf16.msra.mxu0 0
    %458 = vmatpush.bf16.msra.mxu0 0
    %459 = vmatpush.bf16.msra.mxu0 0
    %460 = vmatpush.bf16.msra.mxu0 0
    %461 = vmatpush.bf16.msra.mxu0 0
    %462 = vmatpush.bf16.msra.mxu0 %v450
    %463 = vmatpush.bf16.msra.mxu0 %v449
    %464 = vmatmul.bf16.gmra.mxu0 %v454
    %v465 = vpop.f32.mrf.mxu0
    %v466 = vadd.f32 0.0, %v465
    %v467 = vpop.f32.mrf.mxu0
    %v468 = vadd.f32 0.0, %v467
    %469 = vdwg.mxu0
    %v470 = vadd.f32 %v439, %v466
    %v471 = vadd.f32 %v440, %v468
    %s472 = scalar_lea.vmem [#allocation3], 56
    %v473 = vld [vmem:[%s472] sm:$0xf]
    %v474 = vld [vmem:[%s472 + $0x4] sm:$0xf]
    %v475 = vunpack.c.l.bf16 %v473
    %v476 = vunpack.c.l.bf16 %v474
    %v481 = vunpack.c.l.b16 %v433
    %v482 = vunpack.c.l.b16 %v434
    %v483 = vunpack.c.l.b16 %v435
    %v484 = vunpack.c.l.b16 %v436
    %v485 = vpack.c.b16 %v482, %v481
    %v486 = vpack.c.b16 %v484, %v483
    %489 = vmatpush.bf16.msra.mxu0 0
    %490 = vmatpush.bf16.msra.mxu0 0
    %491 = vmatpush.bf16.msra.mxu0 0
    %492 = vmatpush.bf16.msra.mxu0 0
    %493 = vmatpush.bf16.msra.mxu0 0
    %494 = vmatpush.bf16.msra.mxu0 0
    %495 = vmatpush.bf16.msra.mxu0 %v486
    %496 = vmatpush.bf16.msra.mxu0 %v485
    %497 = vmatmul.bf16.gmra.mxu0 %v454
    %v498 = vpop.f32.mrf.mxu0
    %v499 = vadd.f32 0.0, %v498
    %v500 = vpop.f32.mrf.mxu0
    %v501 = vadd.f32 0.0, %v500
    %502 = vdwg.mxu0
    %v503 = vadd.f32 %v475, %v499
    %v504 = vadd.f32 %v476, %v501
    %v505 = vxor.u32 %v470, 2147483648
    %v506 = vxor.u32 %v471, 2147483648
    %v507 = vmul.f32 %v505, 1.442695
    %v508 = vpow.pop %v507
    %v509 = vmul.f32 %v506, 1.442695
    %v510 = vpow.pop %v509
    %v511 = vadd.f32 %v508, 1.0
    %v512 = vadd.f32 %v510, 1.0
    %v513 = vrcp.pop %v511
    %v514 = vmul.f32 %v511, %v513
    %v515 = vsub.f32 1.0, %v514
    %v516 = vmul.f32 %v513, %v515
    %v517 = vadd.f32 %v513, %v516
    %vm518 = vweird.f32 %v511
    %vm519 = vweird.f32 %v513
    %vm520 = vmor %vm518, %vm519
    %v521 = vsel %vm520, %v513, %v517
    %v522 = vand.u32 2147483647, %v511
    %vm523 = vcmp.eq.f32.partialorder %v522, 8.507059e+37
    %v524 = vand.u32 %v511, 2147483648
    %v525 = vor.u32 1.1754944e-38, %v524
    %v526 = vsel %vm523, %v525, %v521
    %v527 = vmul.f32 1.0, %v526
    %v528 = vrcp.pop %v512
    %v529 = vmul.f32 %v512, %v528
    %v530 = vsub.f32 1.0, %v529
    %v531 = vmul.f32 %v528, %v530
    %v532 = vadd.f32 %v528, %v531
    %vm533 = vweird.f32 %v512
    %vm534 = vweird.f32 %v528
    %vm535 = vmor %vm533, %vm534
    %v536 = vsel %vm535, %v528, %v532
    %v537 = vand.u32 2147483647, %v512
    %vm538 = vcmp.eq.f32.partialorder %v537, 8.507059e+37
    %v539 = vand.u32 %v512, 2147483648
    %v540 = vor.u32 1.1754944e-38, %v539
    %v541 = vsel %vm538, %v540, %v536
    %v542 = vmul.f32 1.0, %v541
    %v543 = vtanh.pop %v470
    %v544 = vtanh.pop %v471
    %v545 = vmul.f32 %v527, 0.0
    %v546 = vmul.f32 %v542, 0.0
    %549 = vrot.lane.b32.xlu0 %v543, 32
    %v550 = vpop.permute.xlu0 %549
    %551 = vrot.lane.b32.xlu0 %v544, 32
    %v552 = vpop.permute.xlu0 %551
    %v555 = vmul.f32 %v527, %v550
    %v556 = vmul.f32 %v542, %v552
    %559 = vrot.lane.b32.xlu0 %v555, 32
    %v560 = vpop.permute.xlu0 %559
    %561 = vrot.lane.b32.xlu0 %v556, 32
    %v562 = vpop.permute.xlu0 %561
    %v565 = vadd.f32 %v545, %v560
    %v566 = vadd.f32 %v546, %v562
    %v567 = vtanh.pop %v565
    %v568 = vtanh.pop %v566
    %571 = vrot.lane.b32.xlu0 %v567, 32
    %v572 = vpop.permute.xlu0 %571
    %573 = vrot.lane.b32.xlu0 %v568, 32
    %v574 = vpop.permute.xlu0 %573
    %v577 = vmul.f32 %v527, %v572
    %v578 = vmul.f32 %v542, %v574
    %v579 = vpack.c.bf16 %v577, %v577
    %v580 = vpack.c.bf16 %v578, %v578
    %v581 = vxor.u32 %v503, 2147483648
    %v582 = vxor.u32 %v504, 2147483648
    %v583 = vmul.f32 %v581, 1.442695
    %v584 = vpow.pop %v583
    %v585 = vmul.f32 %v582, 1.442695
    %v586 = vpow.pop %v585
    %v587 = vadd.f32 %v584, 1.0
    %v588 = vadd.f32 %v586, 1.0
    %v589 = vrcp.pop %v587
    %v590 = vmul.f32 %v587, %v589
    %v591 = vsub.f32 1.0, %v590
    %v592 = vmul.f32 %v589, %v591
    %v593 = vadd.f32 %v589, %v592
    %vm594 = vweird.f32 %v587
    %vm595 = vweird.f32 %v589
    %vm596 = vmor %vm594, %vm595
    %v597 = vsel %vm596, %v589, %v593
    %v598 = vand.u32 2147483647, %v587
    %vm599 = vcmp.eq.f32.partialorder %v598, 8.507059e+37
    %v600 = vand.u32 %v587, 2147483648
    %v601 = vor.u32 1.1754944e-38, %v600
    %v602 = vsel %vm599, %v601, %v597
    %v603 = vmul.f32 1.0, %v602
    %v604 = vrcp.pop %v588
    %v605 = vmul.f32 %v588, %v604
    %v606 = vsub.f32 1.0, %v605
    %v607 = vmul.f32 %v604, %v606
    %v608 = vadd.f32 %v604, %v607
    %vm609 = vweird.f32 %v588
    %vm610 = vweird.f32 %v604
    %vm611 = vmor %vm609, %vm610
    %v612 = vsel %vm611, %v604, %v608
    %v613 = vand.u32 2147483647, %v588
    %vm614 = vcmp.eq.f32.partialorder %v613, 8.507059e+37
    %v615 = vand.u32 %v588, 2147483648
    %v616 = vor.u32 1.1754944e-38, %v615
    %v617 = vsel %vm614, %v616, %v612
    %v618 = vmul.f32 1.0, %v617
    %v619 = vtanh.pop %v503
    %v620 = vtanh.pop %v504
    %v621 = vmul.f32 %v603, 0.0
    %v622 = vmul.f32 %v618, 0.0
    %625 = vrot.lane.b32.xlu0 %v619, 32
    %v626 = vpop.permute.xlu0 %625
    %627 = vrot.lane.b32.xlu0 %v620, 32
    %v628 = vpop.permute.xlu0 %627
    %v631 = vmul.f32 %v603, %v626
    %v632 = vmul.f32 %v618, %v628
    %635 = vrot.lane.b32.xlu0 %v631, 32
    %v636 = vpop.permute.xlu0 %635
    %637 = vrot.lane.b32.xlu0 %v632, 32
    %v638 = vpop.permute.xlu0 %637
    %v641 = vadd.f32 %v621, %v636
    %v642 = vadd.f32 %v622, %v638
    %v643 = vtanh.pop %v641
    %v644 = vtanh.pop %v642
    %647 = vrot.lane.b32.xlu0 %v643, 32
    %v648 = vpop.permute.xlu0 %647
    %649 = vrot.lane.b32.xlu0 %v644, 32
    %v650 = vpop.permute.xlu0 %649
    %v653 = vmul.f32 %v603, %v648
    %v654 = vmul.f32 %v618, %v650
    %v655 = vpack.c.bf16 %v653, %v653
    %v656 = vpack.c.bf16 %v654, %v654
    %659 = vrot.lane.b32.xlu0 %v579, 64
    %v660 = vpop.permute.xlu0 %659
    %661 = vrot.lane.b32.xlu0 %v580, 64
    %v662 = vpop.permute.xlu0 %661
    %vm665 = vcmask 257024
    %666 = vst.msk [vmem:[#allocation4] sm:$0xf] %vm665, %v660
    %667 = vst.msk [vmem:[#allocation4 + $0x4] sm:$0xf] %vm665, %v662
    %670 = vrot.lane.b32.xlu0 %v655, 64
    %v671 = vpop.permute.xlu0 %670
    %672 = vrot.lane.b32.xlu0 %v656, 64
    %v673 = vpop.permute.xlu0 %672
    %s676 = scalar_lea.vmem [#allocation5], 56
    %677 = vst.msk [vmem:[%s676] sm:$0xf] %vm665, %v671
    %678 = vst.msk [vmem:[%s676 + $0x4] sm:$0xf] %vm665, %v673
    %s679 = scalar_lea.vmem [#allocation2], 8
    %v680 = vld [vmem:[%s679] sm:$0xf]
    %v681 = vld [vmem:[%s679 + $0x4] sm:$0xf]
    %v682 = vunpack.c.l.bf16 %v680
    %v683 = vunpack.c.l.bf16 %v681
    %v684 = vunpack.c.l.b16 %v579
    %v685 = vunpack.c.l.b16 %v580
    %v686 = vpack.c.b16 %v685, %v684
    %687 = vrot.lane.b32.xlu0 %v686, 64
    %v688 = vpop.permute.xlu0 %687
    %v690 = vsel %vm222, %v688, 0
    %692 = vmatpush.bf16.msra.mxu0 0
    %693 = vmatpush.bf16.msra.mxu0 0
    %694 = vmatpush.bf16.msra.mxu0 0
    %695 = vmatpush.bf16.msra.mxu0 0
    %696 = vmatpush.bf16.msra.mxu0 0
    %697 = vmatpush.bf16.msra.mxu0 0
    %698 = vmatpush.bf16.msra.mxu0 %v450
    %699 = vmatpush.bf16.msra.mxu0 %v449
    %700 = vmatmul.bf16.gmra.mxu0 %v690
    %v701 = vpop.f32.mrf.mxu0
    %v702 = vadd.f32 0.0, %v701
    %v703 = vpop.f32.mrf.mxu0
    %v704 = vadd.f32 0.0, %v703
    %705 = vdwg.mxu0
    %v706 = vadd.f32 %v682, %v702
    %v707 = vadd.f32 %v683, %v704
    %s708 = scalar_lea.vmem [#allocation3], 48
    %v709 = vld [vmem:[%s708] sm:$0xf]
    %v710 = vld [vmem:[%s708 + $0x4] sm:$0xf]
    %v711 = vunpack.c.l.bf16 %v709
    %v712 = vunpack.c.l.bf16 %v710
    %v713 = vunpack.c.l.b16 %v655
    %v714 = vunpack.c.l.b16 %v656
    %v715 = vpack.c.b16 %v714, %v713
    %716 = vrot.lane.b32.xlu0 %v715, 64
    %v717 = vpop.permute.xlu0 %716
    %v719 = vsel %vm222, %v717, 0
    %721 = vmatpush.bf16.msra.mxu0 0
    %722 = vmatpush.bf16.msra.mxu0 0
    %723 = vmatpush.bf16.msra.mxu0 0
    %724 = vmatpush.bf16.msra.mxu0 0
    %725 = vmatpush.bf16.msra.mxu0 0
    %726 = vmatpush.bf16.msra.mxu0 0
    %727 = vmatpush.bf16.msra.mxu0 %v486
    %728 = vmatpush.bf16.msra.mxu0 %v485
    %729 = vmatmul.bf16.gmra.mxu0 %v719
    %v730 = vpop.f32.mrf.mxu0
    %v731 = vadd.f32 0.0, %v730
    %v732 = vpop.f32.mrf.mxu0
    %v733 = vadd.f32 0.0, %v732
    %734 = vdwg.mxu0
    %v735 = vadd.f32 %v711, %v731
    %v736 = vadd.f32 %v712, %v733
    %v737 = vxor.u32 %v706, 2147483648
    %v738 = vxor.u32 %v707, 2147483648
    %v739 = vmul.f32 %v737, 1.442695
    %v740 = vpow.pop %v739
    %v741 = vmul.f32 %v738, 1.442695
    %v742 = vpow.pop %v741
    %v743 = vadd.f32 %v740, 1.0
    %v744 = vadd.f32 %v742, 1.0
    %v745 = vrcp.pop %v743
    %v746 = vmul.f32 %v743, %v745
    %v747 = vsub.f32 1.0, %v746
    %v748 = vmul.f32 %v745, %v747
    %v749 = vadd.f32 %v745, %v748
    %vm750 = vweird.f32 %v743
    %vm751 = vweird.f32 %v745
    %vm752 = vmor %vm750, %vm751
    %v753 = vsel %vm752, %v745, %v749
    %v754 = vand.u32 2147483647, %v743
    %vm755 = vcmp.eq.f32.partialorder %v754, 8.507059e+37
    %v756 = vand.u32 %v743, 2147483648
    %v757 = vor.u32 1.1754944e-38, %v756
    %v758 = vsel %vm755, %v757, %v753
    %v759 = vmul.f32 1.0, %v758
    %v760 = vrcp.pop %v744
    %v761 = vmul.f32 %v744, %v760
    %v762 = vsub.f32 1.0, %v761
    %v763 = vmul.f32 %v760, %v762
    %v764 = vadd.f32 %v760, %v763
    %vm765 = vweird.f32 %v744
    %vm766 = vweird.f32 %v760
    %vm767 = vmor %vm765, %vm766
    %v768 = vsel %vm767, %v760, %v764
    %v769 = vand.u32 2147483647, %v744
    %vm770 = vcmp.eq.f32.partialorder %v769, 8.507059e+37
    %v771 = vand.u32 %v744, 2147483648
    %v772 = vor.u32 1.1754944e-38, %v771
    %v773 = vsel %vm770, %v772, %v768
    %v774 = vmul.f32 1.0, %v773
    %v775 = vtanh.pop %v706
    %v776 = vtanh.pop %v707
    %v777 = vmul.f32 %v759, %v565
    %v778 = vmul.f32 %v774, %v566
    %781 = vrot.lane.b32.xlu0 %v775, 32
    %v782 = vpop.permute.xlu0 %781
    %783 = vrot.lane.b32.xlu0 %v776, 32
    %v784 = vpop.permute.xlu0 %783
    %v787 = vmul.f32 %v759, %v782
    %v788 = vmul.f32 %v774, %v784
    %791 = vrot.lane.b32.xlu0 %v787, 32
    %v792 = vpop.permute.xlu0 %791
    %793 = vrot.lane.b32.xlu0 %v788, 32
    %v794 = vpop.permute.xlu0 %793
    %v797 = vadd.f32 %v777, %v792
    %v798 = vadd.f32 %v778, %v794
    %v799 = vtanh.pop %v797
    %v800 = vtanh.pop %v798
    %803 = vrot.lane.b32.xlu0 %v799, 32
    %v804 = vpop.permute.xlu0 %803
    %805 = vrot.lane.b32.xlu0 %v800, 32
    %v806 = vpop.permute.xlu0 %805
    %v809 = vmul.f32 %v759, %v804
    %v810 = vmul.f32 %v774, %v806
    %v811 = vpack.c.bf16 %v809, %v809
    %v812 = vpack.c.bf16 %v810, %v810
    %v813 = vxor.u32 %v735, 2147483648
    %v814 = vxor.u32 %v736, 2147483648
    %v815 = vmul.f32 %v813, 1.442695
    %v816 = vpow.pop %v815
    %v817 = vmul.f32 %v814, 1.442695
    %v818 = vpow.pop %v817
    %v819 = vadd.f32 %v816, 1.0
    %v820 = vadd.f32 %v818, 1.0
    %v821 = vrcp.pop %v819
    %v822 = vmul.f32 %v819, %v821
    %v823 = vsub.f32 1.0, %v822
    %v824 = vmul.f32 %v821, %v823
    %v825 = vadd.f32 %v821, %v824
    %vm826 = vweird.f32 %v819
    %vm827 = vweird.f32 %v821
    %vm828 = vmor %vm826, %vm827
    %v829 = vsel %vm828, %v821, %v825
    %v830 = vand.u32 2147483647, %v819
    %vm831 = vcmp.eq.f32.partialorder %v830, 8.507059e+37
    %v832 = vand.u32 %v819, 2147483648
    %v833 = vor.u32 1.1754944e-38, %v832
    %v834 = vsel %vm831, %v833, %v829
    %v835 = vmul.f32 1.0, %v834
    %v836 = vrcp.pop %v820
    %v837 = vmul.f32 %v820, %v836
    %v838 = vsub.f32 1.0, %v837
    %v839 = vmul.f32 %v836, %v838
    %v840 = vadd.f32 %v836, %v839
    %vm841 = vweird.f32 %v820
    %vm842 = vweird.f32 %v836
    %vm843 = vmor %vm841, %vm842
    %v844 = vsel %vm843, %v836, %v840
    %v845 = vand.u32 2147483647, %v820
    %vm846 = vcmp.eq.f32.partialorder %v845, 8.507059e+37
    %v847 = vand.u32 %v820, 2147483648
    %v848 = vor.u32 1.1754944e-38, %v847
    %v849 = vsel %vm846, %v848, %v844
    %v850 = vmul.f32 1.0, %v849
    %v851 = vtanh.pop %v735
    %v852 = vtanh.pop %v736
    %v853 = vmul.f32 %v835, %v641
    %v854 = vmul.f32 %v850, %v642
    %857 = vrot.lane.b32.xlu0 %v851, 32
    %v858 = vpop.permute.xlu0 %857
    %859 = vrot.lane.b32.xlu0 %v852, 32
    %v860 = vpop.permute.xlu0 %859
    %v863 = vmul.f32 %v835, %v858
    %v864 = vmul.f32 %v850, %v860
    %867 = vrot.lane.b32.xlu0 %v863, 32
    %v868 = vpop.permute.xlu0 %867
    %869 = vrot.lane.b32.xlu0 %v864, 32
    %v870 = vpop.permute.xlu0 %869
    %v873 = vadd.f32 %v853, %v868
    %v874 = vadd.f32 %v854, %v870
    %v875 = vtanh.pop %v873
    %v876 = vtanh.pop %v874
    %879 = vrot.lane.b32.xlu0 %v875, 32
    %v880 = vpop.permute.xlu0 %879
    %881 = vrot.lane.b32.xlu0 %v876, 32
    %v882 = vpop.permute.xlu0 %881
    %v885 = vmul.f32 %v835, %v880
    %v886 = vmul.f32 %v850, %v882
    %v887 = vpack.c.bf16 %v885, %v885
    %v888 = vpack.c.bf16 %v886, %v886
    %891 = vrot.lane.b32.xlu0 %v811, 64
    %v892 = vpop.permute.xlu0 %891
    %893 = vrot.lane.b32.xlu0 %v812, 64
    %v894 = vpop.permute.xlu0 %893
    %s897 = scalar_lea.vmem [#allocation4], 8
    %898 = vst.msk [vmem:[%s897] sm:$0xf] %vm665, %v892
    %899 = vst.msk [vmem:[%s897 + $0x4] sm:$0xf] %vm665, %v894
    %902 = vrot.lane.b32.xlu0 %v887, 64
    %v903 = vpop.permute.xlu0 %902
    %904 = vrot.lane.b32.xlu0 %v888, 64
    %v905 = vpop.permute.xlu0 %904
    %s908 = scalar_lea.vmem [#allocation5], 48
    %909 = vst.msk [vmem:[%s908] sm:$0xf] %vm665, %v903
    %910 = vst.msk [vmem:[%s908 + $0x4] sm:$0xf] %vm665, %v905
    %s911 = scalar_lea.vmem [#allocation2], 16
    %v912 = vld [vmem:[%s911] sm:$0xf]
    %v913 = vld [vmem:[%s911 + $0x4] sm:$0xf]
    %v914 = vunpack.c.l.bf16 %v912
    %v915 = vunpack.c.l.bf16 %v913
    %v916 = vunpack.c.l.b16 %v811
    %v917 = vunpack.c.l.b16 %v812
    %v918 = vpack.c.b16 %v917, %v916
    %919 = vrot.lane.b32.xlu0 %v918, 64
    %v920 = vpop.permute.xlu0 %919
    %v922 = vsel %vm222, %v920, 0
    %924 = vmatpush.bf16.msra.mxu0 0
    %925 = vmatpush.bf16.msra.mxu0 0
    %926 = vmatpush.bf16.msra.mxu0 0
    %927 = vmatpush.bf16.msra.mxu0 0
    %928 = vmatpush.bf16.msra.mxu0 0
    %929 = vmatpush.bf16.msra.mxu0 0
    %930 = vmatpush.bf16.msra.mxu0 %v450
    %931 = vmatpush.bf16.msra.mxu0 %v449
    %932 = vmatmul.bf16.gmra.mxu0 %v922
    %v933 = vpop.f32.mrf.mxu0
    %v934 = vadd.f32 0.0, %v933
    %v935 = vpop.f32.mrf.mxu0
    %v936 = vadd.f32 0.0, %v935
    %937 = vdwg.mxu0
    %v938 = vadd.f32 %v914, %v934
    %v939 = vadd.f32 %v915, %v936
    %s940 = scalar_lea.vmem [#allocation3], 40
    %v941 = vld [vmem:[%s940] sm:$0xf]
    %v942 = vld [vmem:[%s940 + $0x4] sm:$0xf]
    %v943 = vunpack.c.l.bf16 %v941
    %v944 = vunpack.c.l.bf16 %v942
    %v945 = vunpack.c.l.b16 %v887
    %v946 = vunpack.c.l.b16 %v888
    %v947 = vpack.c.b16 %v946, %v945
    %948 = vrot.lane.b32.xlu0 %v947, 64
    %v949 = vpop.permute.xlu0 %948
    %v951 = vsel %vm222, %v949, 0
    %953 = vmatpush.bf16.msra.mxu0 0
    %954 = vmatpush.bf16.msra.mxu0 0
    %955 = vmatpush.bf16.msra.mxu0 0
    %956 = vmatpush.bf16.msra.mxu0 0
    %957 = vmatpush.bf16.msra.mxu0 0
    %958 = vmatpush.bf16.msra.mxu0 0
    %959 = vmatpush.bf16.msra.mxu0 %v486
    %960 = vmatpush.bf16.msra.mxu0 %v485
    %961 = vmatmul.bf16.gmra.mxu0 %v951
    %v962 = vpop.f32.mrf.mxu0
    %v963 = vadd.f32 0.0, %v962
    %v964 = vpop.f32.mrf.mxu0
    %v965 = vadd.f32 0.0, %v964
    %966 = vdwg.mxu0
    %v967 = vadd.f32 %v943, %v963
    %v968 = vadd.f32 %v944, %v965
    %v969 = vxor.u32 %v938, 2147483648
    %v970 = vxor.u32 %v939, 2147483648
    %v971 = vmul.f32 %v969, 1.442695
    %v972 = vpow.pop %v971
    %v973 = vmul.f32 %v970, 1.442695
    %v974 = vpow.pop %v973
    %v975 = vadd.f32 %v972, 1.0
    %v976 = vadd.f32 %v974, 1.0
    %v977 = vrcp.pop %v975
    %v978 = vmul.f32 %v975, %v977
    %v979 = vsub.f32 1.0, %v978
    %v980 = vmul.f32 %v977, %v979
    %v981 = vadd.f32 %v977, %v980
    %vm982 = vweird.f32 %v975
    %vm983 = vweird.f32 %v977
    %vm984 = vmor %vm982, %vm983
    %v985 = vsel %vm984, %v977, %v981
    %v986 = vand.u32 2147483647, %v975
    %vm987 = vcmp.eq.f32.partialorder %v986, 8.507059e+37
    %v988 = vand.u32 %v975, 2147483648
    %v989 = vor.u32 1.1754944e-38, %v988
    %v990 = vsel %vm987, %v989, %v985
    %v991 = vmul.f32 1.0, %v990
    %v992 = vrcp.pop %v976
    %v993 = vmul.f32 %v976, %v992
    %v994 = vsub.f32 1.0, %v993
    %v995 = vmul.f32 %v992, %v994
    %v996 = vadd.f32 %v992, %v995
    %vm997 = vweird.f32 %v976
    %vm998 = vweird.f32 %v992
    %vm999 = vmor %vm997, %vm998
    %v1000 = vsel %vm999, %v992, %v996
    %v1001 = vand.u32 2147483647, %v976
    %vm1002 = vcmp.eq.f32.partialorder %v1001, 8.507059e+37
    %v1003 = vand.u32 %v976, 2147483648
    %v1004 = vor.u32 1.1754944e-38, %v1003
    %v1005 = vsel %vm1002, %v1004, %v1000
    %v1006 = vmul.f32 1.0, %v1005
    %v1007 = vtanh.pop %v938
    %v1008 = vtanh.pop %v939
    %v1009 = vmul.f32 %v991, %v797
    %v1010 = vmul.f32 %v1006, %v798
    %1013 = vrot.lane.b32.xlu0 %v1007, 32
    %v1014 = vpop.permute.xlu0 %1013
    %1015 = vrot.lane.b32.xlu0 %v1008, 32
    %v1016 = vpop.permute.xlu0 %1015
    %v1019 = vmul.f32 %v991, %v1014
    %v1020 = vmul.f32 %v1006, %v1016
    %1023 = vrot.lane.b32.xlu0 %v1019, 32
    %v1024 = vpop.permute.xlu0 %1023
    %1025 = vrot.lane.b32.xlu0 %v1020, 32
    %v1026 = vpop.permute.xlu0 %1025
    %v1029 = vadd.f32 %v1009, %v1024
    %v1030 = vadd.f32 %v1010, %v1026
    %v1031 = vtanh.pop %v1029
    %v1032 = vtanh.pop %v1030
    %1035 = vrot.lane.b32.xlu0 %v1031, 32
    %v1036 = vpop.permute.xlu0 %1035
    %1037 = vrot.lane.b32.xlu0 %v1032, 32
    %v1038 = vpop.permute.xlu0 %1037
    %v1041 = vmul.f32 %v991, %v1036
    %v1042 = vmul.f32 %v1006, %v1038
    %v1043 = vpack.c.bf16 %v1041, %v1041
    %v1044 = vpack.c.bf16 %v1042, %v1042
    %v1045 = vxor.u32 %v967, 2147483648
    %v1046 = vxor.u32 %v968, 2147483648
    %v1047 = vmul.f32 %v1045, 1.442695
    %v1048 = vpow.pop %v1047
    %v1049 = vmul.f32 %v1046, 1.442695
    %v1050 = vpow.pop %v1049
    %v1051 = vadd.f32 %v1048, 1.0
    %v1052 = vadd.f32 %v1050, 1.0
    %v1053 = vrcp.pop %v1051
    %v1054 = vmul.f32 %v1051, %v1053
    %v1055 = vsub.f32 1.0, %v1054
    %v1056 = vmul.f32 %v1053, %v1055
    %v1057 = vadd.f32 %v1053, %v1056
    %vm1058 = vweird.f32 %v1051
    %vm1059 = vweird.f32 %v1053
    %vm1060 = vmor %vm1058, %vm1059
    %v1061 = vsel %vm1060, %v1053, %v1057
    %v1062 = vand.u32 2147483647, %v1051
    %vm1063 = vcmp.eq.f32.partialorder %v1062, 8.507059e+37
    %v1064 = vand.u32 %v1051, 2147483648
    %v1065 = vor.u32 1.1754944e-38, %v1064
    %v1066 = vsel %vm1063, %v1065, %v1061
    %v1067 = vmul.f32 1.0, %v1066
    %v1068 = vrcp.pop %v1052
    %v1069 = vmul.f32 %v1052, %v1068
    %v1070 = vsub.f32 1.0, %v1069
    %v1071 = vmul.f32 %v1068, %v1070
    %v1072 = vadd.f32 %v1068, %v1071
    %vm1073 = vweird.f32 %v1052
    %vm1074 = vweird.f32 %v1068
    %vm1075 = vmor %vm1073, %vm1074
    %v1076 = vsel %vm1075, %v1068, %v1072
    %v1077 = vand.u32 2147483647, %v1052
    %vm1078 = vcmp.eq.f32.partialorder %v1077, 8.507059e+37
    %v1079 = vand.u32 %v1052, 2147483648
    %v1080 = vor.u32 1.1754944e-38, %v1079
    %v1081 = vsel %vm1078, %v1080, %v1076
    %v1082 = vmul.f32 1.0, %v1081
    %v1083 = vtanh.pop %v967
    %v1084 = vtanh.pop %v968
    %v1085 = vmul.f32 %v1067, %v873
    %v1086 = vmul.f32 %v1082, %v874
    %1089 = vrot.lane.b32.xlu0 %v1083, 32
    %v1090 = vpop.permute.xlu0 %1089
    %1091 = vrot.lane.b32.xlu0 %v1084, 32
    %v1092 = vpop.permute.xlu0 %1091
    %v1095 = vmul.f32 %v1067, %v1090
    %v1096 = vmul.f32 %v1082, %v1092
    %1099 = vrot.lane.b32.xlu0 %v1095, 32
    %v1100 = vpop.permute.xlu0 %1099
    %1101 = vrot.lane.b32.xlu0 %v1096, 32
    %v1102 = vpop.permute.xlu0 %1101
    %v1105 = vadd.f32 %v1085, %v1100
    %v1106 = vadd.f32 %v1086, %v1102
    %v1107 = vtanh.pop %v1105
    %v1108 = vtanh.pop %v1106
    %1111 = vrot.lane.b32.xlu0 %v1107, 32
    %v1112 = vpop.permute.xlu0 %1111
    %1113 = vrot.lane.b32.xlu0 %v1108, 32
    %v1114 = vpop.permute.xlu0 %1113
    %v1117 = vmul.f32 %v1067, %v1112
    %v1118 = vmul.f32 %v1082, %v1114
    %v1119 = vpack.c.bf16 %v1117, %v1117
    %v1120 = vpack.c.bf16 %v1118, %v1118
    %1123 = vrot.lane.b32.xlu0 %v1043, 64
    %v1124 = vpop.permute.xlu0 %1123
    %1125 = vrot.lane.b32.xlu0 %v1044, 64
    %v1126 = vpop.permute.xlu0 %1125
    %s1129 = scalar_lea.vmem [#allocation4], 16
    %1130 = vst.msk [vmem:[%s1129] sm:$0xf] %vm665, %v1124
    %1131 = vst.msk [vmem:[%s1129 + $0x4] sm:$0xf] %vm665, %v1126
    %1134 = vrot.lane.b32.xlu0 %v1119, 64
    %v1135 = vpop.permute.xlu0 %1134
    %1136 = vrot.lane.b32.xlu0 %v1120, 64
    %v1137 = vpop.permute.xlu0 %1136
    %s1140 = scalar_lea.vmem [#allocation5], 40
    %1141 = vst.msk [vmem:[%s1140] sm:$0xf] %vm665, %v1135
    %1142 = vst.msk [vmem:[%s1140 + $0x4] sm:$0xf] %vm665, %v1137
    %s1143 = scalar_lea.vmem [#allocation2], 24
    %v1144 = vld [vmem:[%s1143] sm:$0xf]
    %v1145 = vld [vmem:[%s1143 + $0x4] sm:$0xf]
    %v1146 = vunpack.c.l.bf16 %v1144
    %v1147 = vunpack.c.l.bf16 %v1145
    %v1148 = vunpack.c.l.b16 %v1043
    %v1149 = vunpack.c.l.b16 %v1044
    %v1150 = vpack.c.b16 %v1149, %v1148
    %1151 = vrot.lane.b32.xlu0 %v1150, 64
    %v1152 = vpop.permute.xlu0 %1151
    %v1154 = vsel %vm222, %v1152, 0
    %1156 = vmatpush.bf16.msra.mxu0 0
    %1157 = vmatpush.bf16.msra.mxu0 0
    %1158 = vmatpush.bf16.msra.mxu0 0
    %1159 = vmatpush.bf16.msra.mxu0 0
    %1160 = vmatpush.bf16.msra.mxu0 0
    %1161 = vmatpush.bf16.msra.mxu0 0
    %1162 = vmatpush.bf16.msra.mxu0 %v450
    %1163 = vmatpush.bf16.msra.mxu0 %v449
    %1164 = vmatmul.bf16.gmra.mxu0 %v1154
    %v1165 = vpop.f32.mrf.mxu0
    %v1166 = vadd.f32 0.0, %v1165
    %v1167 = vpop.f32.mrf.mxu0
    %v1168 = vadd.f32 0.0, %v1167
    %1169 = vdwg.mxu0
    %v1170 = vadd.f32 %v1146, %v1166
    %v1171 = vadd.f32 %v1147, %v1168
    %s1172 = scalar_lea.vmem [#allocation3], 32
    %v1173 = vld [vmem:[%s1172] sm:$0xf]
    %v1174 = vld [vmem:[%s1172 + $0x4] sm:$0xf]
    %v1175 = vunpack.c.l.bf16 %v1173
    %v1176 = vunpack.c.l.bf16 %v1174
    %v1177 = vunpack.c.l.b16 %v1119
    %v1178 = vunpack.c.l.b16 %v1120
    %v1179 = vpack.c.b16 %v1178, %v1177
    %1180 = vrot.lane.b32.xlu0 %v1179, 64
    %v1181 = vpop.permute.xlu0 %1180
    %v1183 = vsel %vm222, %v1181, 0
    %1185 = vmatpush.bf16.msra.mxu0 0
    %1186 = vmatpush.bf16.msra.mxu0 0
    %1187 = vmatpush.bf16.msra.mxu0 0
    %1188 = vmatpush.bf16.msra.mxu0 0
    %1189 = vmatpush.bf16.msra.mxu0 0
    %1190 = vmatpush.bf16.msra.mxu0 0
    %1191 = vmatpush.bf16.msra.mxu0 %v486
    %1192 = vmatpush.bf16.msra.mxu0 %v485
    %1193 = vmatmul.bf16.gmra.mxu0 %v1183
    %v1194 = vpop.f32.mrf.mxu0
    %v1195 = vadd.f32 0.0, %v1194
    %v1196 = vpop.f32.mrf.mxu0
    %v1197 = vadd.f32 0.0, %v1196
    %1198 = vdwg.mxu0
    %v1199 = vadd.f32 %v1175, %v1195
    %v1200 = vadd.f32 %v1176, %v1197
    %v1201 = vxor.u32 %v1170, 2147483648
    %v1202 = vxor.u32 %v1171, 2147483648
    %v1203 = vmul.f32 %v1201, 1.442695
    %v1204 = vpow.pop %v1203
    %v1205 = vmul.f32 %v1202, 1.442695
    %v1206 = vpow.pop %v1205
    %v1207 = vadd.f32 %v1204, 1.0
    %v1208 = vadd.f32 %v1206, 1.0
    %v1209 = vrcp.pop %v1207
    %v1210 = vmul.f32 %v1207, %v1209
    %v1211 = vsub.f32 1.0, %v1210
    %v1212 = vmul.f32 %v1209, %v1211
    %v1213 = vadd.f32 %v1209, %v1212
    %vm1214 = vweird.f32 %v1207
    %vm1215 = vweird.f32 %v1209
    %vm1216 = vmor %vm1214, %vm1215
    %v1217 = vsel %vm1216, %v1209, %v1213
    %v1218 = vand.u32 2147483647, %v1207
    %vm1219 = vcmp.eq.f32.partialorder %v1218, 8.507059e+37
    %v1220 = vand.u32 %v1207, 2147483648
    %v1221 = vor.u32 1.1754944e-38, %v1220
    %v1222 = vsel %vm1219, %v1221, %v1217
    %v1223 = vmul.f32 1.0, %v1222
    %v1224 = vrcp.pop %v1208
    %v1225 = vmul.f32 %v1208, %v1224
    %v1226 = vsub.f32 1.0, %v1225
    %v1227 = vmul.f32 %v1224, %v1226
    %v1228 = vadd.f32 %v1224, %v1227
    %vm1229 = vweird.f32 %v1208
    %vm1230 = vweird.f32 %v1224
    %vm1231 = vmor %vm1229, %vm1230
    %v1232 = vsel %vm1231, %v1224, %v1228
    %v1233 = vand.u32 2147483647, %v1208
    %vm1234 = vcmp.eq.f32.partialorder %v1233, 8.507059e+37
    %v1235 = vand.u32 %v1208, 2147483648
    %v1236 = vor.u32 1.1754944e-38, %v1235
    %v1237 = vsel %vm1234, %v1236, %v1232
    %v1238 = vmul.f32 1.0, %v1237
    %v1239 = vtanh.pop %v1170
    %v1240 = vtanh.pop %v1171
    %v1241 = vmul.f32 %v1223, %v1029
    %v1242 = vmul.f32 %v1238, %v1030
    %1245 = vrot.lane.b32.xlu0 %v1239, 32
    %v1246 = vpop.permute.xlu0 %1245
    %1247 = vrot.lane.b32.xlu0 %v1240, 32
    %v1248 = vpop.permute.xlu0 %1247
    %v1251 = vmul.f32 %v1223, %v1246
    %v1252 = vmul.f32 %v1238, %v1248
    %1255 = vrot.lane.b32.xlu0 %v1251, 32
    %v1256 = vpop.permute.xlu0 %1255
    %1257 = vrot.lane.b32.xlu0 %v1252, 32
    %v1258 = vpop.permute.xlu0 %1257
    %v1261 = vadd.f32 %v1241, %v1256
    %v1262 = vadd.f32 %v1242, %v1258
    %v1263 = vtanh.pop %v1261
    %v1264 = vtanh.pop %v1262
    %1267 = vrot.lane.b32.xlu0 %v1263, 32
    %v1268 = vpop.permute.xlu0 %1267
    %1269 = vrot.lane.b32.xlu0 %v1264, 32
    %v1270 = vpop.permute.xlu0 %1269
    %v1273 = vmul.f32 %v1223, %v1268
    %v1274 = vmul.f32 %v1238, %v1270
    %v1275 = vpack.c.bf16 %v1273, %v1273
    %v1276 = vpack.c.bf16 %v1274, %v1274
    %v1277 = vxor.u32 %v1199, 2147483648
    %v1278 = vxor.u32 %v1200, 2147483648
    %v1279 = vmul.f32 %v1277, 1.442695
    %v1280 = vpow.pop %v1279
    %v1281 = vmul.f32 %v1278, 1.442695
    %v1282 = vpow.pop %v1281
    %v1283 = vadd.f32 %v1280, 1.0
    %v1284 = vadd.f32 %v1282, 1.0
    %v1285 = vrcp.pop %v1283
    %v1286 = vmul.f32 %v1283, %v1285
    %v1287 = vsub.f32 1.0, %v1286
    %v1288 = vmul.f32 %v1285, %v1287
    %v1289 = vadd.f32 %v1285, %v1288
    %vm1290 = vweird.f32 %v1283
    %vm1291 = vweird.f32 %v1285
    %vm1292 = vmor %vm1290, %vm1291
    %v1293 = vsel %vm1292, %v1285, %v1289
    %v1294 = vand.u32 2147483647, %v1283
    %vm1295 = vcmp.eq.f32.partialorder %v1294, 8.507059e+37
    %v1296 = vand.u32 %v1283, 2147483648
    %v1297 = vor.u32 1.1754944e-38, %v1296
    %v1298 = vsel %vm1295, %v1297, %v1293
    %v1299 = vmul.f32 1.0, %v1298
    %v1300 = vrcp.pop %v1284
    %v1301 = vmul.f32 %v1284, %v1300
    %v1302 = vsub.f32 1.0, %v1301
    %v1303 = vmul.f32 %v1300, %v1302
    %v1304 = vadd.f32 %v1300, %v1303
    %vm1305 = vweird.f32 %v1284
    %vm1306 = vweird.f32 %v1300
    %vm1307 = vmor %vm1305, %vm1306
    %v1308 = vsel %vm1307, %v1300, %v1304
    %v1309 = vand.u32 2147483647, %v1284
    %vm1310 = vcmp.eq.f32.partialorder %v1309, 8.507059e+37
    %v1311 = vand.u32 %v1284, 2147483648
    %v1312 = vor.u32 1.1754944e-38, %v1311
    %v1313 = vsel %vm1310, %v1312, %v1308
    %v1314 = vmul.f32 1.0, %v1313
    %v1315 = vtanh.pop %v1199
    %v1316 = vtanh.pop %v1200
    %v1317 = vmul.f32 %v1299, %v1105
    %v1318 = vmul.f32 %v1314, %v1106
    %1321 = vrot.lane.b32.xlu0 %v1315, 32
    %v1322 = vpop.permute.xlu0 %1321
    %1323 = vrot.lane.b32.xlu0 %v1316, 32
    %v1324 = vpop.permute.xlu0 %1323
    %v1327 = vmul.f32 %v1299, %v1322
    %v1328 = vmul.f32 %v1314, %v1324
    %1331 = vrot.lane.b32.xlu0 %v1327, 32
    %v1332 = vpop.permute.xlu0 %1331
    %1333 = vrot.lane.b32.xlu0 %v1328, 32
    %v1334 = vpop.permute.xlu0 %1333
    %v1337 = vadd.f32 %v1317, %v1332
    %v1338 = vadd.f32 %v1318, %v1334
    %v1339 = vtanh.pop %v1337
    %v1340 = vtanh.pop %v1338
    %1343 = vrot.lane.b32.xlu0 %v1339, 32
    %v1344 = vpop.permute.xlu0 %1343
    %1345 = vrot.lane.b32.xlu0 %v1340, 32
    %v1346 = vpop.permute.xlu0 %1345
    %v1349 = vmul.f32 %v1299, %v1344
    %v1350 = vmul.f32 %v1314, %v1346
    %v1351 = vpack.c.bf16 %v1349, %v1349
    %v1352 = vpack.c.bf16 %v1350, %v1350
    %1355 = vrot.lane.b32.xlu0 %v1275, 64
    %v1356 = vpop.permute.xlu0 %1355
    %1357 = vrot.lane.b32.xlu0 %v1276, 64
    %v1358 = vpop.permute.xlu0 %1357
    %s1361 = scalar_lea.vmem [#allocation4], 24
    %1362 = vst.msk [vmem:[%s1361] sm:$0xf] %vm665, %v1356
    %1363 = vst.msk [vmem:[%s1361 + $0x4] sm:$0xf] %vm665, %v1358
    %1366 = vrot.lane.b32.xlu0 %v1351, 64
    %v1367 = vpop.permute.xlu0 %1366
    %1368 = vrot.lane.b32.xlu0 %v1352, 64
    %v1369 = vpop.permute.xlu0 %1368
    %s1372 = scalar_lea.vmem [#allocation5], 32
    %1373 = vst.msk [vmem:[%s1372] sm:$0xf] %vm665, %v1367
    %1374 = vst.msk [vmem:[%s1372 + $0x4] sm:$0xf] %vm665, %v1369
    %s1375 = scalar_lea.vmem [#allocation2], 32
    %v1376 = vld [vmem:[%s1375] sm:$0xf]
    %v1377 = vld [vmem:[%s1375 + $0x4] sm:$0xf]
    %v1378 = vunpack.c.l.bf16 %v1376
    %v1379 = vunpack.c.l.bf16 %v1377
    %v1380 = vunpack.c.l.b16 %v1275
    %v1381 = vunpack.c.l.b16 %v1276
    %v1382 = vpack.c.b16 %v1381, %v1380
    %1383 = vrot.lane.b32.xlu0 %v1382, 64
    %v1384 = vpop.permute.xlu0 %1383
    %v1386 = vsel %vm222, %v1384, 0
    %1388 = vmatpush.bf16.msra.mxu0 0
    %1389 = vmatpush.bf16.msra.mxu0 0
    %1390 = vmatpush.bf16.msra.mxu0 0
    %1391 = vmatpush.bf16.msra.mxu0 0
    %1392 = vmatpush.bf16.msra.mxu0 0
    %1393 = vmatpush.bf16.msra.mxu0 0
    %1394 = vmatpush.bf16.msra.mxu0 %v450
    %1395 = vmatpush.bf16.msra.mxu0 %v449
    %1396 = vmatmul.bf16.gmra.mxu0 %v1386
    %v1397 = vpop.f32.mrf.mxu0
    %v1398 = vadd.f32 0.0, %v1397
    %v1399 = vpop.f32.mrf.mxu0
    %v1400 = vadd.f32 0.0, %v1399
    %1401 = vdwg.mxu0
    %v1402 = vadd.f32 %v1378, %v1398
    %v1403 = vadd.f32 %v1379, %v1400
    %s1404 = scalar_lea.vmem [#allocation3], 24
    %v1405 = vld [vmem:[%s1404] sm:$0xf]
    %v1406 = vld [vmem:[%s1404 + $0x4] sm:$0xf]
    %v1407 = vunpack.c.l.bf16 %v1405
    %v1408 = vunpack.c.l.bf16 %v1406
    %v1409 = vunpack.c.l.b16 %v1351
    %v1410 = vunpack.c.l.b16 %v1352
    %v1411 = vpack.c.b16 %v1410, %v1409
    %1412 = vrot.lane.b32.xlu0 %v1411, 64
    %v1413 = vpop.permute.xlu0 %1412
    %v1415 = vsel %vm222, %v1413, 0
    %1417 = vmatpush.bf16.msra.mxu0 0
    %1418 = vmatpush.bf16.msra.mxu0 0
    %1419 = vmatpush.bf16.msra.mxu0 0
    %1420 = vmatpush.bf16.msra.mxu0 0
    %1421 = vmatpush.bf16.msra.mxu0 0
    %1422 = vmatpush.bf16.msra.mxu0 0
    %1423 = vmatpush.bf16.msra.mxu0 %v486
    %1424 = vmatpush.bf16.msra.mxu0 %v485
    %1425 = vmatmul.bf16.gmra.mxu0 %v1415
    %v1426 = vpop.f32.mrf.mxu0
    %v1427 = vadd.f32 0.0, %v1426
    %v1428 = vpop.f32.mrf.mxu0
    %v1429 = vadd.f32 0.0, %v1428
    %1430 = vdwg.mxu0
    %v1431 = vadd.f32 %v1407, %v1427
    %v1432 = vadd.f32 %v1408, %v1429
    %v1433 = vxor.u32 %v1402, 2147483648
    %v1434 = vxor.u32 %v1403, 2147483648
    %v1435 = vmul.f32 %v1433, 1.442695
    %v1436 = vpow.pop %v1435
    %v1437 = vmul.f32 %v1434, 1.442695
    %v1438 = vpow.pop %v1437
    %v1439 = vadd.f32 %v1436, 1.0
    %v1440 = vadd.f32 %v1438, 1.0
    %v1441 = vrcp.pop %v1439
    %v1442 = vmul.f32 %v1439, %v1441
    %v1443 = vsub.f32 1.0, %v1442
    %v1444 = vmul.f32 %v1441, %v1443
    %v1445 = vadd.f32 %v1441, %v1444
    %vm1446 = vweird.f32 %v1439
    %vm1447 = vweird.f32 %v1441
    %vm1448 = vmor %vm1446, %vm1447
    %v1449 = vsel %vm1448, %v1441, %v1445
    %v1450 = vand.u32 2147483647, %v1439
    %vm1451 = vcmp.eq.f32.partialorder %v1450, 8.507059e+37
    %v1452 = vand.u32 %v1439, 2147483648
    %v1453 = vor.u32 1.1754944e-38, %v1452
    %v1454 = vsel %vm1451, %v1453, %v1449
    %v1455 = vmul.f32 1.0, %v1454
    %v1456 = vrcp.pop %v1440
    %v1457 = vmul.f32 %v1440, %v1456
    %v1458 = vsub.f32 1.0, %v1457
    %v1459 = vmul.f32 %v1456, %v1458
    %v1460 = vadd.f32 %v1456, %v1459
    %vm1461 = vweird.f32 %v1440
    %vm1462 = vweird.f32 %v1456
    %vm1463 = vmor %vm1461, %vm1462
    %v1464 = vsel %vm1463, %v1456, %v1460
    %v1465 = vand.u32 2147483647, %v1440
    %vm1466 = vcmp.eq.f32.partialorder %v1465, 8.507059e+37
    %v1467 = vand.u32 %v1440, 2147483648
    %v1468 = vor.u32 1.1754944e-38, %v1467
    %v1469 = vsel %vm1466, %v1468, %v1464
    %v1470 = vmul.f32 1.0, %v1469
    %v1471 = vtanh.pop %v1402
    %v1472 = vtanh.pop %v1403
    %v1473 = vmul.f32 %v1455, %v1261
    %v1474 = vmul.f32 %v1470, %v1262
    %1477 = vrot.lane.b32.xlu0 %v1471, 32
    %v1478 = vpop.permute.xlu0 %1477
    %1479 = vrot.lane.b32.xlu0 %v1472, 32
    %v1480 = vpop.permute.xlu0 %1479
    %v1483 = vmul.f32 %v1455, %v1478
    %v1484 = vmul.f32 %v1470, %v1480
    %1487 = vrot.lane.b32.xlu0 %v1483, 32
    %v1488 = vpop.permute.xlu0 %1487
    %1489 = vrot.lane.b32.xlu0 %v1484, 32
    %v1490 = vpop.permute.xlu0 %1489
    %v1493 = vadd.f32 %v1473, %v1488
    %v1494 = vadd.f32 %v1474, %v1490
    %v1495 = vtanh.pop %v1493
    %v1496 = vtanh.pop %v1494
    %1499 = vrot.lane.b32.xlu0 %v1495, 32
    %v1500 = vpop.permute.xlu0 %1499
    %1501 = vrot.lane.b32.xlu0 %v1496, 32
    %v1502 = vpop.permute.xlu0 %1501
    %v1505 = vmul.f32 %v1455, %v1500
    %v1506 = vmul.f32 %v1470, %v1502
    %v1507 = vpack.c.bf16 %v1505, %v1505
    %v1508 = vpack.c.bf16 %v1506, %v1506
    %v1509 = vxor.u32 %v1431, 2147483648
    %v1510 = vxor.u32 %v1432, 2147483648
    %v1511 = vmul.f32 %v1509, 1.442695
    %v1512 = vpow.pop %v1511
    %v1513 = vmul.f32 %v1510, 1.442695
    %v1514 = vpow.pop %v1513
    %v1515 = vadd.f32 %v1512, 1.0
    %v1516 = vadd.f32 %v1514, 1.0
    %v1517 = vrcp.pop %v1515
    %v1518 = vmul.f32 %v1515, %v1517
    %v1519 = vsub.f32 1.0, %v1518
    %v1520 = vmul.f32 %v1517, %v1519
    %v1521 = vadd.f32 %v1517, %v1520
    %vm1522 = vweird.f32 %v1515
    %vm1523 = vweird.f32 %v1517
    %vm1524 = vmor %vm1522, %vm1523
    %v1525 = vsel %vm1524, %v1517, %v1521
    %v1526 = vand.u32 2147483647, %v1515
    %vm1527 = vcmp.eq.f32.partialorder %v1526, 8.507059e+37
    %v1528 = vand.u32 %v1515, 2147483648
    %v1529 = vor.u32 1.1754944e-38, %v1528
    %v1530 = vsel %vm1527, %v1529, %v1525
    %v1531 = vmul.f32 1.0, %v1530
    %v1532 = vrcp.pop %v1516
    %v1533 = vmul.f32 %v1516, %v1532
    %v1534 = vsub.f32 1.0, %v1533
    %v1535 = vmul.f32 %v1532, %v1534
    %v1536 = vadd.f32 %v1532, %v1535
    %vm1537 = vweird.f32 %v1516
    %vm1538 = vweird.f32 %v1532
    %vm1539 = vmor %vm1537, %vm1538
    %v1540 = vsel %vm1539, %v1532, %v1536
    %v1541 = vand.u32 2147483647, %v1516
    %vm1542 = vcmp.eq.f32.partialorder %v1541, 8.507059e+37
    %v1543 = vand.u32 %v1516, 2147483648
    %v1544 = vor.u32 1.1754944e-38, %v1543
    %v1545 = vsel %vm1542, %v1544, %v1540
    %v1546 = vmul.f32 1.0, %v1545
    %v1547 = vtanh.pop %v1431
    %v1548 = vtanh.pop %v1432
    %v1549 = vmul.f32 %v1531, %v1337
    %v1550 = vmul.f32 %v1546, %v1338
    %1553 = vrot.lane.b32.xlu0 %v1547, 32
    %v1554 = vpop.permute.xlu0 %1553
    %1555 = vrot.lane.b32.xlu0 %v1548, 32
    %v1556 = vpop.permute.xlu0 %1555
    %v1559 = vmul.f32 %v1531, %v1554
    %v1560 = vmul.f32 %v1546, %v1556
    %1563 = vrot.lane.b32.xlu0 %v1559, 32
    %v1564 = vpop.permute.xlu0 %1563
    %1565 = vrot.lane.b32.xlu0 %v1560, 32
    %v1566 = vpop.permute.xlu0 %1565
    %v1569 = vadd.f32 %v1549, %v1564
    %v1570 = vadd.f32 %v1550, %v1566
    %v1571 = vtanh.pop %v1569
    %v1572 = vtanh.pop %v1570
    %1575 = vrot.lane.b32.xlu0 %v1571, 32
    %v1576 = vpop.permute.xlu0 %1575
    %1577 = vrot.lane.b32.xlu0 %v1572, 32
    %v1578 = vpop.permute.xlu0 %1577
    %v1581 = vmul.f32 %v1531, %v1576
    %v1582 = vmul.f32 %v1546, %v1578
    %v1583 = vpack.c.bf16 %v1581, %v1581
    %v1584 = vpack.c.bf16 %v1582, %v1582
    %1587 = vrot.lane.b32.xlu0 %v1507, 64
    %v1588 = vpop.permute.xlu0 %1587
    %1589 = vrot.lane.b32.xlu0 %v1508, 64
    %v1590 = vpop.permute.xlu0 %1589
    %s1593 = scalar_lea.vmem [#allocation4], 32
    %1594 = vst.msk [vmem:[%s1593] sm:$0xf] %vm665, %v1588
    %1595 = vst.msk [vmem:[%s1593 + $0x4] sm:$0xf] %vm665, %v1590
    %1598 = vrot.lane.b32.xlu0 %v1583, 64
    %v1599 = vpop.permute.xlu0 %1598
    %1600 = vrot.lane.b32.xlu0 %v1584, 64
    %v1601 = vpop.permute.xlu0 %1600
    %s1604 = scalar_lea.vmem [#allocation5], 24
    %1605 = vst.msk [vmem:[%s1604] sm:$0xf] %vm665, %v1599
    %1606 = vst.msk [vmem:[%s1604 + $0x4] sm:$0xf] %vm665, %v1601
    %s1607 = scalar_lea.vmem [#allocation2], 40
    %v1608 = vld [vmem:[%s1607] sm:$0xf]
    %v1609 = vld [vmem:[%s1607 + $0x4] sm:$0xf]
    %v1610 = vunpack.c.l.bf16 %v1608
    %v1611 = vunpack.c.l.bf16 %v1609
    %v1612 = vunpack.c.l.b16 %v1507
    %v1613 = vunpack.c.l.b16 %v1508
    %v1614 = vpack.c.b16 %v1613, %v1612
    %1615 = vrot.lane.b32.xlu0 %v1614, 64
    %v1616 = vpop.permute.xlu0 %1615
    %v1618 = vsel %vm222, %v1616, 0
    %1620 = vmatpush.bf16.msra.mxu0 0
    %1621 = vmatpush.bf16.msra.mxu0 0
    %1622 = vmatpush.bf16.msra.mxu0 0
    %1623 = vmatpush.bf16.msra.mxu0 0
    %1624 = vmatpush.bf16.msra.mxu0 0
    %1625 = vmatpush.bf16.msra.mxu0 0
    %1626 = vmatpush.bf16.msra.mxu0 %v450
    %1627 = vmatpush.bf16.msra.mxu0 %v449
    %1628 = vmatmul.bf16.gmra.mxu0 %v1618
    %v1629 = vpop.f32.mrf.mxu0
    %v1630 = vadd.f32 0.0, %v1629
    %v1631 = vpop.f32.mrf.mxu0
    %v1632 = vadd.f32 0.0, %v1631
    %1633 = vdwg.mxu0
    %v1634 = vadd.f32 %v1610, %v1630
    %v1635 = vadd.f32 %v1611, %v1632
    %s1636 = scalar_lea.vmem [#allocation3], 16
    %v1637 = vld [vmem:[%s1636] sm:$0xf]
    %v1638 = vld [vmem:[%s1636 + $0x4] sm:$0xf]
    %v1639 = vunpack.c.l.bf16 %v1637
    %v1640 = vunpack.c.l.bf16 %v1638
    %v1641 = vunpack.c.l.b16 %v1583
    %v1642 = vunpack.c.l.b16 %v1584
    %v1643 = vpack.c.b16 %v1642, %v1641
    %1644 = vrot.lane.b32.xlu0 %v1643, 64
    %v1645 = vpop.permute.xlu0 %1644
    %v1647 = vsel %vm222, %v1645, 0
    %1649 = vmatpush.bf16.msra.mxu0 0
    %1650 = vmatpush.bf16.msra.mxu0 0
    %1651 = vmatpush.bf16.msra.mxu0 0
    %1652 = vmatpush.bf16.msra.mxu0 0
    %1653 = vmatpush.bf16.msra.mxu0 0
    %1654 = vmatpush.bf16.msra.mxu0 0
    %1655 = vmatpush.bf16.msra.mxu0 %v486
    %1656 = vmatpush.bf16.msra.mxu0 %v485
    %1657 = vmatmul.bf16.gmra.mxu0 %v1647
    %v1658 = vpop.f32.mrf.mxu0
    %v1659 = vadd.f32 0.0, %v1658
    %v1660 = vpop.f32.mrf.mxu0
    %v1661 = vadd.f32 0.0, %v1660
    %1662 = vdwg.mxu0
    %v1663 = vadd.f32 %v1639, %v1659
    %v1664 = vadd.f32 %v1640, %v1661
    %v1665 = vxor.u32 %v1634, 2147483648
    %v1666 = vxor.u32 %v1635, 2147483648
    %v1667 = vmul.f32 %v1665, 1.442695
    %v1668 = vpow.pop %v1667
    %v1669 = vmul.f32 %v1666, 1.442695
    %v1670 = vpow.pop %v1669
    %v1671 = vadd.f32 %v1668, 1.0
    %v1672 = vadd.f32 %v1670, 1.0
    %v1673 = vrcp.pop %v1671
    %v1674 = vmul.f32 %v1671, %v1673
    %v1675 = vsub.f32 1.0, %v1674
    %v1676 = vmul.f32 %v1673, %v1675
    %v1677 = vadd.f32 %v1673, %v1676
    %vm1678 = vweird.f32 %v1671
    %vm1679 = vweird.f32 %v1673
    %vm1680 = vmor %vm1678, %vm1679
    %v1681 = vsel %vm1680, %v1673, %v1677
    %v1682 = vand.u32 2147483647, %v1671
    %vm1683 = vcmp.eq.f32.partialorder %v1682, 8.507059e+37
    %v1684 = vand.u32 %v1671, 2147483648
    %v1685 = vor.u32 1.1754944e-38, %v1684
    %v1686 = vsel %vm1683, %v1685, %v1681
    %v1687 = vmul.f32 1.0, %v1686
    %v1688 = vrcp.pop %v1672
    %v1689 = vmul.f32 %v1672, %v1688
    %v1690 = vsub.f32 1.0, %v1689
    %v1691 = vmul.f32 %v1688, %v1690
    %v1692 = vadd.f32 %v1688, %v1691
    %vm1693 = vweird.f32 %v1672
    %vm1694 = vweird.f32 %v1688
    %vm1695 = vmor %vm1693, %vm1694
    %v1696 = vsel %vm1695, %v1688, %v1692
    %v1697 = vand.u32 2147483647, %v1672
    %vm1698 = vcmp.eq.f32.partialorder %v1697, 8.507059e+37
    %v1699 = vand.u32 %v1672, 2147483648
    %v1700 = vor.u32 1.1754944e-38, %v1699
    %v1701 = vsel %vm1698, %v1700, %v1696
    %v1702 = vmul.f32 1.0, %v1701
    %v1703 = vtanh.pop %v1634
    %v1704 = vtanh.pop %v1635
    %v1705 = vmul.f32 %v1687, %v1493
    %v1706 = vmul.f32 %v1702, %v1494
    %1709 = vrot.lane.b32.xlu0 %v1703, 32
    %v1710 = vpop.permute.xlu0 %1709
    %1711 = vrot.lane.b32.xlu0 %v1704, 32
    %v1712 = vpop.permute.xlu0 %1711
    %v1715 = vmul.f32 %v1687, %v1710
    %v1716 = vmul.f32 %v1702, %v1712
    %1719 = vrot.lane.b32.xlu0 %v1715, 32
    %v1720 = vpop.permute.xlu0 %1719
    %1721 = vrot.lane.b32.xlu0 %v1716, 32
    %v1722 = vpop.permute.xlu0 %1721
    %v1725 = vadd.f32 %v1705, %v1720
    %v1726 = vadd.f32 %v1706, %v1722
    %v1727 = vtanh.pop %v1725
    %v1728 = vtanh.pop %v1726
    %1731 = vrot.lane.b32.xlu0 %v1727, 32
    %v1732 = vpop.permute.xlu0 %1731
    %1733 = vrot.lane.b32.xlu0 %v1728, 32
    %v1734 = vpop.permute.xlu0 %1733
    %v1737 = vmul.f32 %v1687, %v1732
    %v1738 = vmul.f32 %v1702, %v1734
    %v1739 = vpack.c.bf16 %v1737, %v1737
    %v1740 = vpack.c.bf16 %v1738, %v1738
    %v1741 = vxor.u32 %v1663, 2147483648
    %v1742 = vxor.u32 %v1664, 2147483648
    %v1743 = vmul.f32 %v1741, 1.442695
    %v1744 = vpow.pop %v1743
    %v1745 = vmul.f32 %v1742, 1.442695
    %v1746 = vpow.pop %v1745
    %v1747 = vadd.f32 %v1744, 1.0
    %v1748 = vadd.f32 %v1746, 1.0
    %v1749 = vrcp.pop %v1747
    %v1750 = vmul.f32 %v1747, %v1749
    %v1751 = vsub.f32 1.0, %v1750
    %v1752 = vmul.f32 %v1749, %v1751
    %v1753 = vadd.f32 %v1749, %v1752
    %vm1754 = vweird.f32 %v1747
    %vm1755 = vweird.f32 %v1749
    %vm1756 = vmor %vm1754, %vm1755
    %v1757 = vsel %vm1756, %v1749, %v1753
    %v1758 = vand.u32 2147483647, %v1747
    %vm1759 = vcmp.eq.f32.partialorder %v1758, 8.507059e+37
    %v1760 = vand.u32 %v1747, 2147483648
    %v1761 = vor.u32 1.1754944e-38, %v1760
    %v1762 = vsel %vm1759, %v1761, %v1757
    %v1763 = vmul.f32 1.0, %v1762
    %v1764 = vrcp.pop %v1748
    %v1765 = vmul.f32 %v1748, %v1764
    %v1766 = vsub.f32 1.0, %v1765
    %v1767 = vmul.f32 %v1764, %v1766
    %v1768 = vadd.f32 %v1764, %v1767
    %vm1769 = vweird.f32 %v1748
    %vm1770 = vweird.f32 %v1764
    %vm1771 = vmor %vm1769, %vm1770
    %v1772 = vsel %vm1771, %v1764, %v1768
    %v1773 = vand.u32 2147483647, %v1748
    %vm1774 = vcmp.eq.f32.partialorder %v1773, 8.507059e+37
    %v1775 = vand.u32 %v1748, 2147483648
    %v1776 = vor.u32 1.1754944e-38, %v1775
    %v1777 = vsel %vm1774, %v1776, %v1772
    %v1778 = vmul.f32 1.0, %v1777
    %v1779 = vtanh.pop %v1663
    %v1780 = vtanh.pop %v1664
    %v1781 = vmul.f32 %v1763, %v1569
    %v1782 = vmul.f32 %v1778, %v1570
    %1785 = vrot.lane.b32.xlu0 %v1779, 32
    %v1786 = vpop.permute.xlu0 %1785
    %1787 = vrot.lane.b32.xlu0 %v1780, 32
    %v1788 = vpop.permute.xlu0 %1787
    %v1791 = vmul.f32 %v1763, %v1786
    %v1792 = vmul.f32 %v1778, %v1788
    %1795 = vrot.lane.b32.xlu0 %v1791, 32
    %v1796 = vpop.permute.xlu0 %1795
    %1797 = vrot.lane.b32.xlu0 %v1792, 32
    %v1798 = vpop.permute.xlu0 %1797
    %v1801 = vadd.f32 %v1781, %v1796
    %v1802 = vadd.f32 %v1782, %v1798
    %v1803 = vtanh.pop %v1801
    %v1804 = vtanh.pop %v1802
    %1807 = vrot.lane.b32.xlu0 %v1803, 32
    %v1808 = vpop.permute.xlu0 %1807
    %1809 = vrot.lane.b32.xlu0 %v1804, 32
    %v1810 = vpop.permute.xlu0 %1809
    %v1813 = vmul.f32 %v1763, %v1808
    %v1814 = vmul.f32 %v1778, %v1810
    %v1815 = vpack.c.bf16 %v1813, %v1813
    %v1816 = vpack.c.bf16 %v1814, %v1814
    %1819 = vrot.lane.b32.xlu0 %v1739, 64
    %v1820 = vpop.permute.xlu0 %1819
    %1821 = vrot.lane.b32.xlu0 %v1740, 64
    %v1822 = vpop.permute.xlu0 %1821
    %s1825 = scalar_lea.vmem [#allocation4], 40
    %1826 = vst.msk [vmem:[%s1825] sm:$0xf] %vm665, %v1820
    %1827 = vst.msk [vmem:[%s1825 + $0x4] sm:$0xf] %vm665, %v1822
    %1830 = vrot.lane.b32.xlu0 %v1815, 64
    %v1831 = vpop.permute.xlu0 %1830
    %1832 = vrot.lane.b32.xlu0 %v1816, 64
    %v1833 = vpop.permute.xlu0 %1832
    %s1836 = scalar_lea.vmem [#allocation5], 16
    %1837 = vst.msk [vmem:[%s1836] sm:$0xf] %vm665, %v1831
    %1838 = vst.msk [vmem:[%s1836 + $0x4] sm:$0xf] %vm665, %v1833
    %s1839 = scalar_lea.vmem [#allocation2], 48
    %v1840 = vld [vmem:[%s1839] sm:$0xf]
    %v1841 = vld [vmem:[%s1839 + $0x4] sm:$0xf]
    %v1842 = vunpack.c.l.bf16 %v1840
    %v1843 = vunpack.c.l.bf16 %v1841
    %v1844 = vunpack.c.l.b16 %v1739
    %v1845 = vunpack.c.l.b16 %v1740
    %v1846 = vpack.c.b16 %v1845, %v1844
    %1847 = vrot.lane.b32.xlu0 %v1846, 64
    %v1848 = vpop.permute.xlu0 %1847
    %v1850 = vsel %vm222, %v1848, 0
    %1852 = vmatpush.bf16.msra.mxu0 0
    %1853 = vmatpush.bf16.msra.mxu0 0
    %1854 = vmatpush.bf16.msra.mxu0 0
    %1855 = vmatpush.bf16.msra.mxu0 0
    %1856 = vmatpush.bf16.msra.mxu0 0
    %1857 = vmatpush.bf16.msra.mxu0 0
    %1858 = vmatpush.bf16.msra.mxu0 %v450
    %1859 = vmatpush.bf16.msra.mxu0 %v449
    %1860 = vmatmul.bf16.gmra.mxu0 %v1850
    %v1861 = vpop.f32.mrf.mxu0
    %v1862 = vadd.f32 0.0, %v1861
    %v1863 = vpop.f32.mrf.mxu0
    %v1864 = vadd.f32 0.0, %v1863
    %1865 = vdwg.mxu0
    %v1866 = vadd.f32 %v1842, %v1862
    %v1867 = vadd.f32 %v1843, %v1864
    %s1868 = scalar_lea.vmem [#allocation3], 8
    %v1869 = vld [vmem:[%s1868] sm:$0xf]
    %v1870 = vld [vmem:[%s1868 + $0x4] sm:$0xf]
    %v1871 = vunpack.c.l.bf16 %v1869
    %v1872 = vunpack.c.l.bf16 %v1870
    %v1873 = vunpack.c.l.b16 %v1815
    %v1874 = vunpack.c.l.b16 %v1816
    %v1875 = vpack.c.b16 %v1874, %v1873
    %1876 = vrot.lane.b32.xlu0 %v1875, 64
    %v1877 = vpop.permute.xlu0 %1876
    %v1879 = vsel %vm222, %v1877, 0
    %1881 = vmatpush.bf16.msra.mxu0 0
    %1882 = vmatpush.bf16.msra.mxu0 0
    %1883 = vmatpush.bf16.msra.mxu0 0
    %1884 = vmatpush.bf16.msra.mxu0 0
    %1885 = vmatpush.bf16.msra.mxu0 0
    %1886 = vmatpush.bf16.msra.mxu0 0
    %1887 = vmatpush.bf16.msra.mxu0 %v486
    %1888 = vmatpush.bf16.msra.mxu0 %v485
    %1889 = vmatmul.bf16.gmra.mxu0 %v1879
    %v1890 = vpop.f32.mrf.mxu0
    %v1891 = vadd.f32 0.0, %v1890
    %v1892 = vpop.f32.mrf.mxu0
    %v1893 = vadd.f32 0.0, %v1892
    %1894 = vdwg.mxu0
    %v1895 = vadd.f32 %v1871, %v1891
    %v1896 = vadd.f32 %v1872, %v1893
    %v1897 = vxor.u32 %v1866, 2147483648
    %v1898 = vxor.u32 %v1867, 2147483648
    %v1899 = vmul.f32 %v1897, 1.442695
    %v1900 = vpow.pop %v1899
    %v1901 = vmul.f32 %v1898, 1.442695
    %v1902 = vpow.pop %v1901
    %v1903 = vadd.f32 %v1900, 1.0
    %v1904 = vadd.f32 %v1902, 1.0
    %v1905 = vrcp.pop %v1903
    %v1906 = vmul.f32 %v1903, %v1905
    %v1907 = vsub.f32 1.0, %v1906
    %v1908 = vmul.f32 %v1905, %v1907
    %v1909 = vadd.f32 %v1905, %v1908
    %vm1910 = vweird.f32 %v1903
    %vm1911 = vweird.f32 %v1905
    %vm1912 = vmor %vm1910, %vm1911
    %v1913 = vsel %vm1912, %v1905, %v1909
    %v1914 = vand.u32 2147483647, %v1903
    %vm1915 = vcmp.eq.f32.partialorder %v1914, 8.507059e+37
    %v1916 = vand.u32 %v1903, 2147483648
    %v1917 = vor.u32 1.1754944e-38, %v1916
    %v1918 = vsel %vm1915, %v1917, %v1913
    %v1919 = vmul.f32 1.0, %v1918
    %v1920 = vrcp.pop %v1904
    %v1921 = vmul.f32 %v1904, %v1920
    %v1922 = vsub.f32 1.0, %v1921
    %v1923 = vmul.f32 %v1920, %v1922
    %v1924 = vadd.f32 %v1920, %v1923
    %vm1925 = vweird.f32 %v1904
    %vm1926 = vweird.f32 %v1920
    %vm1927 = vmor %vm1925, %vm1926
    %v1928 = vsel %vm1927, %v1920, %v1924
    %v1929 = vand.u32 2147483647, %v1904
    %vm1930 = vcmp.eq.f32.partialorder %v1929, 8.507059e+37
    %v1931 = vand.u32 %v1904, 2147483648
    %v1932 = vor.u32 1.1754944e-38, %v1931
    %v1933 = vsel %vm1930, %v1932, %v1928
    %v1934 = vmul.f32 1.0, %v1933
    %v1935 = vtanh.pop %v1866
    %v1936 = vtanh.pop %v1867
    %v1937 = vmul.f32 %v1919, %v1725
    %v1938 = vmul.f32 %v1934, %v1726
    %1941 = vrot.lane.b32.xlu0 %v1935, 32
    %v1942 = vpop.permute.xlu0 %1941
    %1943 = vrot.lane.b32.xlu0 %v1936, 32
    %v1944 = vpop.permute.xlu0 %1943
    %v1947 = vmul.f32 %v1919, %v1942
    %v1948 = vmul.f32 %v1934, %v1944
    %1951 = vrot.lane.b32.xlu0 %v1947, 32
    %v1952 = vpop.permute.xlu0 %1951
    %1953 = vrot.lane.b32.xlu0 %v1948, 32
    %v1954 = vpop.permute.xlu0 %1953
    %v1957 = vadd.f32 %v1937, %v1952
    %v1958 = vadd.f32 %v1938, %v1954
    %v1959 = vtanh.pop %v1957
    %v1960 = vtanh.pop %v1958
    %1963 = vrot.lane.b32.xlu0 %v1959, 32
    %v1964 = vpop.permute.xlu0 %1963
    %1965 = vrot.lane.b32.xlu0 %v1960, 32
    %v1966 = vpop.permute.xlu0 %1965
    %v1969 = vmul.f32 %v1919, %v1964
    %v1970 = vmul.f32 %v1934, %v1966
    %v1971 = vpack.c.bf16 %v1969, %v1969
    %v1972 = vpack.c.bf16 %v1970, %v1970
    %v1973 = vxor.u32 %v1895, 2147483648
    %v1974 = vxor.u32 %v1896, 2147483648
    %v1975 = vmul.f32 %v1973, 1.442695
    %v1976 = vpow.pop %v1975
    %v1977 = vmul.f32 %v1974, 1.442695
    %v1978 = vpow.pop %v1977
    %v1979 = vadd.f32 %v1976, 1.0
    %v1980 = vadd.f32 %v1978, 1.0
    %v1981 = vrcp.pop %v1979
    %v1982 = vmul.f32 %v1979, %v1981
    %v1983 = vsub.f32 1.0, %v1982
    %v1984 = vmul.f32 %v1981, %v1983
    %v1985 = vadd.f32 %v1981, %v1984
    %vm1986 = vweird.f32 %v1979
    %vm1987 = vweird.f32 %v1981
    %vm1988 = vmor %vm1986, %vm1987
    %v1989 = vsel %vm1988, %v1981, %v1985
    %v1990 = vand.u32 2147483647, %v1979
    %vm1991 = vcmp.eq.f32.partialorder %v1990, 8.507059e+37
    %v1992 = vand.u32 %v1979, 2147483648
    %v1993 = vor.u32 1.1754944e-38, %v1992
    %v1994 = vsel %vm1991, %v1993, %v1989
    %v1995 = vmul.f32 1.0, %v1994
    %v1996 = vrcp.pop %v1980
    %v1997 = vmul.f32 %v1980, %v1996
    %v1998 = vsub.f32 1.0, %v1997
    %v1999 = vmul.f32 %v1996, %v1998
    %v2000 = vadd.f32 %v1996, %v1999
    %vm2001 = vweird.f32 %v1980
    %vm2002 = vweird.f32 %v1996
    %vm2003 = vmor %vm2001, %vm2002
    %v2004 = vsel %vm2003, %v1996, %v2000
    %v2005 = vand.u32 2147483647, %v1980
    %vm2006 = vcmp.eq.f32.partialorder %v2005, 8.507059e+37
    %v2007 = vand.u32 %v1980, 2147483648
    %v2008 = vor.u32 1.1754944e-38, %v2007
    %v2009 = vsel %vm2006, %v2008, %v2004
    %v2010 = vmul.f32 1.0, %v2009
    %v2011 = vtanh.pop %v1895
    %v2012 = vtanh.pop %v1896
    %v2013 = vmul.f32 %v1995, %v1801
    %v2014 = vmul.f32 %v2010, %v1802
    %2017 = vrot.lane.b32.xlu0 %v2011, 32
    %v2018 = vpop.permute.xlu0 %2017
    %2019 = vrot.lane.b32.xlu0 %v2012, 32
    %v2020 = vpop.permute.xlu0 %2019
    %v2023 = vmul.f32 %v1995, %v2018
    %v2024 = vmul.f32 %v2010, %v2020
    %2027 = vrot.lane.b32.xlu0 %v2023, 32
    %v2028 = vpop.permute.xlu0 %2027
    %2029 = vrot.lane.b32.xlu0 %v2024, 32
    %v2030 = vpop.permute.xlu0 %2029
    %v2033 = vadd.f32 %v2013, %v2028
    %v2034 = vadd.f32 %v2014, %v2030
    %v2035 = vtanh.pop %v2033
    %v2036 = vtanh.pop %v2034
    %2039 = vrot.lane.b32.xlu0 %v2035, 32
    %v2040 = vpop.permute.xlu0 %2039
    %2041 = vrot.lane.b32.xlu0 %v2036, 32
    %v2042 = vpop.permute.xlu0 %2041
    %v2045 = vmul.f32 %v1995, %v2040
    %v2046 = vmul.f32 %v2010, %v2042
    %v2047 = vpack.c.bf16 %v2045, %v2045
    %v2048 = vpack.c.bf16 %v2046, %v2046
    %2051 = vrot.lane.b32.xlu0 %v1971, 64
    %v2052 = vpop.permute.xlu0 %2051
    %2053 = vrot.lane.b32.xlu0 %v1972, 64
    %v2054 = vpop.permute.xlu0 %2053
    %s2057 = scalar_lea.vmem [#allocation4], 48
    %2058 = vst.msk [vmem:[%s2057] sm:$0xf] %vm665, %v2052
    %2059 = vst.msk [vmem:[%s2057 + $0x4] sm:$0xf] %vm665, %v2054
    %2062 = vrot.lane.b32.xlu0 %v2047, 64
    %v2063 = vpop.permute.xlu0 %2062
    %2064 = vrot.lane.b32.xlu0 %v2048, 64
    %v2065 = vpop.permute.xlu0 %2064
    %s2068 = scalar_lea.vmem [#allocation5], 8
    %2069 = vst.msk [vmem:[%s2068] sm:$0xf] %vm665, %v2063
    %2070 = vst.msk [vmem:[%s2068 + $0x4] sm:$0xf] %vm665, %v2065
    %s2071 = scalar_lea.vmem [#allocation2], 56
    %v2072 = vld [vmem:[%s2071] sm:$0xf]
    %v2073 = vld [vmem:[%s2071 + $0x4] sm:$0xf]
    %v2074 = vunpack.c.l.bf16 %v2072
    %v2075 = vunpack.c.l.bf16 %v2073
    %v2076 = vunpack.c.l.b16 %v1971
    %v2077 = vunpack.c.l.b16 %v1972
    %v2078 = vpack.c.b16 %v2077, %v2076
    %2079 = vrot.lane.b32.xlu0 %v2078, 64
    %v2080 = vpop.permute.xlu0 %2079
    %v2082 = vsel %vm222, %v2080, 0
    %2084 = vmatpush.bf16.msra.mxu0 0
    %2085 = vmatpush.bf16.msra.mxu0 0
    %2086 = vmatpush.bf16.msra.mxu0 0
    %2087 = vmatpush.bf16.msra.mxu0 0
    %2088 = vmatpush.bf16.msra.mxu0 0
    %2089 = vmatpush.bf16.msra.mxu0 0
    %2090 = vmatpush.bf16.msra.mxu0 %v450
    %2091 = vmatpush.bf16.msra.mxu0 %v449
    %2092 = vmatmul.bf16.gmra.mxu0 %v2082
    %v2093 = vpop.f32.mrf.mxu0
    %v2094 = vadd.f32 0.0, %v2093
    %v2095 = vpop.f32.mrf.mxu0
    %v2096 = vadd.f32 0.0, %v2095
    %2097 = vdwg.mxu0
    %v2098 = vadd.f32 %v2074, %v2094
    %v2099 = vadd.f32 %v2075, %v2096
    %v2100 = vld [vmem:[#allocation3] sm:$0xf]
    %v2101 = vld [vmem:[#allocation3 + $0x4] sm:$0xf]
    %v2102 = vunpack.c.l.bf16 %v2100
    %v2103 = vunpack.c.l.bf16 %v2101
    %v2104 = vunpack.c.l.b16 %v2047
    %v2105 = vunpack.c.l.b16 %v2048
    %v2106 = vpack.c.b16 %v2105, %v2104
    %2107 = vrot.lane.b32.xlu0 %v2106, 64
    %v2108 = vpop.permute.xlu0 %2107
    %v2110 = vsel %vm222, %v2108, 0
    %2112 = vmatpush.bf16.msra.mxu0 0
    %2113 = vmatpush.bf16.msra.mxu0 0
    %2114 = vmatpush.bf16.msra.mxu0 0
    %2115 = vmatpush.bf16.msra.mxu0 0
    %2116 = vmatpush.bf16.msra.mxu0 0
    %2117 = vmatpush.bf16.msra.mxu0 0
    %2118 = vmatpush.bf16.msra.mxu0 %v486
    %2119 = vmatpush.bf16.msra.mxu0 %v485
    %2120 = vmatmul.bf16.gmra.mxu0 %v2110
    %v2121 = vpop.f32.mrf.mxu0
    %v2122 = vadd.f32 0.0, %v2121
    %v2123 = vpop.f32.mrf.mxu0
    %v2124 = vadd.f32 0.0, %v2123
    %2125 = vdwg.mxu0
    %v2126 = vadd.f32 %v2102, %v2122
    %v2127 = vadd.f32 %v2103, %v2124
    %v2128 = vxor.u32 %v2098, 2147483648
    %v2129 = vxor.u32 %v2099, 2147483648
    %v2130 = vmul.f32 %v2128, 1.442695
    %v2131 = vpow.pop %v2130
    %v2132 = vmul.f32 %v2129, 1.442695
    %v2133 = vpow.pop %v2132
    %v2134 = vadd.f32 %v2131, 1.0
    %v2135 = vadd.f32 %v2133, 1.0
    %v2136 = vrcp.pop %v2134
    %v2137 = vmul.f32 %v2134, %v2136
    %v2138 = vsub.f32 1.0, %v2137
    %v2139 = vmul.f32 %v2136, %v2138
    %v2140 = vadd.f32 %v2136, %v2139
    %vm2141 = vweird.f32 %v2134
    %vm2142 = vweird.f32 %v2136
    %vm2143 = vmor %vm2141, %vm2142
    %v2144 = vsel %vm2143, %v2136, %v2140
    %v2145 = vand.u32 2147483647, %v2134
    %vm2146 = vcmp.eq.f32.partialorder %v2145, 8.507059e+37
    %v2147 = vand.u32 %v2134, 2147483648
    %v2148 = vor.u32 1.1754944e-38, %v2147
    %v2149 = vsel %vm2146, %v2148, %v2144
    %v2150 = vmul.f32 1.0, %v2149
    %v2151 = vrcp.pop %v2135
    %v2152 = vmul.f32 %v2135, %v2151
    %v2153 = vsub.f32 1.0, %v2152
    %v2154 = vmul.f32 %v2151, %v2153
    %v2155 = vadd.f32 %v2151, %v2154
    %vm2156 = vweird.f32 %v2135
    %vm2157 = vweird.f32 %v2151
    %vm2158 = vmor %vm2156, %vm2157
    %v2159 = vsel %vm2158, %v2151, %v2155
    %v2160 = vand.u32 2147483647, %v2135
    %vm2161 = vcmp.eq.f32.partialorder %v2160, 8.507059e+37
    %v2162 = vand.u32 %v2135, 2147483648
    %v2163 = vor.u32 1.1754944e-38, %v2162
    %v2164 = vsel %vm2161, %v2163, %v2159
    %v2165 = vmul.f32 1.0, %v2164
    %v2166 = vtanh.pop %v2098
    %v2167 = vtanh.pop %v2099
    %v2168 = vmul.f32 %v2150, %v1957
    %v2169 = vmul.f32 %v2165, %v1958
    %2172 = vrot.lane.b32.xlu0 %v2166, 32
    %v2173 = vpop.permute.xlu0 %2172
    %2174 = vrot.lane.b32.xlu0 %v2167, 32
    %v2175 = vpop.permute.xlu0 %2174
    %v2178 = vmul.f32 %v2150, %v2173
    %v2179 = vmul.f32 %v2165, %v2175
    %2182 = vrot.lane.b32.xlu0 %v2178, 32
    %v2183 = vpop.permute.xlu0 %2182
    %2184 = vrot.lane.b32.xlu0 %v2179, 32
    %v2185 = vpop.permute.xlu0 %2184
    %v2188 = vadd.f32 %v2168, %v2183
    %v2189 = vadd.f32 %v2169, %v2185
    %v2190 = vtanh.pop %v2188
    %v2191 = vtanh.pop %v2189
    %2194 = vrot.lane.b32.xlu0 %v2190, 32
    %v2195 = vpop.permute.xlu0 %2194
    %2196 = vrot.lane.b32.xlu0 %v2191, 32
    %v2197 = vpop.permute.xlu0 %2196
    %v2200 = vmul.f32 %v2150, %v2195
    %v2201 = vmul.f32 %v2165, %v2197
    %v2202 = vpack.c.bf16 %v2200, %v2200
    %v2203 = vpack.c.bf16 %v2201, %v2201
    %v2204 = vxor.u32 %v2126, 2147483648
    %v2205 = vxor.u32 %v2127, 2147483648
    %v2206 = vmul.f32 %v2204, 1.442695
    %v2207 = vpow.pop %v2206
    %v2208 = vmul.f32 %v2205, 1.442695
    %v2209 = vpow.pop %v2208
    %v2210 = vadd.f32 %v2207, 1.0
    %v2211 = vadd.f32 %v2209, 1.0
    %v2212 = vrcp.pop %v2210
    %v2213 = vmul.f32 %v2210, %v2212
    %v2214 = vsub.f32 1.0, %v2213
    %v2215 = vmul.f32 %v2212, %v2214
    %v2216 = vadd.f32 %v2212, %v2215
    %vm2217 = vweird.f32 %v2210
    %vm2218 = vweird.f32 %v2212
    %vm2219 = vmor %vm2217, %vm2218
    %v2220 = vsel %vm2219, %v2212, %v2216
    %v2221 = vand.u32 2147483647, %v2210
    %vm2222 = vcmp.eq.f32.partialorder %v2221, 8.507059e+37
    %v2223 = vand.u32 %v2210, 2147483648
    %v2224 = vor.u32 1.1754944e-38, %v2223
    %v2225 = vsel %vm2222, %v2224, %v2220
    %v2226 = vmul.f32 1.0, %v2225
    %v2227 = vrcp.pop %v2211
    %v2228 = vmul.f32 %v2211, %v2227
    %v2229 = vsub.f32 1.0, %v2228
    %v2230 = vmul.f32 %v2227, %v2229
    %v2231 = vadd.f32 %v2227, %v2230
    %vm2232 = vweird.f32 %v2211
    %vm2233 = vweird.f32 %v2227
    %vm2234 = vmor %vm2232, %vm2233
    %v2235 = vsel %vm2234, %v2227, %v2231
    %v2236 = vand.u32 2147483647, %v2211
    %vm2237 = vcmp.eq.f32.partialorder %v2236, 8.507059e+37
    %v2238 = vand.u32 %v2211, 2147483648
    %v2239 = vor.u32 1.1754944e-38, %v2238
    %v2240 = vsel %vm2237, %v2239, %v2235
    %v2241 = vmul.f32 1.0, %v2240
    %v2242 = vtanh.pop %v2126
    %v2243 = vtanh.pop %v2127
    %v2244 = vmul.f32 %v2226, %v2033
    %v2245 = vmul.f32 %v2241, %v2034
    %2248 = vrot.lane.b32.xlu0 %v2242, 32
    %v2249 = vpop.permute.xlu0 %2248
    %2250 = vrot.lane.b32.xlu0 %v2243, 32
    %v2251 = vpop.permute.xlu0 %2250
    %v2254 = vmul.f32 %v2226, %v2249
    %v2255 = vmul.f32 %v2241, %v2251
    %2258 = vrot.lane.b32.xlu0 %v2254, 32
    %v2259 = vpop.permute.xlu0 %2258
    %2260 = vrot.lane.b32.xlu0 %v2255, 32
    %v2261 = vpop.permute.xlu0 %2260
    %v2264 = vadd.f32 %v2244, %v2259
    %v2265 = vadd.f32 %v2245, %v2261
    %v2266 = vtanh.pop %v2264
    %v2267 = vtanh.pop %v2265
    %2270 = vrot.lane.b32.xlu0 %v2266, 32
    %v2271 = vpop.permute.xlu0 %2270
    %2272 = vrot.lane.b32.xlu0 %v2267, 32
    %v2273 = vpop.permute.xlu0 %2272
    %v2276 = vmul.f32 %v2226, %v2271
    %v2277 = vmul.f32 %v2241, %v2273
    %v2278 = vpack.c.bf16 %v2276, %v2276
    %v2279 = vpack.c.bf16 %v2277, %v2277
    %2282 = vrot.lane.b32.xlu0 %v2202, 64
    %v2283 = vpop.permute.xlu0 %2282
    %2284 = vrot.lane.b32.xlu0 %v2203, 64
    %v2285 = vpop.permute.xlu0 %2284
    %s2288 = scalar_lea.vmem [#allocation4], 56
    %2289 = vst.msk [vmem:[%s2288] sm:$0xf] %vm665, %v2283
    %2290 = vst.msk [vmem:[%s2288 + $0x4] sm:$0xf] %vm665, %v2285
    %2293 = vrot.lane.b32.xlu0 %v2278, 64
    %v2294 = vpop.permute.xlu0 %2293
    %2295 = vrot.lane.b32.xlu0 %v2279, 64
    %v2296 = vpop.permute.xlu0 %2295
    %2299 = vst.msk [vmem:[#allocation5] sm:$0xf] %vm665, %v2294
    %2300 = vst.msk [vmem:[#allocation5 + $0x4] sm:$0xf] %vm665, %v2296
    %v2301 = vld [vmem:[#allocation4] sm:$0xf]
    %v2302 = vld [vmem:[#allocation4 + $0x4] sm:$0xf]
    %v2303 = vld [vmem:[#allocation4 + $0x8] sm:$0xf]
    %v2304 = vld [vmem:[#allocation4 + $0xc] sm:$0xf]
    %v2305 = vld [vmem:[#allocation4 + $0x10] sm:$0xf]
    %v2306 = vld [vmem:[#allocation4 + $0x14] sm:$0xf]
    %v2307 = vld [vmem:[#allocation4 + $0x18] sm:$0xf]
    %v2308 = vld [vmem:[#allocation4 + $0x1c] sm:$0xf]
    %v2309 = vld [vmem:[#allocation4 + $0x20] sm:$0xf]
    %v2310 = vld [vmem:[#allocation4 + $0x24] sm:$0xf]
    %v2311 = vld [vmem:[#allocation4 + $0x28] sm:$0xf]
    %v2312 = vld [vmem:[#allocation4 + $0x2c] sm:$0xf]
    %v2313 = vld [vmem:[#allocation4 + $0x30] sm:$0xf]
    %v2314 = vld [vmem:[#allocation4 + $0x34] sm:$0xf]
    %v2315 = vld [vmem:[#allocation4 + $0x38] sm:$0xf]
    %v2316 = vld [vmem:[#allocation4 + $0x3c] sm:$0xf]
    %v2317 = vld [vmem:[#allocation5] sm:$0xf]
    %v2318 = vld [vmem:[#allocation5 + $0x4] sm:$0xf]
    %v2319 = vld [vmem:[#allocation5 + $0x8] sm:$0xf]
    %v2320 = vld [vmem:[#allocation5 + $0xc] sm:$0xf]
    %v2321 = vld [vmem:[#allocation5 + $0x10] sm:$0xf]
    %v2322 = vld [vmem:[#allocation5 + $0x14] sm:$0xf]
    %v2323 = vld [vmem:[#allocation5 + $0x18] sm:$0xf]
    %v2324 = vld [vmem:[#allocation5 + $0x1c] sm:$0xf]
    %v2325 = vld [vmem:[#allocation5 + $0x20] sm:$0xf]
    %v2326 = vld [vmem:[#allocation5 + $0x24] sm:$0xf]
    %v2327 = vld [vmem:[#allocation5 + $0x28] sm:$0xf]
    %v2328 = vld [vmem:[#allocation5 + $0x2c] sm:$0xf]
    %v2329 = vld [vmem:[#allocation5 + $0x30] sm:$0xf]
    %v2330 = vld [vmem:[#allocation5 + $0x34] sm:$0xf]
    %v2331 = vld [vmem:[#allocation5 + $0x38] sm:$0xf]
    %v2332 = vld [vmem:[#allocation5 + $0x3c] sm:$0xf]
    %v2333 = vld [vmem:[#allocation15] sm:$0xf]
    %v2334 = vld [vmem:[#allocation15 + $0x4] sm:$0xf]
    %v2335 = vld [vmem:[#allocation15 + $0x8] sm:$0xf]
    %v2336 = vld [vmem:[#allocation15 + $0xc] sm:$0xf]
    %v2337 = vld [vmem:[#allocation17] sm:$0xf]
    %v2338 = vld [vmem:[#allocation17 + $0x4] sm:$0xf]
    %v2339 = vld [vmem:[#allocation17 + $0x8] sm:$0xf]
    %v2340 = vld [vmem:[#allocation17 + $0xc] sm:$0xf]
    %v2357 = vunpack.c.l.b16 %v2317
    %v2358 = vunpack.c.l.b16 %v2318
    %v2359 = vunpack.c.l.b16 %v2319
    %v2360 = vunpack.c.l.b16 %v2320
    %v2361 = vunpack.c.l.b16 %v2321
    %v2362 = vunpack.c.l.b16 %v2322
    %v2363 = vunpack.c.l.b16 %v2323
    %v2364 = vunpack.c.l.b16 %v2324
    %v2365 = vunpack.c.l.b16 %v2325
    %v2366 = vunpack.c.l.b16 %v2326
    %v2367 = vunpack.c.l.b16 %v2327
    %v2368 = vunpack.c.l.b16 %v2328
    %v2369 = vunpack.c.l.b16 %v2329
    %v2370 = vunpack.c.l.b16 %v2330
    %v2371 = vunpack.c.l.b16 %v2331
    %v2372 = vunpack.c.l.b16 %v2332
    %v2373 = vpack.c.b16 %v2358, %v2357
    %v2374 = vpack.c.b16 %v2360, %v2359
    %v2375 = vpack.c.b16 %v2362, %v2361
    %v2376 = vpack.c.b16 %v2364, %v2363
    %v2377 = vpack.c.b16 %v2366, %v2365
    %v2378 = vpack.c.b16 %v2368, %v2367
    %v2379 = vpack.c.b16 %v2370, %v2369
    %v2380 = vpack.c.b16 %v2372, %v2371
    %v2385 = vunpack.c.l.b16 %v2337
    %v2386 = vunpack.c.l.b16 %v2338
    %v2387 = vunpack.c.l.b16 %v2339
    %v2388 = vunpack.c.l.b16 %v2340
    %v2389 = vpack.c.b16 %v2386, %v2385
    %v2390 = vpack.c.b16 %v2388, %v2387
    %v2394 = vsel %vm222, %v2373, 0
    %v2397 = vsel %vm222, %v2374, 0
    %v2400 = vsel %vm222, %v2375, 0
    %v2403 = vsel %vm222, %v2376, 0
    %v2406 = vsel %vm222, %v2377, 0
    %v2409 = vsel %vm222, %v2378, 0
    %v2412 = vsel %vm222, %v2379, 0
    %v2415 = vsel %vm222, %v2380, 0
    %2417 = vmatpush.bf16.msra.mxu0 0
    %2418 = vmatpush.bf16.msra.mxu0 0
    %2419 = vmatpush.bf16.msra.mxu0 0
    %2420 = vmatpush.bf16.msra.mxu0 0
    %2421 = vmatpush.bf16.msra.mxu0 0
    %2422 = vmatpush.bf16.msra.mxu0 0
    %2423 = vmatpush.bf16.msra.mxu0 %v2390
    %2424 = vmatpush.bf16.msra.mxu0 %v2389
    %2425 = vmatmul.bf16.gmra.mxu0 %v2394
    %v2426 = vpop.f32.mrf.mxu0
    %v2427 = vadd.f32 0.0, %v2426
    %v2428 = vpop.f32.mrf.mxu0
    %v2429 = vadd.f32 0.0, %v2428
    %2430 = vmatmul.bf16.gmra.mxu0 %v2397
    %v2431 = vpop.f32.mrf.mxu0
    %v2432 = vadd.f32 0.0, %v2431
    %v2433 = vpop.f32.mrf.mxu0
    %v2434 = vadd.f32 0.0, %v2433
    %2435 = vmatmul.bf16.gmra.mxu0 %v2400
    %v2436 = vpop.f32.mrf.mxu0
    %v2437 = vadd.f32 0.0, %v2436
    %v2438 = vpop.f32.mrf.mxu0
    %v2439 = vadd.f32 0.0, %v2438
    %2440 = vmatmul.bf16.gmra.mxu0 %v2403
    %v2441 = vpop.f32.mrf.mxu0
    %v2442 = vadd.f32 0.0, %v2441
    %v2443 = vpop.f32.mrf.mxu0
    %v2444 = vadd.f32 0.0, %v2443
    %2445 = vmatmul.bf16.gmra.mxu0 %v2406
    %v2446 = vpop.f32.mrf.mxu0
    %v2447 = vadd.f32 0.0, %v2446
    %v2448 = vpop.f32.mrf.mxu0
    %v2449 = vadd.f32 0.0, %v2448
    %2450 = vmatmul.bf16.gmra.mxu0 %v2409
    %v2451 = vpop.f32.mrf.mxu0
    %v2452 = vadd.f32 0.0, %v2451
    %v2453 = vpop.f32.mrf.mxu0
    %v2454 = vadd.f32 0.0, %v2453
    %2455 = vmatmul.bf16.gmra.mxu0 %v2412
    %v2456 = vpop.f32.mrf.mxu0
    %v2457 = vadd.f32 0.0, %v2456
    %v2458 = vpop.f32.mrf.mxu0
    %v2459 = vadd.f32 0.0, %v2458
    %2460 = vmatmul.bf16.gmra.mxu0 %v2415
    %v2461 = vpop.f32.mrf.mxu0
    %v2462 = vadd.f32 0.0, %v2461
    %v2463 = vpop.f32.mrf.mxu0
    %v2464 = vadd.f32 0.0, %v2463
    %2465 = vdwg.mxu0
    %v2482 = vunpack.c.l.b16 %v2301
    %v2483 = vunpack.c.l.b16 %v2302
    %v2484 = vunpack.c.l.b16 %v2303
    %v2485 = vunpack.c.l.b16 %v2304
    %v2486 = vunpack.c.l.b16 %v2305
    %v2487 = vunpack.c.l.b16 %v2306
    %v2488 = vunpack.c.l.b16 %v2307
    %v2489 = vunpack.c.l.b16 %v2308
    %v2490 = vunpack.c.l.b16 %v2309
    %v2491 = vunpack.c.l.b16 %v2310
    %v2492 = vunpack.c.l.b16 %v2311
    %v2493 = vunpack.c.l.b16 %v2312
    %v2494 = vunpack.c.l.b16 %v2313
    %v2495 = vunpack.c.l.b16 %v2314
    %v2496 = vunpack.c.l.b16 %v2315
    %v2497 = vunpack.c.l.b16 %v2316
    %v2498 = vpack.c.b16 %v2483, %v2482
    %v2499 = vpack.c.b16 %v2485, %v2484
    %v2500 = vpack.c.b16 %v2487, %v2486
    %v2501 = vpack.c.b16 %v2489, %v2488
    %v2502 = vpack.c.b16 %v2491, %v2490
    %v2503 = vpack.c.b16 %v2493, %v2492
    %v2504 = vpack.c.b16 %v2495, %v2494
    %v2505 = vpack.c.b16 %v2497, %v2496
    %v2510 = vunpack.c.l.b16 %v2333
    %v2511 = vunpack.c.l.b16 %v2334
    %v2512 = vunpack.c.l.b16 %v2335
    %v2513 = vunpack.c.l.b16 %v2336
    %v2514 = vpack.c.b16 %v2511, %v2510
    %v2515 = vpack.c.b16 %v2513, %v2512
    %v2519 = vsel %vm222, %v2498, 0
    %v2522 = vsel %vm222, %v2499, 0
    %v2525 = vsel %vm222, %v2500, 0
    %v2528 = vsel %vm222, %v2501, 0
    %v2531 = vsel %vm222, %v2502, 0
    %v2534 = vsel %vm222, %v2503, 0
    %v2537 = vsel %vm222, %v2504, 0
    %v2540 = vsel %vm222, %v2505, 0
    %2542 = vmatpush.bf16.msra.mxu0 0
    %2543 = vmatpush.bf16.msra.mxu0 0
    %2544 = vmatpush.bf16.msra.mxu0 0
    %2545 = vmatpush.bf16.msra.mxu0 0
    %2546 = vmatpush.bf16.msra.mxu0 0
    %2547 = vmatpush.bf16.msra.mxu0 0
    %2548 = vmatpush.bf16.msra.mxu0 %v2515
    %2549 = vmatpush.bf16.msra.mxu0 %v2514
    %2550 = vmatmul.bf16.gmra.mxu0 %v2519
    %v2551 = vpop.f32.mrf.mxu0
    %v2552 = vadd.f32 %v2427, %v2551
    %v2553 = vpop.f32.mrf.mxu0
    %v2554 = vadd.f32 %v2429, %v2553
    %2555 = vmatmul.bf16.gmra.mxu0 %v2522
    %v2556 = vpop.f32.mrf.mxu0
    %v2557 = vadd.f32 %v2432, %v2556
    %v2558 = vpop.f32.mrf.mxu0
    %v2559 = vadd.f32 %v2434, %v2558
    %2560 = vmatmul.bf16.gmra.mxu0 %v2525
    %v2561 = vpop.f32.mrf.mxu0
    %v2562 = vadd.f32 %v2437, %v2561
    %v2563 = vpop.f32.mrf.mxu0
    %v2564 = vadd.f32 %v2439, %v2563
    %2565 = vmatmul.bf16.gmra.mxu0 %v2528
    %v2566 = vpop.f32.mrf.mxu0
    %v2567 = vadd.f32 %v2442, %v2566
    %v2568 = vpop.f32.mrf.mxu0
    %v2569 = vadd.f32 %v2444, %v2568
    %2570 = vmatmul.bf16.gmra.mxu0 %v2531
    %v2571 = vpop.f32.mrf.mxu0
    %v2572 = vadd.f32 %v2447, %v2571
    %v2573 = vpop.f32.mrf.mxu0
    %v2574 = vadd.f32 %v2449, %v2573
    %2575 = vmatmul.bf16.gmra.mxu0 %v2534
    %v2576 = vpop.f32.mrf.mxu0
    %v2577 = vadd.f32 %v2452, %v2576
    %v2578 = vpop.f32.mrf.mxu0
    %v2579 = vadd.f32 %v2454, %v2578
    %2580 = vmatmul.bf16.gmra.mxu0 %v2537
    %v2581 = vpop.f32.mrf.mxu0
    %v2582 = vadd.f32 %v2457, %v2581
    %v2583 = vpop.f32.mrf.mxu0
    %v2584 = vadd.f32 %v2459, %v2583
    %2585 = vmatmul.bf16.gmra.mxu0 %v2540
    %v2586 = vpop.f32.mrf.mxu0
    %v2587 = vadd.f32 %v2462, %v2586
    %v2588 = vpop.f32.mrf.mxu0
    %v2589 = vadd.f32 %v2464, %v2588
    %2590 = vdwg.mxu0
    %v2591 = vld [vmem:[%s9] sm:$0x1]
    %v2593 = vperm.slane %v2591, 0
    %v2595 = vadd.f32 %v2552, %v2593
    %v2596 = vadd.f32 %v2554, %v2593
    %v2597 = vadd.f32 %v2557, %v2593
    %v2598 = vadd.f32 %v2559, %v2593
    %v2599 = vadd.f32 %v2562, %v2593
    %v2600 = vadd.f32 %v2564, %v2593
    %v2601 = vadd.f32 %v2567, %v2593
    %v2602 = vadd.f32 %v2569, %v2593
    %v2603 = vadd.f32 %v2572, %v2593
    %v2604 = vadd.f32 %v2574, %v2593
    %v2605 = vadd.f32 %v2577, %v2593
    %v2606 = vadd.f32 %v2579, %v2593
    %v2607 = vadd.f32 %v2582, %v2593
    %v2608 = vadd.f32 %v2584, %v2593
    %v2609 = vadd.f32 %v2587, %v2593
    %v2610 = vadd.f32 %v2589, %v2593
    %v2611 = vpack.c.bf16 %v2595, %v2595
    %v2612 = vpack.c.bf16 %v2596, %v2596
    %v2613 = vpack.c.bf16 %v2597, %v2597
    %v2614 = vpack.c.bf16 %v2598, %v2598
    %v2615 = vpack.c.bf16 %v2599, %v2599
    %v2616 = vpack.c.bf16 %v2600, %v2600
    %v2617 = vpack.c.bf16 %v2601, %v2601
    %v2618 = vpack.c.bf16 %v2602, %v2602
    %v2619 = vpack.c.bf16 %v2603, %v2603
    %v2620 = vpack.c.bf16 %v2604, %v2604
    %v2621 = vpack.c.bf16 %v2605, %v2605
    %v2622 = vpack.c.bf16 %v2606, %v2606
    %v2623 = vpack.c.bf16 %v2607, %v2607
    %v2624 = vpack.c.bf16 %v2608, %v2608
    %v2625 = vpack.c.bf16 %v2609, %v2609
    %v2626 = vpack.c.bf16 %v2610, %v2610
    %2627 = vst [vmem:[#allocation18] sm:$0xf] %v2611
    %2628 = vst [vmem:[#allocation18 + $0x4] sm:$0xf] %v2612
    %2629 = vst [vmem:[#allocation18 + $0x8] sm:$0xf] %v2613
    %2630 = vst [vmem:[#allocation18 + $0xc] sm:$0xf] %v2614
    %2631 = vst [vmem:[#allocation18 + $0x10] sm:$0xf] %v2615
    %2632 = vst [vmem:[#allocation18 + $0x14] sm:$0xf] %v2616
    %2633 = vst [vmem:[#allocation18 + $0x18] sm:$0xf] %v2617
    %2634 = vst [vmem:[#allocation18 + $0x1c] sm:$0xf] %v2618
    %2635 = vst [vmem:[#allocation18 + $0x20] sm:$0xf] %v2619
    %2636 = vst [vmem:[#allocation18 + $0x24] sm:$0xf] %v2620
    %2637 = vst [vmem:[#allocation18 + $0x28] sm:$0xf] %v2621
    %2638 = vst [vmem:[#allocation18 + $0x2c] sm:$0xf] %v2622
    %2639 = vst [vmem:[#allocation18 + $0x30] sm:$0xf] %v2623
    %2640 = vst [vmem:[#allocation18 + $0x34] sm:$0xf] %v2624
    %2641 = vst [vmem:[#allocation18 + $0x38] sm:$0xf] %v2625
    %2642 = vst [vmem:[#allocation18 + $0x3c] sm:$0xf] %v2626
    // Predicated region
    $region70: #{tpu_custom_call.1} parent=1 // pred_check
      _
    $region71: #{tpu_custom_call.1} parent=1 // pred_check_branch
      %2644 = sbr.rel (0) target = $region73
    $region72: #{tpu_custom_call.1} parent=1 // pred_region
      %2646 = vsyncadd [#allocation8], 0
      %s2647 = sshll.u32 [#allocation18], 4
      %s2648 = int_to_ptr.vmem [resolvable:$true] %s2647
      %s2649 = sshll.u32 %s10, 4
      %s2650 = int_to_ptr.hbm [resolvable:$true] %s2649
      %2655 = dma.vmem_to_hbm [thread:$0]  %s2648, 1024, %s2650, [#allocation8], 64, 64, 4
    $region73: #{tpu_custom_call.1} parent=1 // pred_fallthru
      _
    // Predicated region
    $region74: #{tpu_custom_call.1} parent=1 // pred_check
      _
    $region75: #{tpu_custom_call.1} parent=1 // pred_check_branch
      %2657 = sbr.rel (0) target = $region77
    $region76: #{tpu_custom_call.1} parent=1 // pred_region
      %2659 = dma.done [#allocation8], 1024
    $region77: #{tpu_custom_call.1} parent=1 // pred_fallthru
      _
    %2660 = vsyncpa [#allocation7], 1
    %2661 = vsyncpa [#allocation10], 1
    %2662 = vsyncpa [#allocation13], 1
    %2663 = vsyncpa [#allocation16], 1
    %2664 = vsyncpa [#allocation8], 1

</llo_original>
